<compile_context>
chip_gen: v5e
topology: v5e:2x2
jax: 0.10.0
libtpu: 0.0.40
codegen_flags: <defaults>
</compile_context>

<pallas_src>
import math
import functools

import jax
import jax.numpy as jnp
from jax.experimental import pallas as pl
from jax.experimental.pallas import tpu as pltpu


# ---------------------------------------------------------------------------
# Fused kernel: initial conv + num_blocks residual blocks + flatten + final linear
# ---------------------------------------------------------------------------
def _fused_kernel(inp_ref, ctx_ref, cols_ref, rows_ref, norm_ref, wbig_ref, wf_ref,
                  o_ref, *, B, S, D, T, H, NB, IN_F):
    f32 = jnp.float32
    dh = D // H
    inv_scale = 1.0 / math.sqrt(float(dh))
    sqrt_d = math.sqrt(float(D))
    inv_n = 1.0 / float(S * D)

    # ---------------- unpack small packed params (static VMEM slices) ----------------
    w_init_in = cols_ref[:, 0:IN_F]                      # (S, IN_F)
    w_init_ctx = cols_ref[:, IN_F:IN_F + T]              # (S, T)
    b_init = cols_ref[:, IN_F + T:IN_F + T + 1]          # (S, 1)
    blk_col0 = IN_F + T + 1

    pe = rows_ref[0:S, :]                                # (S, D)
    bf = rows_ref[S + 2 * NB:S + 2 * NB + 1, :]          # (1, OPAD)

    inp = inp_ref[...]                                   # (B, IN_F) f32
    ctx_slabs = [ctx_ref[b] for b in range(B)]           # B x (T, D) f32

    # ---------------- initial pointwise Conv1d (kernel_size=1) ----------------
    # temps[b] = (W_in @ inputs[b])  (constant along length, rank-1 term)
    #          + W_ctx @ context[b]  (K=T=3 -> T rank-1 VPU broadcast-MACs)
    #          + bias.  The torch repeat+concat is never materialized.
    rc = jax.lax.dot_general(w_init_in, inp, (((1,), (1,)), ((), ())),
                             preferred_element_type=f32)                 # (S, B)
    slabs = []
    for b in range(B):
        ctx_b = ctx_slabs[b]
        acc = w_init_ctx[:, 0:1] * ctx_b[0:1, :]                         # (S, D)
        for t in range(1, T):
            acc = acc + w_init_ctx[:, t:t + 1] * ctx_b[t:t + 1, :]
        slabs.append(acc + rc[:, b:b + 1] + b_init)
    x2 = jnp.concatenate(slabs, axis=0)                                  # (B*S, D) residual stream

    pe2 = jnp.concatenate([pe] * B, axis=0)                              # (B*S, D)

    # Block-diagonal additive mask so batch-folded attention never crosses batches.
    # Built from constant (S, S) blocks (no iota / integer division needed).
    zero_blk = jnp.zeros((S, S), f32)
    neg_blk = jnp.full((S, S), -1e30, f32)
    neg_mask = jnp.concatenate(
        [jnp.concatenate([zero_blk if bi == bj else neg_blk for bj in range(B)], axis=1)
         for bi in range(B)], axis=0)                                    # (B*S, B*S)

    def slab_layernorm(y, g, be):
        # torch LayerNorm(normalized_shape=(S, D)): stats over the whole per-batch slab.
        # One-pass stats: var = E[x^2] - mu^2.
        s1 = jnp.sum(y, keepdims=True)
        s2 = jnp.sum(y * y, keepdims=True)
        mu = s1 * inv_n
        var = s2 * inv_n - mu * mu
        return (y - mu) * jax.lax.rsqrt(var + 1e-5) * g + be

    # ---------------- TransformerResidualBlocks (statically unrolled) ----------------
    for i in range(NB):
        # bf16-stored weights, upcast to f32 in-register (DMA halved, MXU math f32).
        wq = wbig_ref[i, 0, :, :].astype(f32)
        wk = wbig_ref[i, 1, :, :].astype(f32)
        wv = wbig_ref[i, 2, :, :].astype(f32)
        wo = wbig_ref[i, 3, :, :].astype(f32)
        w1 = wbig_ref[i, 4, :, :].astype(f32)
        w2 = wbig_ref[i, 5, :, :].astype(f32)
        g1 = norm_ref[i, 0:S, :]
        be1 = norm_ref[i, S:2 * S, :]
        g2 = norm_ref[i, 2 * S:3 * S, :]
        be2 = norm_ref[i, 3 * S:4 * S, :]
        b1 = rows_ref[S + i:S + i + 1, :]                                # (1, F)
        b2 = rows_ref[S + NB + i:S + NB + i + 1, :]                      # (1, D)
        c0 = blk_col0 + i * (T + 1)
        wc = cols_ref[:, c0:c0 + T]                                      # (S, T)
        bc = cols_ref[:, c0 + T:c0 + T + 1]                              # (S, 1)

        x_in = x2
        xs = x_in * sqrt_d + pe2                                         # scale + pos-encoding

        # Q/K/V with batch folded into the MXU M dimension (M = B*S).
        q = jnp.dot(xs, wq, preferred_element_type=f32)
        k = jnp.dot(xs, wk, preferred_element_type=f32)
        v = jnp.dot(xs, wv, preferred_element_type=f32)

        # Batch-folded multi-head attention with block-diagonal mask; W_o folded per head.
        attn = None
        for h in range(H):
            cs = slice(h * dh, (h + 1) * dh)
            qh, kh, vh = q[:, cs], k[:, cs], v[:, cs]                    # (B*S, dh)
            sc = jax.lax.dot_general(qh, kh, (((1,), (1,)), ((), ())),
                                     preferred_element_type=f32) * inv_scale
            sc = sc + neg_mask                                           # (B*S, B*S)
            m = jnp.max(sc, axis=-1, keepdims=True)
            e = jnp.exp(sc - m)
            denom = jnp.sum(e, axis=-1, keepdims=True)
            p = e * pl.reciprocal(denom, approx=True)                    # EUP divide
            oh = jnp.dot(p, vh, preferred_element_type=f32)              # (B*S, dh)
            ch = jnp.dot(oh, wo[cs, :], preferred_element_type=f32)      # (B*S, D)
            attn = ch if attn is None else attn + ch

        # AddNorm1 (per-batch slab LayerNorm)
        y = attn + xs
        y1 = jnp.concatenate(
            [slab_layernorm(y[b * S:(b + 1) * S, :], g1, be1) for b in range(B)],
            axis=0)

        # PositionWiseFFN (batch folded; F = 128 -> lane-dense hidden activation)
        ff = jnp.dot(y1, w1, preferred_element_type=f32) + b1
        ff = jnp.maximum(ff, 0.0)
        ff = jnp.dot(ff, w2, preferred_element_type=f32) + b2

        # AddNorm2 + context_layer GLU + block residual
        z = ff + y1
        out_slabs = []
        for b in range(B):
            y2 = slab_layernorm(z[b * S:(b + 1) * S, :], g2, be2)
            ctx_b = ctx_slabs[b]
            cp = bc + wc[:, 0:1] * ctx_b[0:1, :]                         # K=T rank-1 VPU MACs
            for t in range(1, T):
                cp = cp + wc[:, t:t + 1] * ctx_b[t:t + 1, :]
            out_slabs.append(x_in[b * S:(b + 1) * S, :] + y2 * jax.nn.sigmoid(cp))
        x2 = jnp.concatenate(out_slabs, axis=0)

    # ---------------- Flatten + final Linear (lane-dense padded output) ----------------
    # out[b] = b_final + sum_s x_b[s, :] @ Wf[s]; done as S matmuls of (B, D) x (D, OPAD)
    # (M = B) instead of B*S serialized M=1 dots.
    acc = jnp.concatenate([bf] * B, axis=0)                              # (B, OPAD)
    for s in range(S):
        lhs = jnp.concatenate(
            [x2[b * S + s:b * S + s + 1, :] for b in range(B)], axis=0)  # (B, D)
        wfs = wf_ref[s, :, :].astype(f32)                                # (D, OPAD)
        acc = acc + jnp.dot(lhs, wfs, preferred_element_type=f32)
    o_ref[...] = acc                                                     # (B, OPAD)


# ---------------------------------------------------------------------------
# Wrapper: one pallas_call for the whole forward
# ---------------------------------------------------------------------------
def transformer_residual_net(inputs, context, params, num_heads):
    B, IN_F = inputs.shape
    S, D = params["pe"].shape
    T = context.shape[1]
    NB = params["wq"].shape[0]
    OPAD = params["wf_pack"].shape[-1]

    kernel = functools.partial(_fused_kernel, B=B, S=S, D=D, T=T, H=num_heads,
                               NB=NB, IN_F=IN_F)
    vmem = pltpu.MemorySpace.VMEM
    out_pad = pl.pallas_call(
        kernel,
        out_shape=jax.ShapeDtypeStruct((B, OPAD), jnp.float32),
        in_specs=[pl.BlockSpec(memory_space=vmem)] * 7,
        out_specs=pl.BlockSpec(memory_space=vmem),
    )(inputs, context,
      params["cols_pack"], params["row_pack"], params["norm_pack"],
      params["w_pack"], params["wf_pack"])
    return out_pad[:, :params["out_features"]]


# ---------------------------------------------------------------------------
# Pure-JAX reference (mirrors the PyTorch math; uses the same bf16-rounded weights)
# ---------------------------------------------------------------------------
def ref_forward(inputs, context, params, num_heads):
    f32 = jnp.float32
    B, in_f = inputs.shape
    S, D = params["pe"].shape
    w_init = jnp.concatenate([params["w_init_in"], params["w_init_ctx"]], axis=1)
    x = jnp.broadcast_to(inputs[:, :, None], (B, in_f, D))
    x = jnp.concatenate([x, context], axis=1)                            # (B, in+T, D)
    temps = jnp.einsum("oc,bcl->bol", w_init, x) + params["b_init"][None]
    pe = params["pe"]
    NB = params["wq"].shape[0]
    dh = D // num_heads
    for i in range(NB):
        wq = params["wq"][i].astype(f32)
        wk = params["wk"][i].astype(f32)
        wv = params["wv"][i].astype(f32)
        wo = params["wo"][i].astype(f32)
        w1 = params["w1"][i].astype(f32)
        w2 = params["w2"][i].astype(f32)
        xin = temps
        xs = xin * math.sqrt(float(D)) + pe[None]
        q = xs @ wq
        k = xs @ wk
        v = xs @ wv
        outs = []
        for h in range(num_heads):
            sl = slice(h * dh, (h + 1) * dh)
            s = jnp.einsum("bqd,bkd->bqk", q[..., sl], k[..., sl]) / math.sqrt(float(dh))
            p = jax.nn.softmax(s, axis=-1)
            outs.append(jnp.einsum("bqk,bkd->bqd", p, v[..., sl]))
        attn = jnp.concatenate(outs, axis=-1) @ wo
        y = attn + xs
        mu = jnp.mean(y, axis=(1, 2), keepdims=True)
        var = jnp.mean((y - mu) ** 2, axis=(1, 2), keepdims=True)
        y1 = (y - mu) / jnp.sqrt(var + 1e-5) * params["g1"][i][None] + params["be1"][i][None]
        f = jnp.maximum(y1 @ w1 + params["b1"][i], 0.0) @ w2 + params["b2"][i]
        z = f + y1
        mu2 = jnp.mean(z, axis=(1, 2), keepdims=True)
        var2 = jnp.mean((z - mu2) ** 2, axis=(1, 2), keepdims=True)
        y2 = (z - mu2) / jnp.sqrt(var2 + 1e-5) * params["g2"][i][None] + params["be2"][i][None]
        cproj = jnp.einsum("ot,btl->bol", params["wc"][i], context) + params["bc"][i][None]
        temps = xin + y2 * jax.nn.sigmoid(cproj)
    flat = temps.reshape(B, -1)
    return flat @ params["w_final"].astype(f32) + params["b_final"][None]


# ---------------------------------------------------------------------------
# Deterministic parameter construction + wrapper-side packing
# ---------------------------------------------------------------------------
def positional_encoding(S, D):
    pos = jnp.arange(S, dtype=jnp.float32)[:, None]
    div = jnp.power(10000.0, jnp.arange(0, D, 2, dtype=jnp.float32) / D)
    ang = pos / div
    P = jnp.zeros((S, D), jnp.float32)
    P = P.at[:, 0::2].set(jnp.sin(ang))
    P = P.at[:, 1::2].set(jnp.cos(ang))
    return P


def init_params(key, *, in_features, out_features, hidden_features, context_tokens,
                context_features, ffn_num_hiddens, num_blocks):
    S, D, T, F_ = hidden_features, context_features, context_tokens, ffn_num_hiddens
    NB, IN_F = num_blocks, in_features
    OPAD = ((out_features + 127) // 128) * 128           # lane-dense padded output width
    # Packing layout below assumes F == D and OPAD == D (true for module defaults here).
    # TODO(synk): generalize param packing when ffn_num_hiddens != context_features.
    assert F_ == D and OPAD == D

    bf16 = jnp.bfloat16

    def dense(k, shape, fan_in, dtype=jnp.float32):
        return (jax.random.normal(k, shape, jnp.float32) / math.sqrt(fan_in)).astype(dtype)

    ks = iter(jax.random.split(key, 32))

    params = {
        "out_features": out_features,
        "pe": positional_encoding(S, D),
        # initial Conv1d (kernel_size=1) weight, split into input / context columns
        "w_init_in": dense(next(ks), (S, IN_F), IN_F + T),
        "w_init_ctx": dense(next(ks), (S, T), IN_F + T),
        "b_init": dense(next(ks), (S, 1), IN_F + T),
        # big per-block weights, stored bf16 (halves the dominant weight DMA)
        "wq": dense(next(ks), (NB, D, D), D, bf16),
        "wk": dense(next(ks), (NB, D, D), D, bf16),
        "wv": dense(next(ks), (NB, D, D), D, bf16),
        "wo": dense(next(ks), (NB, D, D), D, bf16),
        "w1": dense(next(ks), (NB, D, F_), D, bf16),
        "w2": dense(next(ks), (NB, F_, D), F_, bf16),
        "b1": dense(next(ks), (NB, 1, F_), D),
        "b2": dense(next(ks), (NB, 1, D), F_),
        "g1": 1.0 + 0.1 * jax.random.normal(next(ks), (NB, S, D), jnp.float32),
        "be1": 0.1 * jax.random.normal(next(ks), (NB, S, D), jnp.float32),
        "g2": 1.0 + 0.1 * jax.random.normal(next(ks), (NB, S, D), jnp.float32),
        "be2": 0.1 * jax.random.normal(next(ks), (NB, S, D), jnp.float32),
        "wc": dense(next(ks), (NB, S, T), T),
        "bc": dense(next(ks), (NB, S, 1), T),
        "w_final": dense(next(ks), (S * D, out_features), S * D, bf16),
        "b_final": dense(next(ks), (out_features,), S * D),
    }

    # ---- one-time wrapper-side packing (cuts kernel input DMAs 22 -> 7) ----
    cols = [params["w_init_in"], params["w_init_ctx"], params["b_init"]]
    for i in range(NB):
        cols += [params["wc"][i], params["bc"][i]]
    params["cols_pack"] = jnp.concatenate(cols, axis=1)          # (S, IN_F+T+1+NB*(T+1))

    bf_pad = jnp.zeros((1, OPAD), jnp.float32).at[0, :out_features].set(params["b_final"])
    rowp = [params["pe"]]
    rowp += [params["b1"][i] for i in range(NB)]
    rowp += [params["b2"][i] for i in range(NB)]
    rowp += [bf_pad]
    params["row_pack"] = jnp.concatenate(rowp, axis=0)           # (S + 2*NB + 1, D)

    params["norm_pack"] = jnp.concatenate(
        [params["g1"], params["be1"], params["g2"], params["be2"]], axis=1)  # (NB, 4S, D)

    params["w_pack"] = jnp.stack(
        [params["wq"], params["wk"], params["wv"], params["wo"],
         params["w1"], params["w2"]], axis=1)                    # (NB, 6, D, D) bf16

    wf_pad = jnp.zeros((S * D, OPAD), bf16).at[:, :out_features].set(params["w_final"])
    params["wf_pack"] = wf_pad.reshape(S, D, OPAD)               # (S, D, OPAD) bf16

    return params


if __name__ == "__main__":
    # Small, module-consistent shapes.
    B = 2
    in_features = 4
    out_features = 5
    hidden_features = 8        # S : transformer "sequence" axis
    context_tokens = 3         # T
    context_features = 128     # D : model dim (= Conv1d length L)
    ffn_num_hiddens = 128      # module default (lane-dense on TPU)
    num_heads = 2
    num_blocks = 2             # module default

    key = jax.random.PRNGKey(0)
    k_params, k_in, k_ctx = jax.random.split(key, 3)
    params = init_params(
        k_params,
        in_features=in_features, out_features=out_features,
        hidden_features=hidden_features, context_tokens=context_tokens,
        context_features=context_features, ffn_num_hiddens=ffn_num_hiddens,
        num_blocks=num_blocks,
    )

    inputs = jax.random.normal(k_in, (B, in_features), jnp.float32)
    context = jax.random.normal(k_ctx, (B, context_tokens, context_features), jnp.float32)

    out = transformer_residual_net(inputs, context, params, num_heads)
    out = jax.block_until_ready(out)
    assert out.shape == (B, out_features)

    ref = ref_forward(inputs, context, params, num_heads)
    err = float(jnp.max(jnp.abs(out - ref)))
    if not bool(jnp.allclose(out, ref, atol=2e-2, rtol=2e-2)):
        raise RuntimeError(f"Pallas output mismatch vs reference, max_abs_err={err}")

    print("KERNEL_OK")
</pallas_src>

<mosaic_0001>
module attributes {stable_mosaic.version = 11 : i64} {
  func.func @_fused_kernel(%arg0: memref<2x4xf32, #tpu.memory_space<vmem>>, %arg1: memref<2x3x128xf32, #tpu.memory_space<vmem>>, %arg2: memref<8x16xf32, #tpu.memory_space<vmem>>, %arg3: memref<13x128xf32, #tpu.memory_space<vmem>>, %arg4: memref<2x32x128xf32, #tpu.memory_space<vmem>>, %arg5: memref<2x6x128x128xbf16, #tpu.memory_space<vmem>>, %arg6: memref<8x128x128xbf16, #tpu.memory_space<vmem>>, %arg7: memref<2x128xf32, #tpu.memory_space<vmem>>) attributes {dimension_semantics = [], scalar_prefetch = 0 : i64, scratch_operands = 0 : i64, tpu.core_type = #tpu.core_type<tc>} {
    %c0 = arith.constant 0 : index
    %c0_0 = arith.constant 0 : index
    %0 = vector.load %arg2[%c0, %c0_0] : memref<8x16xf32, #tpu.memory_space<vmem>>, vector<8x4xf32>
    %c0_1 = arith.constant 0 : index
    %c4 = arith.constant 4 : index
    %1 = vector.load %arg2[%c0_1, %c4] : memref<8x16xf32, #tpu.memory_space<vmem>>, vector<8x3xf32>
    %c0_2 = arith.constant 0 : index
    %c7 = arith.constant 7 : index
    %2 = vector.load %arg2[%c0_2, %c7] : memref<8x16xf32, #tpu.memory_space<vmem>>, vector<8x1xf32>
    %c0_3 = arith.constant 0 : index
    %c0_4 = arith.constant 0 : index
    %3 = vector.load %arg3[%c0_3, %c0_4] : memref<13x128xf32, #tpu.memory_space<vmem>>, vector<8x128xf32>
    %c12 = arith.constant 12 : index
    %c0_5 = arith.constant 0 : index
    %4 = vector.load %arg3[%c12, %c0_5] : memref<13x128xf32, #tpu.memory_space<vmem>>, vector<1x128xf32>
    %c0_6 = arith.constant 0 : index
    %c0_7 = arith.constant 0 : index
    %5 = vector.load %arg0[%c0_6, %c0_7] : memref<2x4xf32, #tpu.memory_space<vmem>>, vector<2x4xf32>
    %c0_8 = arith.constant 0 : index
    %c0_9 = arith.constant 0 : index
    %c0_10 = arith.constant 0 : index
    %6 = vector.load %arg1[%c0_8, %c0_9, %c0_10] : memref<2x3x128xf32, #tpu.memory_space<vmem>>, vector<1x3x128xf32>
    %7 = vector.shape_cast %6 : vector<1x3x128xf32> to vector<3x128xf32>
    %c1 = arith.constant 1 : index
    %c0_11 = arith.constant 0 : index
    %c0_12 = arith.constant 0 : index
    %8 = vector.load %arg1[%c1, %c0_11, %c0_12] : memref<2x3x128xf32, #tpu.memory_space<vmem>>, vector<1x3x128xf32>
    %9 = vector.shape_cast %8 : vector<1x3x128xf32> to vector<3x128xf32>
    %cst = arith.constant dense<0.000000e+00> : vector<8x2xf32>
    %10 = tpu.matmul %0, %5, %cst {dimension_numbers = #tpu.dot_dimension_numbers<[1], [1], [0], [0], [0, 0, 1, 0], [], []>} : vector<8x4xf32>, vector<2x4xf32>, vector<8x2xf32> -> vector<8x2xf32>
    %11 = vector.extract_strided_slice %1 {offsets = [0, 0], sizes = [8, 1], strides = [1, 1]} : vector<8x3xf32> to vector<8x1xf32>
    %12 = vector.extract_strided_slice %7 {offsets = [0, 0], sizes = [1, 128], strides = [1, 1]} : vector<3x128xf32> to vector<1x128xf32>
    %13 = vector.broadcast %11 : vector<8x1xf32> to vector<8x128xf32>
    %14 = vector.broadcast %12 : vector<1x128xf32> to vector<8x128xf32>
    %15 = arith.mulf %13, %14 : vector<8x128xf32>
    %16 = vector.extract_strided_slice %1 {offsets = [0, 1], sizes = [8, 1], strides = [1, 1]} : vector<8x3xf32> to vector<8x1xf32>
    %17 = vector.extract_strided_slice %7 {offsets = [1, 0], sizes = [1, 128], strides = [1, 1]} : vector<3x128xf32> to vector<1x128xf32>
    %18 = vector.broadcast %16 : vector<8x1xf32> to vector<8x128xf32>
    %19 = vector.broadcast %17 : vector<1x128xf32> to vector<8x128xf32>
    %20 = arith.mulf %18, %19 : vector<8x128xf32>
    %21 = arith.addf %15, %20 : vector<8x128xf32>
    %22 = vector.extract_strided_slice %1 {offsets = [0, 2], sizes = [8, 1], strides = [1, 1]} : vector<8x3xf32> to vector<8x1xf32>
    %23 = vector.extract_strided_slice %7 {offsets = [2, 0], sizes = [1, 128], strides = [1, 1]} : vector<3x128xf32> to vector<1x128xf32>
    %24 = vector.broadcast %22 : vector<8x1xf32> to vector<8x128xf32>
    %25 = vector.broadcast %23 : vector<1x128xf32> to vector<8x128xf32>
    %26 = arith.mulf %24, %25 : vector<8x128xf32>
    %27 = arith.addf %21, %26 : vector<8x128xf32>
    %28 = vector.extract_strided_slice %10 {offsets = [0, 0], sizes = [8, 1], strides = [1, 1]} : vector<8x2xf32> to vector<8x1xf32>
    %29 = vector.broadcast %28 : vector<8x1xf32> to vector<8x128xf32>
    %30 = arith.addf %27, %29 : vector<8x128xf32>
    %31 = vector.broadcast %2 : vector<8x1xf32> to vector<8x128xf32>
    %32 = arith.addf %30, %31 : vector<8x128xf32>
    %33 = vector.extract_strided_slice %1 {offsets = [0, 0], sizes = [8, 1], strides = [1, 1]} : vector<8x3xf32> to vector<8x1xf32>
    %34 = vector.extract_strided_slice %9 {offsets = [0, 0], sizes = [1, 128], strides = [1, 1]} : vector<3x128xf32> to vector<1x128xf32>
    %35 = vector.broadcast %33 : vector<8x1xf32> to vector<8x128xf32>
    %36 = vector.broadcast %34 : vector<1x128xf32> to vector<8x128xf32>
    %37 = arith.mulf %35, %36 : vector<8x128xf32>
    %38 = vector.extract_strided_slice %1 {offsets = [0, 1], sizes = [8, 1], strides = [1, 1]} : vector<8x3xf32> to vector<8x1xf32>
    %39 = vector.extract_strided_slice %9 {offsets = [1, 0], sizes = [1, 128], strides = [1, 1]} : vector<3x128xf32> to vector<1x128xf32>
    %40 = vector.broadcast %38 : vector<8x1xf32> to vector<8x128xf32>
    %41 = vector.broadcast %39 : vector<1x128xf32> to vector<8x128xf32>
    %42 = arith.mulf %40, %41 : vector<8x128xf32>
    %43 = arith.addf %37, %42 : vector<8x128xf32>
    %44 = vector.extract_strided_slice %1 {offsets = [0, 2], sizes = [8, 1], strides = [1, 1]} : vector<8x3xf32> to vector<8x1xf32>
    %45 = vector.extract_strided_slice %9 {offsets = [2, 0], sizes = [1, 128], strides = [1, 1]} : vector<3x128xf32> to vector<1x128xf32>
    %46 = vector.broadcast %44 : vector<8x1xf32> to vector<8x128xf32>
    %47 = vector.broadcast %45 : vector<1x128xf32> to vector<8x128xf32>
    %48 = arith.mulf %46, %47 : vector<8x128xf32>
    %49 = arith.addf %43, %48 : vector<8x128xf32>
    %50 = vector.extract_strided_slice %10 {offsets = [0, 1], sizes = [8, 1], strides = [1, 1]} : vector<8x2xf32> to vector<8x1xf32>
    %51 = vector.broadcast %50 : vector<8x1xf32> to vector<8x128xf32>
    %52 = arith.addf %49, %51 : vector<8x128xf32>
    %53 = vector.broadcast %2 : vector<8x1xf32> to vector<8x128xf32>
    %54 = arith.addf %52, %53 : vector<8x128xf32>
    %55 = tpu.concatenate %32, %54 in 0 : vector<8x128xf32>, vector<8x128xf32> -> vector<16x128xf32>
    %56 = tpu.concatenate %3, %3 in 0 : vector<8x128xf32>, vector<8x128xf32> -> vector<16x128xf32>
    %cst_13 = arith.constant 0.000000e+00 : f32
    %57 = vector.broadcast %cst_13 : f32 to vector<8x8xf32>
    %cst_14 = arith.constant -1.000000e+30 : f32
    %58 = vector.broadcast %cst_14 : f32 to vector<8x8xf32>
    %59 = tpu.concatenate %57, %58 in 1 : vector<8x8xf32>, vector<8x8xf32> -> vector<8x16xf32>
    %60 = tpu.concatenate %58, %57 in 1 : vector<8x8xf32>, vector<8x8xf32> -> vector<8x16xf32>
    %61 = tpu.concatenate %59, %60 in 0 : vector<8x16xf32>, vector<8x16xf32> -> vector<16x16xf32>
    %c0_15 = arith.constant 0 : index
    %c0_16 = arith.constant 0 : index
    %c0_17 = arith.constant 0 : index
    %c0_18 = arith.constant 0 : index
    %62 = vector.load %arg5[%c0_15, %c0_16, %c0_17, %c0_18] : memref<2x6x128x128xbf16, #tpu.memory_space<vmem>>, vector<1x1x128x128xbf16>
    %63 = vector.shape_cast %62 : vector<1x1x128x128xbf16> to vector<128x128xbf16>
    %64 = arith.extf %63 : vector<128x128xbf16> to vector<128x128xf32>
    %c0_19 = arith.constant 0 : index
    %c1_20 = arith.constant 1 : index
    %c0_21 = arith.constant 0 : index
    %c0_22 = arith.constant 0 : index
    %65 = vector.load %arg5[%c0_19, %c1_20, %c0_21, %c0_22] : memref<2x6x128x128xbf16, #tpu.memory_space<vmem>>, vector<1x1x128x128xbf16>
    %66 = vector.shape_cast %65 : vector<1x1x128x128xbf16> to vector<128x128xbf16>
    %67 = arith.extf %66 : vector<128x128xbf16> to vector<128x128xf32>
    %c0_23 = arith.constant 0 : index
    %c2 = arith.constant 2 : index
    %c0_24 = arith.constant 0 : index
    %c0_25 = arith.constant 0 : index
    %68 = vector.load %arg5[%c0_23, %c2, %c0_24, %c0_25] : memref<2x6x128x128xbf16, #tpu.memory_space<vmem>>, vector<1x1x128x128xbf16>
    %69 = vector.shape_cast %68 : vector<1x1x128x128xbf16> to vector<128x128xbf16>
    %70 = arith.extf %69 : vector<128x128xbf16> to vector<128x128xf32>
    %c0_26 = arith.constant 0 : index
    %c3 = arith.constant 3 : index
    %c0_27 = arith.constant 0 : index
    %c0_28 = arith.constant 0 : index
    %71 = vector.load %arg5[%c0_26, %c3, %c0_27, %c0_28] : memref<2x6x128x128xbf16, #tpu.memory_space<vmem>>, vector<1x1x128x128xbf16>
    %72 = vector.shape_cast %71 : vector<1x1x128x128xbf16> to vector<128x128xbf16>
    %73 = arith.extf %72 : vector<128x128xbf16> to vector<128x128xf32>
    %c0_29 = arith.constant 0 : index
    %c4_30 = arith.constant 4 : index
    %c0_31 = arith.constant 0 : index
    %c0_32 = arith.constant 0 : index
    %74 = vector.load %arg5[%c0_29, %c4_30, %c0_31, %c0_32] : memref<2x6x128x128xbf16, #tpu.memory_space<vmem>>, vector<1x1x128x128xbf16>
    %75 = vector.shape_cast %74 : vector<1x1x128x128xbf16> to vector<128x128xbf16>
    %76 = arith.extf %75 : vector<128x128xbf16> to vector<128x128xf32>
    %c0_33 = arith.constant 0 : index
    %c5 = arith.constant 5 : index
    %c0_34 = arith.constant 0 : index
    %c0_35 = arith.constant 0 : index
    %77 = vector.load %arg5[%c0_33, %c5, %c0_34, %c0_35] : memref<2x6x128x128xbf16, #tpu.memory_space<vmem>>, vector<1x1x128x128xbf16>
    %78 = vector.shape_cast %77 : vector<1x1x128x128xbf16> to vector<128x128xbf16>
    %79 = arith.extf %78 : vector<128x128xbf16> to vector<128x128xf32>
    %c0_36 = arith.constant 0 : index
    %c0_37 = arith.constant 0 : index
    %c0_38 = arith.constant 0 : index
    %80 = vector.load %arg4[%c0_36, %c0_37, %c0_38] : memref<2x32x128xf32, #tpu.memory_space<vmem>>, vector<1x8x128xf32>
    %81 = vector.shape_cast %80 : vector<1x8x128xf32> to vector<8x128xf32>
    %c0_39 = arith.constant 0 : index
    %c8 = arith.constant 8 : index
    %c0_40 = arith.constant 0 : index
    %82 = vector.load %arg4[%c0_39, %c8, %c0_40] : memref<2x32x128xf32, #tpu.memory_space<vmem>>, vector<1x8x128xf32>
    %83 = vector.shape_cast %82 : vector<1x8x128xf32> to vector<8x128xf32>
    %c0_41 = arith.constant 0 : index
    %c16 = arith.constant 16 : index
    %c0_42 = arith.constant 0 : index
    %84 = vector.load %arg4[%c0_41, %c16, %c0_42] : memref<2x32x128xf32, #tpu.memory_space<vmem>>, vector<1x8x128xf32>
    %85 = vector.shape_cast %84 : vector<1x8x128xf32> to vector<8x128xf32>
    %c0_43 = arith.constant 0 : index
    %c24 = arith.constant 24 : index
    %c0_44 = arith.constant 0 : index
    %86 = vector.load %arg4[%c0_43, %c24, %c0_44] : memref<2x32x128xf32, #tpu.memory_space<vmem>>, vector<1x8x128xf32>
    %87 = vector.shape_cast %86 : vector<1x8x128xf32> to vector<8x128xf32>
    %c8_45 = arith.constant 8 : index
    %c0_46 = arith.constant 0 : index
    %88 = vector.load %arg3[%c8_45, %c0_46] : memref<13x128xf32, #tpu.memory_space<vmem>>, vector<1x128xf32>
    %c10 = arith.constant 10 : index
    %c0_47 = arith.constant 0 : index
    %89 = vector.load %arg3[%c10, %c0_47] : memref<13x128xf32, #tpu.memory_space<vmem>>, vector<1x128xf32>
    %c0_48 = arith.constant 0 : index
    %c8_49 = arith.constant 8 : index
    %90 = vector.load %arg2[%c0_48, %c8_49] : memref<8x16xf32, #tpu.memory_space<vmem>>, vector<8x3xf32>
    %c0_50 = arith.constant 0 : index
    %c11 = arith.constant 11 : index
    %91 = vector.load %arg2[%c0_50, %c11] : memref<8x16xf32, #tpu.memory_space<vmem>>, vector<8x1xf32>
    %cst_51 = arith.constant 11.3137083 : f32
    %92 = vector.broadcast %cst_51 : f32 to vector<16x128xf32>
    %93 = arith.mulf %55, %92 : vector<16x128xf32>
    %94 = arith.addf %93, %56 : vector<16x128xf32>
    %cst_52 = arith.constant dense<0.000000e+00> : vector<16x128xf32>
    %95 = tpu.matmul %94, %64, %cst_52 {dimension_numbers = #tpu.dot_dimension_numbers<[1], [0], [0], [1], [0, 0, 1, 1], [], []>} : vector<16x128xf32>, vector<128x128xf32>, vector<16x128xf32> -> vector<16x128xf32>
    %cst_53 = arith.constant dense<0.000000e+00> : vector<16x128xf32>
    %96 = tpu.matmul %94, %67, %cst_53 {dimension_numbers = #tpu.dot_dimension_numbers<[1], [0], [0], [1], [0, 0, 1, 1], [], []>} : vector<16x128xf32>, vector<128x128xf32>, vector<16x128xf32> -> vector<16x128xf32>
    %cst_54 = arith.constant dense<0.000000e+00> : vector<16x128xf32>
    %97 = tpu.matmul %94, %70, %cst_54 {dimension_numbers = #tpu.dot_dimension_numbers<[1], [0], [0], [1], [0, 0, 1, 1], [], []>} : vector<16x128xf32>, vector<128x128xf32>, vector<16x128xf32> -> vector<16x128xf32>
    %98 = vector.extract_strided_slice %95 {offsets = [0, 0], sizes = [16, 64], strides = [1, 1]} : vector<16x128xf32> to vector<16x64xf32>
    %99 = vector.extract_strided_slice %96 {offsets = [0, 0], sizes = [16, 64], strides = [1, 1]} : vector<16x128xf32> to vector<16x64xf32>
    %100 = vector.extract_strided_slice %97 {offsets = [0, 0], sizes = [16, 64], strides = [1, 1]} : vector<16x128xf32> to vector<16x64xf32>
    %cst_55 = arith.constant dense<0.000000e+00> : vector<16x16xf32>
    %101 = tpu.matmul %98, %99, %cst_55 {dimension_numbers = #tpu.dot_dimension_numbers<[1], [1], [0], [0], [0, 0, 1, 0], [], []>} : vector<16x64xf32>, vector<16x64xf32>, vector<16x16xf32> -> vector<16x16xf32>
    %cst_56 = arith.constant 1.250000e-01 : f32
    %102 = vector.broadcast %cst_56 : f32 to vector<16x16xf32>
    %103 = arith.mulf %101, %102 : vector<16x16xf32>
    %104 = arith.addf %103, %61 : vector<16x16xf32>
    %cst_57 = arith.constant dense<0xFF800000> : vector<16xf32>
    %105 = vector.multi_reduction <maximumf>, %104, %cst_57 [1] : vector<16x16xf32> to vector<16xf32>
    %106 = vector.shape_cast %105 : vector<16xf32> to vector<16x1xf32>
    %107 = vector.broadcast %106 : vector<16x1xf32> to vector<16x16xf32>
    %108 = arith.subf %104, %107 : vector<16x16xf32>
    %109 = math.exp %108 : vector<16x16xf32>
    %cst_58 = arith.constant dense<0.000000e+00> : vector<16xf32>
    %110 = vector.multi_reduction <add>, %109, %cst_58 [1] : vector<16x16xf32> to vector<16xf32>
    %111 = vector.shape_cast %110 : vector<16xf32> to vector<16x1xf32>
    %112 = tpu.reciprocal %111 {approx = true} : vector<16x1xf32> -> vector<16x1xf32>
    %113 = vector.broadcast %112 : vector<16x1xf32> to vector<16x16xf32>
    %114 = arith.mulf %109, %113 : vector<16x16xf32>
    %cst_59 = arith.constant dense<0.000000e+00> : vector<16x64xf32>
    %115 = tpu.matmul %114, %100, %cst_59 {dimension_numbers = #tpu.dot_dimension_numbers<[1], [0], [0], [1], [0, 0, 1, 1], [], []>} : vector<16x16xf32>, vector<16x64xf32>, vector<16x64xf32> -> vector<16x64xf32>
    %116 = vector.extract_strided_slice %73 {offsets = [0, 0], sizes = [64, 128], strides = [1, 1]} : vector<128x128xf32> to vector<64x128xf32>
    %cst_60 = arith.constant dense<0.000000e+00> : vector<16x128xf32>
    %117 = tpu.matmul %115, %116, %cst_60 {dimension_numbers = #tpu.dot_dimension_numbers<[1], [0], [0], [1], [0, 0, 1, 1], [], []>} : vector<16x64xf32>, vector<64x128xf32>, vector<16x128xf32> -> vector<16x128xf32>
    %118 = vector.extract_strided_slice %95 {offsets = [0, 64], sizes = [16, 64], strides = [1, 1]} : vector<16x128xf32> to vector<16x64xf32>
    %119 = vector.extract_strided_slice %96 {offsets = [0, 64], sizes = [16, 64], strides = [1, 1]} : vector<16x128xf32> to vector<16x64xf32>
    %120 = vector.extract_strided_slice %97 {offsets = [0, 64], sizes = [16, 64], strides = [1, 1]} : vector<16x128xf32> to vector<16x64xf32>
    %cst_61 = arith.constant dense<0.000000e+00> : vector<16x16xf32>
    %121 = tpu.matmul %118, %119, %cst_61 {dimension_numbers = #tpu.dot_dimension_numbers<[1], [1], [0], [0], [0, 0, 1, 0], [], []>} : vector<16x64xf32>, vector<16x64xf32>, vector<16x16xf32> -> vector<16x16xf32>
    %cst_62 = arith.constant 1.250000e-01 : f32
    %122 = vector.broadcast %cst_62 : f32 to vector<16x16xf32>
    %123 = arith.mulf %121, %122 : vector<16x16xf32>
    %124 = arith.addf %123, %61 : vector<16x16xf32>
    %cst_63 = arith.constant dense<0xFF800000> : vector<16xf32>
    %125 = vector.multi_reduction <maximumf>, %124, %cst_63 [1] : vector<16x16xf32> to vector<16xf32>
    %126 = vector.shape_cast %125 : vector<16xf32> to vector<16x1xf32>
    %127 = vector.broadcast %126 : vector<16x1xf32> to vector<16x16xf32>
    %128 = arith.subf %124, %127 : vector<16x16xf32>
    %129 = math.exp %128 : vector<16x16xf32>
    %cst_64 = arith.constant dense<0.000000e+00> : vector<16xf32>
    %130 = vector.multi_reduction <add>, %129, %cst_64 [1] : vector<16x16xf32> to vector<16xf32>
    %131 = vector.shape_cast %130 : vector<16xf32> to vector<16x1xf32>
    %132 = tpu.reciprocal %131 {approx = true} : vector<16x1xf32> -> vector<16x1xf32>
    %133 = vector.broadcast %132 : vector<16x1xf32> to vector<16x16xf32>
    %134 = arith.mulf %129, %133 : vector<16x16xf32>
    %cst_65 = arith.constant dense<0.000000e+00> : vector<16x64xf32>
    %135 = tpu.matmul %134, %120, %cst_65 {dimension_numbers = #tpu.dot_dimension_numbers<[1], [0], [0], [1], [0, 0, 1, 1], [], []>} : vector<16x16xf32>, vector<16x64xf32>, vector<16x64xf32> -> vector<16x64xf32>
    %136 = vector.extract_strided_slice %73 {offsets = [64, 0], sizes = [64, 128], strides = [1, 1]} : vector<128x128xf32> to vector<64x128xf32>
    %cst_66 = arith.constant dense<0.000000e+00> : vector<16x128xf32>
    %137 = tpu.matmul %135, %136, %cst_66 {dimension_numbers = #tpu.dot_dimension_numbers<[1], [0], [0], [1], [0, 0, 1, 1], [], []>} : vector<16x64xf32>, vector<64x128xf32>, vector<16x128xf32> -> vector<16x128xf32>
    %138 = arith.addf %117, %137 : vector<16x128xf32>
    %139 = arith.addf %138, %94 : vector<16x128xf32>
    %140 = vector.extract_strided_slice %139 {offsets = [0, 0], sizes = [8, 128], strides = [1, 1]} : vector<16x128xf32> to vector<8x128xf32>
    %141 = vector.shape_cast %140 : vector<8x128xf32> to vector<1x8x128xf32>
    %cst_67 = arith.constant dense<0.000000e+00> : vector<1xf32>
    %142 = vector.multi_reduction <add>, %141, %cst_67 [1, 2] : vector<1x8x128xf32> to vector<1xf32>
    %143 = vector.shape_cast %142 : vector<1xf32> to vector<1x1x1xf32>
    %144 = vector.extract %143[0, 0, 0] : f32 from vector<1x1x1xf32>
    %145 = vector.broadcast %144 : f32 to vector<1x1xf32>
    %146 = arith.mulf %140, %140 : vector<8x128xf32>
    %147 = vector.shape_cast %146 : vector<8x128xf32> to vector<1x8x128xf32>
    %cst_68 = arith.constant dense<0.000000e+00> : vector<1xf32>
    %148 = vector.multi_reduction <add>, %147, %cst_68 [1, 2] : vector<1x8x128xf32> to vector<1xf32>
    %149 = vector.shape_cast %148 : vector<1xf32> to vector<1x1x1xf32>
    %150 = vector.extract %149[0, 0, 0] : f32 from vector<1x1x1xf32>
    %151 = vector.broadcast %150 : f32 to vector<1x1xf32>
    %cst_69 = arith.constant 9.765625E-4 : f32
    %152 = vector.broadcast %cst_69 : f32 to vector<1x1xf32>
    %153 = arith.mulf %145, %152 : vector<1x1xf32>
    %cst_70 = arith.constant 9.765625E-4 : f32
    %154 = vector.broadcast %cst_70 : f32 to vector<1x1xf32>
    %155 = arith.mulf %151, %154 : vector<1x1xf32>
    %156 = arith.mulf %153, %153 : vector<1x1xf32>
    %157 = arith.subf %155, %156 : vector<1x1xf32>
    %158 = vector.broadcast %153 : vector<1x1xf32> to vector<8x128xf32>
    %159 = arith.subf %140, %158 : vector<8x128xf32>
    %cst_71 = arith.constant 9.99999974E-6 : f32
    %160 = vector.broadcast %cst_71 : f32 to vector<1x1xf32>
    %161 = arith.addf %157, %160 : vector<1x1xf32>
    %162 = math.rsqrt %161 : vector<1x1xf32>
    %163 = vector.broadcast %162 : vector<1x1xf32> to vector<8x128xf32>
    %164 = arith.mulf %159, %163 : vector<8x128xf32>
    %165 = arith.mulf %164, %81 : vector<8x128xf32>
    %166 = arith.addf %165, %83 : vector<8x128xf32>
    %167 = vector.extract_strided_slice %139 {offsets = [8, 0], sizes = [8, 128], strides = [1, 1]} : vector<16x128xf32> to vector<8x128xf32>
    %168 = vector.shape_cast %167 : vector<8x128xf32> to vector<1x8x128xf32>
    %cst_72 = arith.constant dense<0.000000e+00> : vector<1xf32>
    %169 = vector.multi_reduction <add>, %168, %cst_72 [1, 2] : vector<1x8x128xf32> to vector<1xf32>
    %170 = vector.shape_cast %169 : vector<1xf32> to vector<1x1x1xf32>
    %171 = vector.extract %170[0, 0, 0] : f32 from vector<1x1x1xf32>
    %172 = vector.broadcast %171 : f32 to vector<1x1xf32>
    %173 = arith.mulf %167, %167 : vector<8x128xf32>
    %174 = vector.shape_cast %173 : vector<8x128xf32> to vector<1x8x128xf32>
    %cst_73 = arith.constant dense<0.000000e+00> : vector<1xf32>
    %175 = vector.multi_reduction <add>, %174, %cst_73 [1, 2] : vector<1x8x128xf32> to vector<1xf32>
    %176 = vector.shape_cast %175 : vector<1xf32> to vector<1x1x1xf32>
    %177 = vector.extract %176[0, 0, 0] : f32 from vector<1x1x1xf32>
    %178 = vector.broadcast %177 : f32 to vector<1x1xf32>
    %cst_74 = arith.constant 9.765625E-4 : f32
    %179 = vector.broadcast %cst_74 : f32 to vector<1x1xf32>
    %180 = arith.mulf %172, %179 : vector<1x1xf32>
    %cst_75 = arith.constant 9.765625E-4 : f32
    %181 = vector.broadcast %cst_75 : f32 to vector<1x1xf32>
    %182 = arith.mulf %178, %181 : vector<1x1xf32>
    %183 = arith.mulf %180, %180 : vector<1x1xf32>
    %184 = arith.subf %182, %183 : vector<1x1xf32>
    %185 = vector.broadcast %180 : vector<1x1xf32> to vector<8x128xf32>
    %186 = arith.subf %167, %185 : vector<8x128xf32>
    %cst_76 = arith.constant 9.99999974E-6 : f32
    %187 = vector.broadcast %cst_76 : f32 to vector<1x1xf32>
    %188 = arith.addf %184, %187 : vector<1x1xf32>
    %189 = math.rsqrt %188 : vector<1x1xf32>
    %190 = vector.broadcast %189 : vector<1x1xf32> to vector<8x128xf32>
    %191 = arith.mulf %186, %190 : vector<8x128xf32>
    %192 = arith.mulf %191, %81 : vector<8x128xf32>
    %193 = arith.addf %192, %83 : vector<8x128xf32>
    %194 = tpu.concatenate %166, %193 in 0 : vector<8x128xf32>, vector<8x128xf32> -> vector<16x128xf32>
    %cst_77 = arith.constant dense<0.000000e+00> : vector<16x128xf32>
    %195 = tpu.matmul %194, %76, %cst_77 {dimension_numbers = #tpu.dot_dimension_numbers<[1], [0], [0], [1], [0, 0, 1, 1], [], []>} : vector<16x128xf32>, vector<128x128xf32>, vector<16x128xf32> -> vector<16x128xf32>
    %196 = vector.broadcast %88 : vector<1x128xf32> to vector<16x128xf32>
    %197 = arith.addf %195, %196 : vector<16x128xf32>
    %cst_78 = arith.constant 0.000000e+00 : f32
    %198 = vector.broadcast %cst_78 : f32 to vector<16x128xf32>
    %199 = arith.maximumf %197, %198 : vector<16x128xf32>
    %cst_79 = arith.constant dense<0.000000e+00> : vector<16x128xf32>
    %200 = tpu.matmul %199, %79, %cst_79 {dimension_numbers = #tpu.dot_dimension_numbers<[1], [0], [0], [1], [0, 0, 1, 1], [], []>} : vector<16x128xf32>, vector<128x128xf32>, vector<16x128xf32> -> vector<16x128xf32>
    %201 = vector.broadcast %89 : vector<1x128xf32> to vector<16x128xf32>
    %202 = arith.addf %200, %201 : vector<16x128xf32>
    %203 = arith.addf %202, %194 : vector<16x128xf32>
    %204 = vector.extract_strided_slice %203 {offsets = [0, 0], sizes = [8, 128], strides = [1, 1]} : vector<16x128xf32> to vector<8x128xf32>
    %205 = vector.shape_cast %204 : vector<8x128xf32> to vector<1x8x128xf32>
    %cst_80 = arith.constant dense<0.000000e+00> : vector<1xf32>
    %206 = vector.multi_reduction <add>, %205, %cst_80 [1, 2] : vector<1x8x128xf32> to vector<1xf32>
    %207 = vector.shape_cast %206 : vector<1xf32> to vector<1x1x1xf32>
    %208 = vector.extract %207[0, 0, 0] : f32 from vector<1x1x1xf32>
    %209 = vector.broadcast %208 : f32 to vector<1x1xf32>
    %210 = arith.mulf %204, %204 : vector<8x128xf32>
    %211 = vector.shape_cast %210 : vector<8x128xf32> to vector<1x8x128xf32>
    %cst_81 = arith.constant dense<0.000000e+00> : vector<1xf32>
    %212 = vector.multi_reduction <add>, %211, %cst_81 [1, 2] : vector<1x8x128xf32> to vector<1xf32>
    %213 = vector.shape_cast %212 : vector<1xf32> to vector<1x1x1xf32>
    %214 = vector.extract %213[0, 0, 0] : f32 from vector<1x1x1xf32>
    %215 = vector.broadcast %214 : f32 to vector<1x1xf32>
    %cst_82 = arith.constant 9.765625E-4 : f32
    %216 = vector.broadcast %cst_82 : f32 to vector<1x1xf32>
    %217 = arith.mulf %209, %216 : vector<1x1xf32>
    %cst_83 = arith.constant 9.765625E-4 : f32
    %218 = vector.broadcast %cst_83 : f32 to vector<1x1xf32>
    %219 = arith.mulf %215, %218 : vector<1x1xf32>
    %220 = arith.mulf %217, %217 : vector<1x1xf32>
    %221 = arith.subf %219, %220 : vector<1x1xf32>
    %222 = vector.broadcast %217 : vector<1x1xf32> to vector<8x128xf32>
    %223 = arith.subf %204, %222 : vector<8x128xf32>
    %cst_84 = arith.constant 9.99999974E-6 : f32
    %224 = vector.broadcast %cst_84 : f32 to vector<1x1xf32>
    %225 = arith.addf %221, %224 : vector<1x1xf32>
    %226 = math.rsqrt %225 : vector<1x1xf32>
    %227 = vector.broadcast %226 : vector<1x1xf32> to vector<8x128xf32>
    %228 = arith.mulf %223, %227 : vector<8x128xf32>
    %229 = arith.mulf %228, %85 : vector<8x128xf32>
    %230 = arith.addf %229, %87 : vector<8x128xf32>
    %231 = vector.extract_strided_slice %90 {offsets = [0, 0], sizes = [8, 1], strides = [1, 1]} : vector<8x3xf32> to vector<8x1xf32>
    %232 = vector.extract_strided_slice %7 {offsets = [0, 0], sizes = [1, 128], strides = [1, 1]} : vector<3x128xf32> to vector<1x128xf32>
    %233 = vector.broadcast %231 : vector<8x1xf32> to vector<8x128xf32>
    %234 = vector.broadcast %232 : vector<1x128xf32> to vector<8x128xf32>
    %235 = arith.mulf %233, %234 : vector<8x128xf32>
    %236 = vector.broadcast %91 : vector<8x1xf32> to vector<8x128xf32>
    %237 = arith.addf %236, %235 : vector<8x128xf32>
    %238 = vector.extract_strided_slice %90 {offsets = [0, 1], sizes = [8, 1], strides = [1, 1]} : vector<8x3xf32> to vector<8x1xf32>
    %239 = vector.extract_strided_slice %7 {offsets = [1, 0], sizes = [1, 128], strides = [1, 1]} : vector<3x128xf32> to vector<1x128xf32>
    %240 = vector.broadcast %238 : vector<8x1xf32> to vector<8x128xf32>
    %241 = vector.broadcast %239 : vector<1x128xf32> to vector<8x128xf32>
    %242 = arith.mulf %240, %241 : vector<8x128xf32>
    %243 = arith.addf %237, %242 : vector<8x128xf32>
    %244 = vector.extract_strided_slice %90 {offsets = [0, 2], sizes = [8, 1], strides = [1, 1]} : vector<8x3xf32> to vector<8x1xf32>
    %245 = vector.extract_strided_slice %7 {offsets = [2, 0], sizes = [1, 128], strides = [1, 1]} : vector<3x128xf32> to vector<1x128xf32>
    %246 = vector.broadcast %244 : vector<8x1xf32> to vector<8x128xf32>
    %247 = vector.broadcast %245 : vector<1x128xf32> to vector<8x128xf32>
    %248 = arith.mulf %246, %247 : vector<8x128xf32>
    %249 = arith.addf %243, %248 : vector<8x128xf32>
    %250 = vector.extract_strided_slice %55 {offsets = [0, 0], sizes = [8, 128], strides = [1, 1]} : vector<16x128xf32> to vector<8x128xf32>
    %251 = arith.negf %249 : vector<8x128xf32>
    %252 = math.exp %251 : vector<8x128xf32>
    %cst_85 = arith.constant 1.000000e+00 : f32
    %253 = vector.broadcast %cst_85 : f32 to vector<8x128xf32>
    %254 = arith.addf %253, %252 : vector<8x128xf32>
    %255 = arith.divf %253, %254 : vector<8x128xf32>
    %256 = arith.mulf %230, %255 : vector<8x128xf32>
    %257 = arith.addf %250, %256 : vector<8x128xf32>
    %258 = vector.extract_strided_slice %203 {offsets = [8, 0], sizes = [8, 128], strides = [1, 1]} : vector<16x128xf32> to vector<8x128xf32>
    %259 = vector.shape_cast %258 : vector<8x128xf32> to vector<1x8x128xf32>
    %cst_86 = arith.constant dense<0.000000e+00> : vector<1xf32>
    %260 = vector.multi_reduction <add>, %259, %cst_86 [1, 2] : vector<1x8x128xf32> to vector<1xf32>
    %261 = vector.shape_cast %260 : vector<1xf32> to vector<1x1x1xf32>
    %262 = vector.extract %261[0, 0, 0] : f32 from vector<1x1x1xf32>
    %263 = vector.broadcast %262 : f32 to vector<1x1xf32>
    %264 = arith.mulf %258, %258 : vector<8x128xf32>
    %265 = vector.shape_cast %264 : vector<8x128xf32> to vector<1x8x128xf32>
    %cst_87 = arith.constant dense<0.000000e+00> : vector<1xf32>
    %266 = vector.multi_reduction <add>, %265, %cst_87 [1, 2] : vector<1x8x128xf32> to vector<1xf32>
    %267 = vector.shape_cast %266 : vector<1xf32> to vector<1x1x1xf32>
    %268 = vector.extract %267[0, 0, 0] : f32 from vector<1x1x1xf32>
    %269 = vector.broadcast %268 : f32 to vector<1x1xf32>
    %cst_88 = arith.constant 9.765625E-4 : f32
    %270 = vector.broadcast %cst_88 : f32 to vector<1x1xf32>
    %271 = arith.mulf %263, %270 : vector<1x1xf32>
    %cst_89 = arith.constant 9.765625E-4 : f32
    %272 = vector.broadcast %cst_89 : f32 to vector<1x1xf32>
    %273 = arith.mulf %269, %272 : vector<1x1xf32>
    %274 = arith.mulf %271, %271 : vector<1x1xf32>
    %275 = arith.subf %273, %274 : vector<1x1xf32>
    %276 = vector.broadcast %271 : vector<1x1xf32> to vector<8x128xf32>
    %277 = arith.subf %258, %276 : vector<8x128xf32>
    %cst_90 = arith.constant 9.99999974E-6 : f32
    %278 = vector.broadcast %cst_90 : f32 to vector<1x1xf32>
    %279 = arith.addf %275, %278 : vector<1x1xf32>
    %280 = math.rsqrt %279 : vector<1x1xf32>
    %281 = vector.broadcast %280 : vector<1x1xf32> to vector<8x128xf32>
    %282 = arith.mulf %277, %281 : vector<8x128xf32>
    %283 = arith.mulf %282, %85 : vector<8x128xf32>
    %284 = arith.addf %283, %87 : vector<8x128xf32>
    %285 = vector.extract_strided_slice %90 {offsets = [0, 0], sizes = [8, 1], strides = [1, 1]} : vector<8x3xf32> to vector<8x1xf32>
    %286 = vector.extract_strided_slice %9 {offsets = [0, 0], sizes = [1, 128], strides = [1, 1]} : vector<3x128xf32> to vector<1x128xf32>
    %287 = vector.broadcast %285 : vector<8x1xf32> to vector<8x128xf32>
    %288 = vector.broadcast %286 : vector<1x128xf32> to vector<8x128xf32>
    %289 = arith.mulf %287, %288 : vector<8x128xf32>
    %290 = vector.broadcast %91 : vector<8x1xf32> to vector<8x128xf32>
    %291 = arith.addf %290, %289 : vector<8x128xf32>
    %292 = vector.extract_strided_slice %90 {offsets = [0, 1], sizes = [8, 1], strides = [1, 1]} : vector<8x3xf32> to vector<8x1xf32>
    %293 = vector.extract_strided_slice %9 {offsets = [1, 0], sizes = [1, 128], strides = [1, 1]} : vector<3x128xf32> to vector<1x128xf32>
    %294 = vector.broadcast %292 : vector<8x1xf32> to vector<8x128xf32>
    %295 = vector.broadcast %293 : vector<1x128xf32> to vector<8x128xf32>
    %296 = arith.mulf %294, %295 : vector<8x128xf32>
    %297 = arith.addf %291, %296 : vector<8x128xf32>
    %298 = vector.extract_strided_slice %90 {offsets = [0, 2], sizes = [8, 1], strides = [1, 1]} : vector<8x3xf32> to vector<8x1xf32>
    %299 = vector.extract_strided_slice %9 {offsets = [2, 0], sizes = [1, 128], strides = [1, 1]} : vector<3x128xf32> to vector<1x128xf32>
    %300 = vector.broadcast %298 : vector<8x1xf32> to vector<8x128xf32>
    %301 = vector.broadcast %299 : vector<1x128xf32> to vector<8x128xf32>
    %302 = arith.mulf %300, %301 : vector<8x128xf32>
    %303 = arith.addf %297, %302 : vector<8x128xf32>
    %304 = vector.extract_strided_slice %55 {offsets = [8, 0], sizes = [8, 128], strides = [1, 1]} : vector<16x128xf32> to vector<8x128xf32>
    %305 = arith.negf %303 : vector<8x128xf32>
    %306 = math.exp %305 : vector<8x128xf32>
    %cst_91 = arith.constant 1.000000e+00 : f32
    %307 = vector.broadcast %cst_91 : f32 to vector<8x128xf32>
    %308 = arith.addf %307, %306 : vector<8x128xf32>
    %309 = arith.divf %307, %308 : vector<8x128xf32>
    %310 = arith.mulf %284, %309 : vector<8x128xf32>
    %311 = arith.addf %304, %310 : vector<8x128xf32>
    %312 = tpu.concatenate %257, %311 in 0 : vector<8x128xf32>, vector<8x128xf32> -> vector<16x128xf32>
    %c1_92 = arith.constant 1 : index
    %c0_93 = arith.constant 0 : index
    %c0_94 = arith.constant 0 : index
    %c0_95 = arith.constant 0 : index
    %313 = vector.load %arg5[%c1_92, %c0_93, %c0_94, %c0_95] : memref<2x6x128x128xbf16, #tpu.memory_space<vmem>>, vector<1x1x128x128xbf16>
    %314 = vector.shape_cast %313 : vector<1x1x128x128xbf16> to vector<128x128xbf16>
    %315 = arith.extf %314 : vector<128x128xbf16> to vector<128x128xf32>
    %c1_96 = arith.constant 1 : index
    %c1_97 = arith.constant 1 : index
    %c0_98 = arith.constant 0 : index
    %c0_99 = arith.constant 0 : index
    %316 = vector.load %arg5[%c1_96, %c1_97, %c0_98, %c0_99] : memref<2x6x128x128xbf16, #tpu.memory_space<vmem>>, vector<1x1x128x128xbf16>
    %317 = vector.shape_cast %316 : vector<1x1x128x128xbf16> to vector<128x128xbf16>
    %318 = arith.extf %317 : vector<128x128xbf16> to vector<128x128xf32>
    %c1_100 = arith.constant 1 : index
    %c2_101 = arith.constant 2 : index
    %c0_102 = arith.constant 0 : index
    %c0_103 = arith.constant 0 : index
    %319 = vector.load %arg5[%c1_100, %c2_101, %c0_102, %c0_103] : memref<2x6x128x128xbf16, #tpu.memory_space<vmem>>, vector<1x1x128x128xbf16>
    %320 = vector.shape_cast %319 : vector<1x1x128x128xbf16> to vector<128x128xbf16>
    %321 = arith.extf %320 : vector<128x128xbf16> to vector<128x128xf32>
    %c1_104 = arith.constant 1 : index
    %c3_105 = arith.constant 3 : index
    %c0_106 = arith.constant 0 : index
    %c0_107 = arith.constant 0 : index
    %322 = vector.load %arg5[%c1_104, %c3_105, %c0_106, %c0_107] : memref<2x6x128x128xbf16, #tpu.memory_space<vmem>>, vector<1x1x128x128xbf16>
    %323 = vector.shape_cast %322 : vector<1x1x128x128xbf16> to vector<128x128xbf16>
    %324 = arith.extf %323 : vector<128x128xbf16> to vector<128x128xf32>
    %c1_108 = arith.constant 1 : index
    %c4_109 = arith.constant 4 : index
    %c0_110 = arith.constant 0 : index
    %c0_111 = arith.constant 0 : index
    %325 = vector.load %arg5[%c1_108, %c4_109, %c0_110, %c0_111] : memref<2x6x128x128xbf16, #tpu.memory_space<vmem>>, vector<1x1x128x128xbf16>
    %326 = vector.shape_cast %325 : vector<1x1x128x128xbf16> to vector<128x128xbf16>
    %327 = arith.extf %326 : vector<128x128xbf16> to vector<128x128xf32>
    %c1_112 = arith.constant 1 : index
    %c5_113 = arith.constant 5 : index
    %c0_114 = arith.constant 0 : index
    %c0_115 = arith.constant 0 : index
    %328 = vector.load %arg5[%c1_112, %c5_113, %c0_114, %c0_115] : memref<2x6x128x128xbf16, #tpu.memory_space<vmem>>, vector<1x1x128x128xbf16>
    %329 = vector.shape_cast %328 : vector<1x1x128x128xbf16> to vector<128x128xbf16>
    %330 = arith.extf %329 : vector<128x128xbf16> to vector<128x128xf32>
    %c1_116 = arith.constant 1 : index
    %c0_117 = arith.constant 0 : index
    %c0_118 = arith.constant 0 : index
    %331 = vector.load %arg4[%c1_116, %c0_117, %c0_118] : memref<2x32x128xf32, #tpu.memory_space<vmem>>, vector<1x8x128xf32>
    %332 = vector.shape_cast %331 : vector<1x8x128xf32> to vector<8x128xf32>
    %c1_119 = arith.constant 1 : index
    %c8_120 = arith.constant 8 : index
    %c0_121 = arith.constant 0 : index
    %333 = vector.load %arg4[%c1_119, %c8_120, %c0_121] : memref<2x32x128xf32, #tpu.memory_space<vmem>>, vector<1x8x128xf32>
    %334 = vector.shape_cast %333 : vector<1x8x128xf32> to vector<8x128xf32>
    %c1_122 = arith.constant 1 : index
    %c16_123 = arith.constant 16 : index
    %c0_124 = arith.constant 0 : index
    %335 = vector.load %arg4[%c1_122, %c16_123, %c0_124] : memref<2x32x128xf32, #tpu.memory_space<vmem>>, vector<1x8x128xf32>
    %336 = vector.shape_cast %335 : vector<1x8x128xf32> to vector<8x128xf32>
    %c1_125 = arith.constant 1 : index
    %c24_126 = arith.constant 24 : index
    %c0_127 = arith.constant 0 : index
    %337 = vector.load %arg4[%c1_125, %c24_126, %c0_127] : memref<2x32x128xf32, #tpu.memory_space<vmem>>, vector<1x8x128xf32>
    %338 = vector.shape_cast %337 : vector<1x8x128xf32> to vector<8x128xf32>
    %c9 = arith.constant 9 : index
    %c0_128 = arith.constant 0 : index
    %339 = vector.load %arg3[%c9, %c0_128] : memref<13x128xf32, #tpu.memory_space<vmem>>, vector<1x128xf32>
    %c11_129 = arith.constant 11 : index
    %c0_130 = arith.constant 0 : index
    %340 = vector.load %arg3[%c11_129, %c0_130] : memref<13x128xf32, #tpu.memory_space<vmem>>, vector<1x128xf32>
    %c0_131 = arith.constant 0 : index
    %c12_132 = arith.constant 12 : index
    %341 = vector.load %arg2[%c0_131, %c12_132] : memref<8x16xf32, #tpu.memory_space<vmem>>, vector<8x3xf32>
    %c0_133 = arith.constant 0 : index
    %c15 = arith.constant 15 : index
    %342 = vector.load %arg2[%c0_133, %c15] : memref<8x16xf32, #tpu.memory_space<vmem>>, vector<8x1xf32>
    %cst_134 = arith.constant 11.3137083 : f32
    %343 = vector.broadcast %cst_134 : f32 to vector<16x128xf32>
    %344 = arith.mulf %312, %343 : vector<16x128xf32>
    %345 = arith.addf %344, %56 : vector<16x128xf32>
    %cst_135 = arith.constant dense<0.000000e+00> : vector<16x128xf32>
    %346 = tpu.matmul %345, %315, %cst_135 {dimension_numbers = #tpu.dot_dimension_numbers<[1], [0], [0], [1], [0, 0, 1, 1], [], []>} : vector<16x128xf32>, vector<128x128xf32>, vector<16x128xf32> -> vector<16x128xf32>
    %cst_136 = arith.constant dense<0.000000e+00> : vector<16x128xf32>
    %347 = tpu.matmul %345, %318, %cst_136 {dimension_numbers = #tpu.dot_dimension_numbers<[1], [0], [0], [1], [0, 0, 1, 1], [], []>} : vector<16x128xf32>, vector<128x128xf32>, vector<16x128xf32> -> vector<16x128xf32>
    %cst_137 = arith.constant dense<0.000000e+00> : vector<16x128xf32>
    %348 = tpu.matmul %345, %321, %cst_137 {dimension_numbers = #tpu.dot_dimension_numbers<[1], [0], [0], [1], [0, 0, 1, 1], [], []>} : vector<16x128xf32>, vector<128x128xf32>, vector<16x128xf32> -> vector<16x128xf32>
    %349 = vector.extract_strided_slice %346 {offsets = [0, 0], sizes = [16, 64], strides = [1, 1]} : vector<16x128xf32> to vector<16x64xf32>
    %350 = vector.extract_strided_slice %347 {offsets = [0, 0], sizes = [16, 64], strides = [1, 1]} : vector<16x128xf32> to vector<16x64xf32>
    %351 = vector.extract_strided_slice %348 {offsets = [0, 0], sizes = [16, 64], strides = [1, 1]} : vector<16x128xf32> to vector<16x64xf32>
    %cst_138 = arith.constant dense<0.000000e+00> : vector<16x16xf32>
    %352 = tpu.matmul %349, %350, %cst_138 {dimension_numbers = #tpu.dot_dimension_numbers<[1], [1], [0], [0], [0, 0, 1, 0], [], []>} : vector<16x64xf32>, vector<16x64xf32>, vector<16x16xf32> -> vector<16x16xf32>
    %cst_139 = arith.constant 1.250000e-01 : f32
    %353 = vector.broadcast %cst_139 : f32 to vector<16x16xf32>
    %354 = arith.mulf %352, %353 : vector<16x16xf32>
    %355 = arith.addf %354, %61 : vector<16x16xf32>
    %cst_140 = arith.constant dense<0xFF800000> : vector<16xf32>
    %356 = vector.multi_reduction <maximumf>, %355, %cst_140 [1] : vector<16x16xf32> to vector<16xf32>
    %357 = vector.shape_cast %356 : vector<16xf32> to vector<16x1xf32>
    %358 = vector.broadcast %357 : vector<16x1xf32> to vector<16x16xf32>
    %359 = arith.subf %355, %358 : vector<16x16xf32>
    %360 = math.exp %359 : vector<16x16xf32>
    %cst_141 = arith.constant dense<0.000000e+00> : vector<16xf32>
    %361 = vector.multi_reduction <add>, %360, %cst_141 [1] : vector<16x16xf32> to vector<16xf32>
    %362 = vector.shape_cast %361 : vector<16xf32> to vector<16x1xf32>
    %363 = tpu.reciprocal %362 {approx = true} : vector<16x1xf32> -> vector<16x1xf32>
    %364 = vector.broadcast %363 : vector<16x1xf32> to vector<16x16xf32>
    %365 = arith.mulf %360, %364 : vector<16x16xf32>
    %cst_142 = arith.constant dense<0.000000e+00> : vector<16x64xf32>
    %366 = tpu.matmul %365, %351, %cst_142 {dimension_numbers = #tpu.dot_dimension_numbers<[1], [0], [0], [1], [0, 0, 1, 1], [], []>} : vector<16x16xf32>, vector<16x64xf32>, vector<16x64xf32> -> vector<16x64xf32>
    %367 = vector.extract_strided_slice %324 {offsets = [0, 0], sizes = [64, 128], strides = [1, 1]} : vector<128x128xf32> to vector<64x128xf32>
    %cst_143 = arith.constant dense<0.000000e+00> : vector<16x128xf32>
    %368 = tpu.matmul %366, %367, %cst_143 {dimension_numbers = #tpu.dot_dimension_numbers<[1], [0], [0], [1], [0, 0, 1, 1], [], []>} : vector<16x64xf32>, vector<64x128xf32>, vector<16x128xf32> -> vector<16x128xf32>
    %369 = vector.extract_strided_slice %346 {offsets = [0, 64], sizes = [16, 64], strides = [1, 1]} : vector<16x128xf32> to vector<16x64xf32>
    %370 = vector.extract_strided_slice %347 {offsets = [0, 64], sizes = [16, 64], strides = [1, 1]} : vector<16x128xf32> to vector<16x64xf32>
    %371 = vector.extract_strided_slice %348 {offsets = [0, 64], sizes = [16, 64], strides = [1, 1]} : vector<16x128xf32> to vector<16x64xf32>
    %cst_144 = arith.constant dense<0.000000e+00> : vector<16x16xf32>
    %372 = tpu.matmul %369, %370, %cst_144 {dimension_numbers = #tpu.dot_dimension_numbers<[1], [1], [0], [0], [0, 0, 1, 0], [], []>} : vector<16x64xf32>, vector<16x64xf32>, vector<16x16xf32> -> vector<16x16xf32>
    %cst_145 = arith.constant 1.250000e-01 : f32
    %373 = vector.broadcast %cst_145 : f32 to vector<16x16xf32>
    %374 = arith.mulf %372, %373 : vector<16x16xf32>
    %375 = arith.addf %374, %61 : vector<16x16xf32>
    %cst_146 = arith.constant dense<0xFF800000> : vector<16xf32>
    %376 = vector.multi_reduction <maximumf>, %375, %cst_146 [1] : vector<16x16xf32> to vector<16xf32>
    %377 = vector.shape_cast %376 : vector<16xf32> to vector<16x1xf32>
    %378 = vector.broadcast %377 : vector<16x1xf32> to vector<16x16xf32>
    %379 = arith.subf %375, %378 : vector<16x16xf32>
    %380 = math.exp %379 : vector<16x16xf32>
    %cst_147 = arith.constant dense<0.000000e+00> : vector<16xf32>
    %381 = vector.multi_reduction <add>, %380, %cst_147 [1] : vector<16x16xf32> to vector<16xf32>
    %382 = vector.shape_cast %381 : vector<16xf32> to vector<16x1xf32>
    %383 = tpu.reciprocal %382 {approx = true} : vector<16x1xf32> -> vector<16x1xf32>
    %384 = vector.broadcast %383 : vector<16x1xf32> to vector<16x16xf32>
    %385 = arith.mulf %380, %384 : vector<16x16xf32>
    %cst_148 = arith.constant dense<0.000000e+00> : vector<16x64xf32>
    %386 = tpu.matmul %385, %371, %cst_148 {dimension_numbers = #tpu.dot_dimension_numbers<[1], [0], [0], [1], [0, 0, 1, 1], [], []>} : vector<16x16xf32>, vector<16x64xf32>, vector<16x64xf32> -> vector<16x64xf32>
    %387 = vector.extract_strided_slice %324 {offsets = [64, 0], sizes = [64, 128], strides = [1, 1]} : vector<128x128xf32> to vector<64x128xf32>
    %cst_149 = arith.constant dense<0.000000e+00> : vector<16x128xf32>
    %388 = tpu.matmul %386, %387, %cst_149 {dimension_numbers = #tpu.dot_dimension_numbers<[1], [0], [0], [1], [0, 0, 1, 1], [], []>} : vector<16x64xf32>, vector<64x128xf32>, vector<16x128xf32> -> vector<16x128xf32>
    %389 = arith.addf %368, %388 : vector<16x128xf32>
    %390 = arith.addf %389, %345 : vector<16x128xf32>
    %391 = vector.extract_strided_slice %390 {offsets = [0, 0], sizes = [8, 128], strides = [1, 1]} : vector<16x128xf32> to vector<8x128xf32>
    %392 = vector.shape_cast %391 : vector<8x128xf32> to vector<1x8x128xf32>
    %cst_150 = arith.constant dense<0.000000e+00> : vector<1xf32>
    %393 = vector.multi_reduction <add>, %392, %cst_150 [1, 2] : vector<1x8x128xf32> to vector<1xf32>
    %394 = vector.shape_cast %393 : vector<1xf32> to vector<1x1x1xf32>
    %395 = vector.extract %394[0, 0, 0] : f32 from vector<1x1x1xf32>
    %396 = vector.broadcast %395 : f32 to vector<1x1xf32>
    %397 = arith.mulf %391, %391 : vector<8x128xf32>
    %398 = vector.shape_cast %397 : vector<8x128xf32> to vector<1x8x128xf32>
    %cst_151 = arith.constant dense<0.000000e+00> : vector<1xf32>
    %399 = vector.multi_reduction <add>, %398, %cst_151 [1, 2] : vector<1x8x128xf32> to vector<1xf32>
    %400 = vector.shape_cast %399 : vector<1xf32> to vector<1x1x1xf32>
    %401 = vector.extract %400[0, 0, 0] : f32 from vector<1x1x1xf32>
    %402 = vector.broadcast %401 : f32 to vector<1x1xf32>
    %cst_152 = arith.constant 9.765625E-4 : f32
    %403 = vector.broadcast %cst_152 : f32 to vector<1x1xf32>
    %404 = arith.mulf %396, %403 : vector<1x1xf32>
    %cst_153 = arith.constant 9.765625E-4 : f32
    %405 = vector.broadcast %cst_153 : f32 to vector<1x1xf32>
    %406 = arith.mulf %402, %405 : vector<1x1xf32>
    %407 = arith.mulf %404, %404 : vector<1x1xf32>
    %408 = arith.subf %406, %407 : vector<1x1xf32>
    %409 = vector.broadcast %404 : vector<1x1xf32> to vector<8x128xf32>
    %410 = arith.subf %391, %409 : vector<8x128xf32>
    %cst_154 = arith.constant 9.99999974E-6 : f32
    %411 = vector.broadcast %cst_154 : f32 to vector<1x1xf32>
    %412 = arith.addf %408, %411 : vector<1x1xf32>
    %413 = math.rsqrt %412 : vector<1x1xf32>
    %414 = vector.broadcast %413 : vector<1x1xf32> to vector<8x128xf32>
    %415 = arith.mulf %410, %414 : vector<8x128xf32>
    %416 = arith.mulf %415, %332 : vector<8x128xf32>
    %417 = arith.addf %416, %334 : vector<8x128xf32>
    %418 = vector.extract_strided_slice %390 {offsets = [8, 0], sizes = [8, 128], strides = [1, 1]} : vector<16x128xf32> to vector<8x128xf32>
    %419 = vector.shape_cast %418 : vector<8x128xf32> to vector<1x8x128xf32>
    %cst_155 = arith.constant dense<0.000000e+00> : vector<1xf32>
    %420 = vector.multi_reduction <add>, %419, %cst_155 [1, 2] : vector<1x8x128xf32> to vector<1xf32>
    %421 = vector.shape_cast %420 : vector<1xf32> to vector<1x1x1xf32>
    %422 = vector.extract %421[0, 0, 0] : f32 from vector<1x1x1xf32>
    %423 = vector.broadcast %422 : f32 to vector<1x1xf32>
    %424 = arith.mulf %418, %418 : vector<8x128xf32>
    %425 = vector.shape_cast %424 : vector<8x128xf32> to vector<1x8x128xf32>
    %cst_156 = arith.constant dense<0.000000e+00> : vector<1xf32>
    %426 = vector.multi_reduction <add>, %425, %cst_156 [1, 2] : vector<1x8x128xf32> to vector<1xf32>
    %427 = vector.shape_cast %426 : vector<1xf32> to vector<1x1x1xf32>
    %428 = vector.extract %427[0, 0, 0] : f32 from vector<1x1x1xf32>
    %429 = vector.broadcast %428 : f32 to vector<1x1xf32>
    %cst_157 = arith.constant 9.765625E-4 : f32
    %430 = vector.broadcast %cst_157 : f32 to vector<1x1xf32>
    %431 = arith.mulf %423, %430 : vector<1x1xf32>
    %cst_158 = arith.constant 9.765625E-4 : f32
    %432 = vector.broadcast %cst_158 : f32 to vector<1x1xf32>
    %433 = arith.mulf %429, %432 : vector<1x1xf32>
    %434 = arith.mulf %431, %431 : vector<1x1xf32>
    %435 = arith.subf %433, %434 : vector<1x1xf32>
    %436 = vector.broadcast %431 : vector<1x1xf32> to vector<8x128xf32>
    %437 = arith.subf %418, %436 : vector<8x128xf32>
    %cst_159 = arith.constant 9.99999974E-6 : f32
    %438 = vector.broadcast %cst_159 : f32 to vector<1x1xf32>
    %439 = arith.addf %435, %438 : vector<1x1xf32>
    %440 = math.rsqrt %439 : vector<1x1xf32>
    %441 = vector.broadcast %440 : vector<1x1xf32> to vector<8x128xf32>
    %442 = arith.mulf %437, %441 : vector<8x128xf32>
    %443 = arith.mulf %442, %332 : vector<8x128xf32>
    %444 = arith.addf %443, %334 : vector<8x128xf32>
    %445 = tpu.concatenate %417, %444 in 0 : vector<8x128xf32>, vector<8x128xf32> -> vector<16x128xf32>
    %cst_160 = arith.constant dense<0.000000e+00> : vector<16x128xf32>
    %446 = tpu.matmul %445, %327, %cst_160 {dimension_numbers = #tpu.dot_dimension_numbers<[1], [0], [0], [1], [0, 0, 1, 1], [], []>} : vector<16x128xf32>, vector<128x128xf32>, vector<16x128xf32> -> vector<16x128xf32>
    %447 = vector.broadcast %339 : vector<1x128xf32> to vector<16x128xf32>
    %448 = arith.addf %446, %447 : vector<16x128xf32>
    %cst_161 = arith.constant 0.000000e+00 : f32
    %449 = vector.broadcast %cst_161 : f32 to vector<16x128xf32>
    %450 = arith.maximumf %448, %449 : vector<16x128xf32>
    %cst_162 = arith.constant dense<0.000000e+00> : vector<16x128xf32>
    %451 = tpu.matmul %450, %330, %cst_162 {dimension_numbers = #tpu.dot_dimension_numbers<[1], [0], [0], [1], [0, 0, 1, 1], [], []>} : vector<16x128xf32>, vector<128x128xf32>, vector<16x128xf32> -> vector<16x128xf32>
    %452 = vector.broadcast %340 : vector<1x128xf32> to vector<16x128xf32>
    %453 = arith.addf %451, %452 : vector<16x128xf32>
    %454 = arith.addf %453, %445 : vector<16x128xf32>
    %455 = vector.extract_strided_slice %454 {offsets = [0, 0], sizes = [8, 128], strides = [1, 1]} : vector<16x128xf32> to vector<8x128xf32>
    %456 = vector.shape_cast %455 : vector<8x128xf32> to vector<1x8x128xf32>
    %cst_163 = arith.constant dense<0.000000e+00> : vector<1xf32>
    %457 = vector.multi_reduction <add>, %456, %cst_163 [1, 2] : vector<1x8x128xf32> to vector<1xf32>
    %458 = vector.shape_cast %457 : vector<1xf32> to vector<1x1x1xf32>
    %459 = vector.extract %458[0, 0, 0] : f32 from vector<1x1x1xf32>
    %460 = vector.broadcast %459 : f32 to vector<1x1xf32>
    %461 = arith.mulf %455, %455 : vector<8x128xf32>
    %462 = vector.shape_cast %461 : vector<8x128xf32> to vector<1x8x128xf32>
    %cst_164 = arith.constant dense<0.000000e+00> : vector<1xf32>
    %463 = vector.multi_reduction <add>, %462, %cst_164 [1, 2] : vector<1x8x128xf32> to vector<1xf32>
    %464 = vector.shape_cast %463 : vector<1xf32> to vector<1x1x1xf32>
    %465 = vector.extract %464[0, 0, 0] : f32 from vector<1x1x1xf32>
    %466 = vector.broadcast %465 : f32 to vector<1x1xf32>
    %cst_165 = arith.constant 9.765625E-4 : f32
    %467 = vector.broadcast %cst_165 : f32 to vector<1x1xf32>
    %468 = arith.mulf %460, %467 : vector<1x1xf32>
    %cst_166 = arith.constant 9.765625E-4 : f32
    %469 = vector.broadcast %cst_166 : f32 to vector<1x1xf32>
    %470 = arith.mulf %466, %469 : vector<1x1xf32>
    %471 = arith.mulf %468, %468 : vector<1x1xf32>
    %472 = arith.subf %470, %471 : vector<1x1xf32>
    %473 = vector.broadcast %468 : vector<1x1xf32> to vector<8x128xf32>
    %474 = arith.subf %455, %473 : vector<8x128xf32>
    %cst_167 = arith.constant 9.99999974E-6 : f32
    %475 = vector.broadcast %cst_167 : f32 to vector<1x1xf32>
    %476 = arith.addf %472, %475 : vector<1x1xf32>
    %477 = math.rsqrt %476 : vector<1x1xf32>
    %478 = vector.broadcast %477 : vector<1x1xf32> to vector<8x128xf32>
    %479 = arith.mulf %474, %478 : vector<8x128xf32>
    %480 = arith.mulf %479, %336 : vector<8x128xf32>
    %481 = arith.addf %480, %338 : vector<8x128xf32>
    %482 = vector.extract_strided_slice %341 {offsets = [0, 0], sizes = [8, 1], strides = [1, 1]} : vector<8x3xf32> to vector<8x1xf32>
    %483 = vector.extract_strided_slice %7 {offsets = [0, 0], sizes = [1, 128], strides = [1, 1]} : vector<3x128xf32> to vector<1x128xf32>
    %484 = vector.broadcast %482 : vector<8x1xf32> to vector<8x128xf32>
    %485 = vector.broadcast %483 : vector<1x128xf32> to vector<8x128xf32>
    %486 = arith.mulf %484, %485 : vector<8x128xf32>
    %487 = vector.broadcast %342 : vector<8x1xf32> to vector<8x128xf32>
    %488 = arith.addf %487, %486 : vector<8x128xf32>
    %489 = vector.extract_strided_slice %341 {offsets = [0, 1], sizes = [8, 1], strides = [1, 1]} : vector<8x3xf32> to vector<8x1xf32>
    %490 = vector.extract_strided_slice %7 {offsets = [1, 0], sizes = [1, 128], strides = [1, 1]} : vector<3x128xf32> to vector<1x128xf32>
    %491 = vector.broadcast %489 : vector<8x1xf32> to vector<8x128xf32>
    %492 = vector.broadcast %490 : vector<1x128xf32> to vector<8x128xf32>
    %493 = arith.mulf %491, %492 : vector<8x128xf32>
    %494 = arith.addf %488, %493 : vector<8x128xf32>
    %495 = vector.extract_strided_slice %341 {offsets = [0, 2], sizes = [8, 1], strides = [1, 1]} : vector<8x3xf32> to vector<8x1xf32>
    %496 = vector.extract_strided_slice %7 {offsets = [2, 0], sizes = [1, 128], strides = [1, 1]} : vector<3x128xf32> to vector<1x128xf32>
    %497 = vector.broadcast %495 : vector<8x1xf32> to vector<8x128xf32>
    %498 = vector.broadcast %496 : vector<1x128xf32> to vector<8x128xf32>
    %499 = arith.mulf %497, %498 : vector<8x128xf32>
    %500 = arith.addf %494, %499 : vector<8x128xf32>
    %501 = vector.extract_strided_slice %312 {offsets = [0, 0], sizes = [8, 128], strides = [1, 1]} : vector<16x128xf32> to vector<8x128xf32>
    %502 = arith.negf %500 : vector<8x128xf32>
    %503 = math.exp %502 : vector<8x128xf32>
    %cst_168 = arith.constant 1.000000e+00 : f32
    %504 = vector.broadcast %cst_168 : f32 to vector<8x128xf32>
    %505 = arith.addf %504, %503 : vector<8x128xf32>
    %506 = arith.divf %504, %505 : vector<8x128xf32>
    %507 = arith.mulf %481, %506 : vector<8x128xf32>
    %508 = arith.addf %501, %507 : vector<8x128xf32>
    %509 = vector.extract_strided_slice %454 {offsets = [8, 0], sizes = [8, 128], strides = [1, 1]} : vector<16x128xf32> to vector<8x128xf32>
    %510 = vector.shape_cast %509 : vector<8x128xf32> to vector<1x8x128xf32>
    %cst_169 = arith.constant dense<0.000000e+00> : vector<1xf32>
    %511 = vector.multi_reduction <add>, %510, %cst_169 [1, 2] : vector<1x8x128xf32> to vector<1xf32>
    %512 = vector.shape_cast %511 : vector<1xf32> to vector<1x1x1xf32>
    %513 = vector.extract %512[0, 0, 0] : f32 from vector<1x1x1xf32>
    %514 = vector.broadcast %513 : f32 to vector<1x1xf32>
    %515 = arith.mulf %509, %509 : vector<8x128xf32>
    %516 = vector.shape_cast %515 : vector<8x128xf32> to vector<1x8x128xf32>
    %cst_170 = arith.constant dense<0.000000e+00> : vector<1xf32>
    %517 = vector.multi_reduction <add>, %516, %cst_170 [1, 2] : vector<1x8x128xf32> to vector<1xf32>
    %518 = vector.shape_cast %517 : vector<1xf32> to vector<1x1x1xf32>
    %519 = vector.extract %518[0, 0, 0] : f32 from vector<1x1x1xf32>
    %520 = vector.broadcast %519 : f32 to vector<1x1xf32>
    %cst_171 = arith.constant 9.765625E-4 : f32
    %521 = vector.broadcast %cst_171 : f32 to vector<1x1xf32>
    %522 = arith.mulf %514, %521 : vector<1x1xf32>
    %cst_172 = arith.constant 9.765625E-4 : f32
    %523 = vector.broadcast %cst_172 : f32 to vector<1x1xf32>
    %524 = arith.mulf %520, %523 : vector<1x1xf32>
    %525 = arith.mulf %522, %522 : vector<1x1xf32>
    %526 = arith.subf %524, %525 : vector<1x1xf32>
    %527 = vector.broadcast %522 : vector<1x1xf32> to vector<8x128xf32>
    %528 = arith.subf %509, %527 : vector<8x128xf32>
    %cst_173 = arith.constant 9.99999974E-6 : f32
    %529 = vector.broadcast %cst_173 : f32 to vector<1x1xf32>
    %530 = arith.addf %526, %529 : vector<1x1xf32>
    %531 = math.rsqrt %530 : vector<1x1xf32>
    %532 = vector.broadcast %531 : vector<1x1xf32> to vector<8x128xf32>
    %533 = arith.mulf %528, %532 : vector<8x128xf32>
    %534 = arith.mulf %533, %336 : vector<8x128xf32>
    %535 = arith.addf %534, %338 : vector<8x128xf32>
    %536 = vector.extract_strided_slice %341 {offsets = [0, 0], sizes = [8, 1], strides = [1, 1]} : vector<8x3xf32> to vector<8x1xf32>
    %537 = vector.extract_strided_slice %9 {offsets = [0, 0], sizes = [1, 128], strides = [1, 1]} : vector<3x128xf32> to vector<1x128xf32>
    %538 = vector.broadcast %536 : vector<8x1xf32> to vector<8x128xf32>
    %539 = vector.broadcast %537 : vector<1x128xf32> to vector<8x128xf32>
    %540 = arith.mulf %538, %539 : vector<8x128xf32>
    %541 = vector.broadcast %342 : vector<8x1xf32> to vector<8x128xf32>
    %542 = arith.addf %541, %540 : vector<8x128xf32>
    %543 = vector.extract_strided_slice %341 {offsets = [0, 1], sizes = [8, 1], strides = [1, 1]} : vector<8x3xf32> to vector<8x1xf32>
    %544 = vector.extract_strided_slice %9 {offsets = [1, 0], sizes = [1, 128], strides = [1, 1]} : vector<3x128xf32> to vector<1x128xf32>
    %545 = vector.broadcast %543 : vector<8x1xf32> to vector<8x128xf32>
    %546 = vector.broadcast %544 : vector<1x128xf32> to vector<8x128xf32>
    %547 = arith.mulf %545, %546 : vector<8x128xf32>
    %548 = arith.addf %542, %547 : vector<8x128xf32>
    %549 = vector.extract_strided_slice %341 {offsets = [0, 2], sizes = [8, 1], strides = [1, 1]} : vector<8x3xf32> to vector<8x1xf32>
    %550 = vector.extract_strided_slice %9 {offsets = [2, 0], sizes = [1, 128], strides = [1, 1]} : vector<3x128xf32> to vector<1x128xf32>
    %551 = vector.broadcast %549 : vector<8x1xf32> to vector<8x128xf32>
    %552 = vector.broadcast %550 : vector<1x128xf32> to vector<8x128xf32>
    %553 = arith.mulf %551, %552 : vector<8x128xf32>
    %554 = arith.addf %548, %553 : vector<8x128xf32>
    %555 = vector.extract_strided_slice %312 {offsets = [8, 0], sizes = [8, 128], strides = [1, 1]} : vector<16x128xf32> to vector<8x128xf32>
    %556 = arith.negf %554 : vector<8x128xf32>
    %557 = math.exp %556 : vector<8x128xf32>
    %cst_174 = arith.constant 1.000000e+00 : f32
    %558 = vector.broadcast %cst_174 : f32 to vector<8x128xf32>
    %559 = arith.addf %558, %557 : vector<8x128xf32>
    %560 = arith.divf %558, %559 : vector<8x128xf32>
    %561 = arith.mulf %535, %560 : vector<8x128xf32>
    %562 = arith.addf %555, %561 : vector<8x128xf32>
    %563 = tpu.concatenate %508, %562 in 0 : vector<8x128xf32>, vector<8x128xf32> -> vector<16x128xf32>
    %564 = tpu.concatenate %4, %4 in 0 : vector<1x128xf32>, vector<1x128xf32> -> vector<2x128xf32>
    %565 = vector.extract_strided_slice %563 {offsets = [0, 0], sizes = [1, 128], strides = [1, 1]} : vector<16x128xf32> to vector<1x128xf32>
    %566 = vector.extract_strided_slice %563 {offsets = [8, 0], sizes = [1, 128], strides = [1, 1]} : vector<16x128xf32> to vector<1x128xf32>
    %567 = tpu.concatenate %565, %566 in 0 : vector<1x128xf32>, vector<1x128xf32> -> vector<2x128xf32>
    %c0_175 = arith.constant 0 : index
    %c0_176 = arith.constant 0 : index
    %c0_177 = arith.constant 0 : index
    %568 = vector.load %arg6[%c0_175, %c0_176, %c0_177] : memref<8x128x128xbf16, #tpu.memory_space<vmem>>, vector<1x128x128xbf16>
    %569 = vector.shape_cast %568 : vector<1x128x128xbf16> to vector<128x128xbf16>
    %570 = arith.extf %569 : vector<128x128xbf16> to vector<128x128xf32>
    %cst_178 = arith.constant dense<0.000000e+00> : vector<2x128xf32>
    %571 = tpu.matmul %567, %570, %cst_178 {dimension_numbers = #tpu.dot_dimension_numbers<[1], [0], [0], [1], [0, 0, 1, 1], [], []>} : vector<2x128xf32>, vector<128x128xf32>, vector<2x128xf32> -> vector<2x128xf32>
    %572 = arith.addf %564, %571 : vector<2x128xf32>
    %573 = vector.extract_strided_slice %563 {offsets = [1, 0], sizes = [1, 128], strides = [1, 1]} : vector<16x128xf32> to vector<1x128xf32>
    %574 = vector.extract_strided_slice %563 {offsets = [9, 0], sizes = [1, 128], strides = [1, 1]} : vector<16x128xf32> to vector<1x128xf32>
    %575 = tpu.concatenate %573, %574 in 0 : vector<1x128xf32>, vector<1x128xf32> -> vector<2x128xf32>
    %c1_179 = arith.constant 1 : index
    %c0_180 = arith.constant 0 : index
    %c0_181 = arith.constant 0 : index
    %576 = vector.load %arg6[%c1_179, %c0_180, %c0_181] : memref<8x128x128xbf16, #tpu.memory_space<vmem>>, vector<1x128x128xbf16>
    %577 = vector.shape_cast %576 : vector<1x128x128xbf16> to vector<128x128xbf16>
    %578 = arith.extf %577 : vector<128x128xbf16> to vector<128x128xf32>
    %cst_182 = arith.constant dense<0.000000e+00> : vector<2x128xf32>
    %579 = tpu.matmul %575, %578, %cst_182 {dimension_numbers = #tpu.dot_dimension_numbers<[1], [0], [0], [1], [0, 0, 1, 1], [], []>} : vector<2x128xf32>, vector<128x128xf32>, vector<2x128xf32> -> vector<2x128xf32>
    %580 = arith.addf %572, %579 : vector<2x128xf32>
    %581 = vector.extract_strided_slice %563 {offsets = [2, 0], sizes = [1, 128], strides = [1, 1]} : vector<16x128xf32> to vector<1x128xf32>
    %582 = vector.extract_strided_slice %563 {offsets = [10, 0], sizes = [1, 128], strides = [1, 1]} : vector<16x128xf32> to vector<1x128xf32>
    %583 = tpu.concatenate %581, %582 in 0 : vector<1x128xf32>, vector<1x128xf32> -> vector<2x128xf32>
    %c2_183 = arith.constant 2 : index
    %c0_184 = arith.constant 0 : index
    %c0_185 = arith.constant 0 : index
    %584 = vector.load %arg6[%c2_183, %c0_184, %c0_185] : memref<8x128x128xbf16, #tpu.memory_space<vmem>>, vector<1x128x128xbf16>
    %585 = vector.shape_cast %584 : vector<1x128x128xbf16> to vector<128x128xbf16>
    %586 = arith.extf %585 : vector<128x128xbf16> to vector<128x128xf32>
    %cst_186 = arith.constant dense<0.000000e+00> : vector<2x128xf32>
    %587 = tpu.matmul %583, %586, %cst_186 {dimension_numbers = #tpu.dot_dimension_numbers<[1], [0], [0], [1], [0, 0, 1, 1], [], []>} : vector<2x128xf32>, vector<128x128xf32>, vector<2x128xf32> -> vector<2x128xf32>
    %588 = arith.addf %580, %587 : vector<2x128xf32>
    %589 = vector.extract_strided_slice %563 {offsets = [3, 0], sizes = [1, 128], strides = [1, 1]} : vector<16x128xf32> to vector<1x128xf32>
    %590 = vector.extract_strided_slice %563 {offsets = [11, 0], sizes = [1, 128], strides = [1, 1]} : vector<16x128xf32> to vector<1x128xf32>
    %591 = tpu.concatenate %589, %590 in 0 : vector<1x128xf32>, vector<1x128xf32> -> vector<2x128xf32>
    %c3_187 = arith.constant 3 : index
    %c0_188 = arith.constant 0 : index
    %c0_189 = arith.constant 0 : index
    %592 = vector.load %arg6[%c3_187, %c0_188, %c0_189] : memref<8x128x128xbf16, #tpu.memory_space<vmem>>, vector<1x128x128xbf16>
    %593 = vector.shape_cast %592 : vector<1x128x128xbf16> to vector<128x128xbf16>
    %594 = arith.extf %593 : vector<128x128xbf16> to vector<128x128xf32>
    %cst_190 = arith.constant dense<0.000000e+00> : vector<2x128xf32>
    %595 = tpu.matmul %591, %594, %cst_190 {dimension_numbers = #tpu.dot_dimension_numbers<[1], [0], [0], [1], [0, 0, 1, 1], [], []>} : vector<2x128xf32>, vector<128x128xf32>, vector<2x128xf32> -> vector<2x128xf32>
    %596 = arith.addf %588, %595 : vector<2x128xf32>
    %597 = vector.extract_strided_slice %563 {offsets = [4, 0], sizes = [1, 128], strides = [1, 1]} : vector<16x128xf32> to vector<1x128xf32>
    %598 = vector.extract_strided_slice %563 {offsets = [12, 0], sizes = [1, 128], strides = [1, 1]} : vector<16x128xf32> to vector<1x128xf32>
    %599 = tpu.concatenate %597, %598 in 0 : vector<1x128xf32>, vector<1x128xf32> -> vector<2x128xf32>
    %c4_191 = arith.constant 4 : index
    %c0_192 = arith.constant 0 : index
    %c0_193 = arith.constant 0 : index
    %600 = vector.load %arg6[%c4_191, %c0_192, %c0_193] : memref<8x128x128xbf16, #tpu.memory_space<vmem>>, vector<1x128x128xbf16>
    %601 = vector.shape_cast %600 : vector<1x128x128xbf16> to vector<128x128xbf16>
    %602 = arith.extf %601 : vector<128x128xbf16> to vector<128x128xf32>
    %cst_194 = arith.constant dense<0.000000e+00> : vector<2x128xf32>
    %603 = tpu.matmul %599, %602, %cst_194 {dimension_numbers = #tpu.dot_dimension_numbers<[1], [0], [0], [1], [0, 0, 1, 1], [], []>} : vector<2x128xf32>, vector<128x128xf32>, vector<2x128xf32> -> vector<2x128xf32>
    %604 = arith.addf %596, %603 : vector<2x128xf32>
    %605 = vector.extract_strided_slice %563 {offsets = [5, 0], sizes = [1, 128], strides = [1, 1]} : vector<16x128xf32> to vector<1x128xf32>
    %606 = vector.extract_strided_slice %563 {offsets = [13, 0], sizes = [1, 128], strides = [1, 1]} : vector<16x128xf32> to vector<1x128xf32>
    %607 = tpu.concatenate %605, %606 in 0 : vector<1x128xf32>, vector<1x128xf32> -> vector<2x128xf32>
    %c5_195 = arith.constant 5 : index
    %c0_196 = arith.constant 0 : index
    %c0_197 = arith.constant 0 : index
    %608 = vector.load %arg6[%c5_195, %c0_196, %c0_197] : memref<8x128x128xbf16, #tpu.memory_space<vmem>>, vector<1x128x128xbf16>
    %609 = vector.shape_cast %608 : vector<1x128x128xbf16> to vector<128x128xbf16>
    %610 = arith.extf %609 : vector<128x128xbf16> to vector<128x128xf32>
    %cst_198 = arith.constant dense<0.000000e+00> : vector<2x128xf32>
    %611 = tpu.matmul %607, %610, %cst_198 {dimension_numbers = #tpu.dot_dimension_numbers<[1], [0], [0], [1], [0, 0, 1, 1], [], []>} : vector<2x128xf32>, vector<128x128xf32>, vector<2x128xf32> -> vector<2x128xf32>
    %612 = arith.addf %604, %611 : vector<2x128xf32>
    %613 = vector.extract_strided_slice %563 {offsets = [6, 0], sizes = [1, 128], strides = [1, 1]} : vector<16x128xf32> to vector<1x128xf32>
    %614 = vector.extract_strided_slice %563 {offsets = [14, 0], sizes = [1, 128], strides = [1, 1]} : vector<16x128xf32> to vector<1x128xf32>
    %615 = tpu.concatenate %613, %614 in 0 : vector<1x128xf32>, vector<1x128xf32> -> vector<2x128xf32>
    %c6 = arith.constant 6 : index
    %c0_199 = arith.constant 0 : index
    %c0_200 = arith.constant 0 : index
    %616 = vector.load %arg6[%c6, %c0_199, %c0_200] : memref<8x128x128xbf16, #tpu.memory_space<vmem>>, vector<1x128x128xbf16>
    %617 = vector.shape_cast %616 : vector<1x128x128xbf16> to vector<128x128xbf16>
    %618 = arith.extf %617 : vector<128x128xbf16> to vector<128x128xf32>
    %cst_201 = arith.constant dense<0.000000e+00> : vector<2x128xf32>
    %619 = tpu.matmul %615, %618, %cst_201 {dimension_numbers = #tpu.dot_dimension_numbers<[1], [0], [0], [1], [0, 0, 1, 1], [], []>} : vector<2x128xf32>, vector<128x128xf32>, vector<2x128xf32> -> vector<2x128xf32>
    %620 = arith.addf %612, %619 : vector<2x128xf32>
    %621 = vector.extract_strided_slice %563 {offsets = [7, 0], sizes = [1, 128], strides = [1, 1]} : vector<16x128xf32> to vector<1x128xf32>
    %622 = vector.extract_strided_slice %563 {offsets = [15, 0], sizes = [1, 128], strides = [1, 1]} : vector<16x128xf32> to vector<1x128xf32>
    %623 = tpu.concatenate %621, %622 in 0 : vector<1x128xf32>, vector<1x128xf32> -> vector<2x128xf32>
    %c7_202 = arith.constant 7 : index
    %c0_203 = arith.constant 0 : index
    %c0_204 = arith.constant 0 : index
    %624 = vector.load %arg6[%c7_202, %c0_203, %c0_204] : memref<8x128x128xbf16, #tpu.memory_space<vmem>>, vector<1x128x128xbf16>
    %625 = vector.shape_cast %624 : vector<1x128x128xbf16> to vector<128x128xbf16>
    %626 = arith.extf %625 : vector<128x128xbf16> to vector<128x128xf32>
    %cst_205 = arith.constant dense<0.000000e+00> : vector<2x128xf32>
    %627 = tpu.matmul %623, %626, %cst_205 {dimension_numbers = #tpu.dot_dimension_numbers<[1], [0], [0], [1], [0, 0, 1, 1], [], []>} : vector<2x128xf32>, vector<128x128xf32>, vector<2x128xf32> -> vector<2x128xf32>
    %628 = arith.addf %620, %627 : vector<2x128xf32>
    %c0_206 = arith.constant 0 : index
    %c0_207 = arith.constant 0 : index
    %629 = vector.load %arg7[%c0_206, %c0_207] : memref<2x128xf32, #tpu.memory_space<vmem>>, vector<2x128xf32>
    tpu.vector_store %arg7[%c0_206, %c0_207], %628 {strides = array<i32>} : memref<2x128xf32, #tpu.memory_space<vmem>>, vector<2x128xf32>,
    return
  }
}

</mosaic_0001>

<llo_original>
// kernel: tpu_custom_call.1
$region0: #{tpu_custom_call.1}
  #allocation0 [shape = 'u32[]', space=smem, size = 0x4, offset = 0x4, fixed_abs, tag = 'smem constant byte address 0x4 - core index']
  #allocation1 [shape = 'u32[72,128]{1,0:T(1,128)}', space=vmem, size = 0x9000, scoped, tag = 'internal scratch']
  %s0 = inlined_call_operand.hbm [shape: f32[2,4], index: 0, kind: input, shape index: {}]
  %s1 = inlined_call_operand.vmem [shape: f32[2,3,128], index: 1, kind: input, shape index: {}]
  %s2 = inlined_call_operand.hbm [shape: f32[8,16], index: 2, kind: input, shape index: {}]
  %s3 = inlined_call_operand.vmem [shape: f32[13,128], index: 3, kind: input, shape index: {}]
  %s4 = inlined_call_operand.hbm [shape: f32[2,32,128], index: 4, kind: input, shape index: {}]
  %s5 = inlined_call_operand.hbm [shape: bf16[2,6,128,128], index: 5, kind: input, shape index: {}]
  %s6 = inlined_call_operand.hbm [shape: bf16[8,128,128], index: 6, kind: input, shape index: {}]
  %s7 = inlined_call_operand.hbm [shape: f32[2,128], index: 7, kind: output, shape index: {}]
  %s8 = sld [smem:[#allocation0]]
  $region58: #{tpu_custom_call.1} parent=0
    _
  %s10 = ssub.s32 1, %s8
  %s11 = scalar_select 0, %s10, %s8
  $region1: #{tpu_custom_call.1} parent=0
    #allocation2 [shape = 'u8[1024]{0}', space=vmem, size = 0x400, scoped, tag = 'input window, operand 0, single buffered']
    #allocation3 [shape = 's32[1]{0}', space=sflag, size = 0x4, scoped, tag = 'scoped memory for tpu_custom_call.1']
    #allocation4 [shape = 's32[1]{0}', space=sflag, size = 0x4, scoped, tag = 'scoped memory for tpu_custom_call.1']
    #allocation5 [shape = 'u8[4096]{0}', space=vmem, size = 0x1000, scoped, tag = 'input window, operand 2, single buffered']
    #allocation6 [shape = 's32[1]{0}', space=sflag, size = 0x4, scoped, tag = 'scoped memory for tpu_custom_call.1']
    #allocation7 [shape = 'u8[32768]{0}', space=vmem, size = 0x8000, scoped, tag = 'input window, operand 4, single buffered']
    #allocation8 [shape = 'u8[393216]{0}', space=vmem, size = 0x60000, scoped, tag = 'input window, operand 5, single buffered']
    #allocation9 [shape = 's32[1]{0}', space=sflag, size = 0x4, scoped, tag = 'scoped memory for tpu_custom_call.1']
    #allocation10 [shape = 'u8[262144]{0}', space=vmem, size = 0x40000, scoped, tag = 'input window, operand 6, single buffered']
    #allocation11 [shape = 'u8[1024]{0}', space=vmem, size = 0x400, scoped, tag = 'output window, operand 0, single buffered']
    %12 = vsyncpa [#allocation3], 0
    %13 = vsyncpa [#allocation6], 0
    %14 = vsyncpa [#allocation9], 0
    %15 = vsyncpa [#allocation4], 0
    // Predicated region
    $region2: #{tpu_custom_call.1} parent=1 // pred_check
      _
    $region3: #{tpu_custom_call.1} parent=1 // pred_check_branch
      %17 = sbr.rel (0) target = $region5
    $region4: #{tpu_custom_call.1} parent=1 // pred_region
      %19 = vsyncadd [#allocation3], 0
      %s21 = sshll.u32 %s0, 4
      %s22 = int_to_ptr.hbm [resolvable:$true] %s21
      %s23 = sshll.u32 [#allocation2], 4
      %s24 = int_to_ptr.vmem [resolvable:$true] %s23
      %26 = dma.hbm_to_vmem [thread:$0]  %s22, 32, %s24, [#allocation3]
    $region5: #{tpu_custom_call.1} parent=1 // pred_fallthru
      _
    // Predicated region
    $region6: #{tpu_custom_call.1} parent=1 // pred_check
      _
    $region7: #{tpu_custom_call.1} parent=1 // pred_check_branch
      %28 = sbr.rel (0) target = $region9
    $region8: #{tpu_custom_call.1} parent=1 // pred_region
      _
    $region9: #{tpu_custom_call.1} parent=1 // pred_fallthru
      _
    // Predicated region
    $region10: #{tpu_custom_call.1} parent=1 // pred_check
      _
    $region11: #{tpu_custom_call.1} parent=1 // pred_check_branch
      %30 = sbr.rel (0) target = $region13
    $region12: #{tpu_custom_call.1} parent=1 // pred_region
      %32 = vsyncadd [#allocation6], 0
      %s34 = sshll.u32 %s2, 4
      %s35 = int_to_ptr.hbm [resolvable:$true] %s34
      %s36 = sshll.u32 [#allocation5], 4
      %s37 = int_to_ptr.vmem [resolvable:$true] %s36
      %39 = dma.hbm_to_vmem [thread:$0]  %s35, 128, %s37, [#allocation6]
    $region13: #{tpu_custom_call.1} parent=1 // pred_fallthru
      _
    // Predicated region
    $region14: #{tpu_custom_call.1} parent=1 // pred_check
      _
    $region15: #{tpu_custom_call.1} parent=1 // pred_check_branch
      %41 = sbr.rel (0) target = $region17
    $region16: #{tpu_custom_call.1} parent=1 // pred_region
      _
    $region17: #{tpu_custom_call.1} parent=1 // pred_fallthru
      _
    // Predicated region
    $region18: #{tpu_custom_call.1} parent=1 // pred_check
      _
    $region19: #{tpu_custom_call.1} parent=1 // pred_check_branch
      %43 = sbr.rel (0) target = $region21
    $region20: #{tpu_custom_call.1} parent=1 // pred_region
      %45 = vsyncadd [#allocation6], 0
      %s46 = sshll.u32 %s4, 4
      %s47 = int_to_ptr.hbm [resolvable:$true] %s46
      %s48 = sshll.u32 [#allocation7], 4
      %s49 = int_to_ptr.vmem [resolvable:$true] %s48
      %54 = dma.hbm_to_vmem [thread:$0]  %s47, 1024, %s49, [#allocation6], 128, 128, 8
    $region21: #{tpu_custom_call.1} parent=1 // pred_fallthru
      _
    // Predicated region
    $region22: #{tpu_custom_call.1} parent=1 // pred_check
      _
    $region23: #{tpu_custom_call.1} parent=1 // pred_check_branch
      %56 = sbr.rel (0) target = $region25
    $region24: #{tpu_custom_call.1} parent=1 // pred_region
      %58 = vsyncadd [#allocation9], 0
      %s59 = sshll.u32 %s5, 4
      %s60 = int_to_ptr.hbm [resolvable:$true] %s59
      %s61 = sshll.u32 [#allocation8], 4
      %s62 = int_to_ptr.vmem [resolvable:$true] %s61
      %67 = dma.hbm_to_vmem [thread:$0]  %s60, 12288, %s62, [#allocation9], 64, 64, 4
    $region25: #{tpu_custom_call.1} parent=1 // pred_fallthru
      _
    // Predicated region
    $region26: #{tpu_custom_call.1} parent=1 // pred_check
      _
    $region27: #{tpu_custom_call.1} parent=1 // pred_check_branch
      %69 = sbr.rel (0) target = $region29
    $region28: #{tpu_custom_call.1} parent=1 // pred_region
      %71 = vsyncadd [#allocation9], 0
      %s72 = sshll.u32 %s6, 4
      %s73 = int_to_ptr.hbm [resolvable:$true] %s72
      %s74 = sshll.u32 [#allocation10], 4
      %s75 = int_to_ptr.vmem [resolvable:$true] %s74
      %80 = dma.hbm_to_vmem [thread:$0]  %s73, 8192, %s75, [#allocation9], 64, 64, 4
    $region29: #{tpu_custom_call.1} parent=1 // pred_fallthru
      _
    // Predicated region
    $region30: #{tpu_custom_call.1} parent=1 // pred_check
      _
    $region31: #{tpu_custom_call.1} parent=1 // pred_check_branch
      %82 = sbr.rel (0) target = $region33
    $region32: #{tpu_custom_call.1} parent=1 // pred_region
      %84 = dma.done [#allocation3], 32
    $region33: #{tpu_custom_call.1} parent=1 // pred_fallthru
      _
    // Predicated region
    $region34: #{tpu_custom_call.1} parent=1 // pred_check
      _
    $region35: #{tpu_custom_call.1} parent=1 // pred_check_branch
      %86 = sbr.rel (0) target = $region37
    $region36: #{tpu_custom_call.1} parent=1 // pred_region
      %88 = dma.done [#allocation6], 128
    $region37: #{tpu_custom_call.1} parent=1 // pred_fallthru
      _
    // Predicated region
    $region38: #{tpu_custom_call.1} parent=1 // pred_check
      _
    $region39: #{tpu_custom_call.1} parent=1 // pred_check_branch
      %90 = sbr.rel (0) target = $region41
    $region40: #{tpu_custom_call.1} parent=1 // pred_region
      %92 = dma.done [#allocation6], 1024
    $region41: #{tpu_custom_call.1} parent=1 // pred_fallthru
      _
    // Predicated region
    $region42: #{tpu_custom_call.1} parent=1 // pred_check
      _
    $region43: #{tpu_custom_call.1} parent=1 // pred_check_branch
      %94 = sbr.rel (0) target = $region45
    $region44: #{tpu_custom_call.1} parent=1 // pred_region
      %96 = dma.done [#allocation9], 12288
    $region45: #{tpu_custom_call.1} parent=1 // pred_fallthru
      _
    // Predicated region
    $region46: #{tpu_custom_call.1} parent=1 // pred_check
      _
    $region47: #{tpu_custom_call.1} parent=1 // pred_check_branch
      %98 = sbr.rel (0) target = $region49
    $region48: #{tpu_custom_call.1} parent=1 // pred_region
      %100 = dma.done [#allocation9], 8192
    $region49: #{tpu_custom_call.1} parent=1 // pred_fallthru
      _
    %v101 = vld [vmem:[#allocation5] sm:$0xff]
    %v102 = vld [vmem:[%s3] sm:$0xff]
    %v103 = vld [vmem:[%s3 + $0xc] sm:$0x1]
    %v104 = vld [vmem:[#allocation2] sm:$0x3]
    %v105 = vld [vmem:[%s1] sm:$0x7]
    %s106 = scalar_lea.vmem %s1, 4
    %v107 = vld [vmem:[%s106] sm:$0x7]
    %vm108 = vcmask 31744
    %v110 = vsel %vm108, %v101, 0
    %v113 = vsel %vm108, %v104, 0
    %115 = vmatpush.xpose.msra.mxu0 0.0
    %116 = vmatpush.xpose.msra.mxu0 0.0
    %117 = vmatpush.xpose.msra.mxu0 0.0
    %118 = vmatpush.xpose.msra.mxu0 0.0
    %119 = vmatpush.xpose.msra.mxu0 0.0
    %120 = vmatpush.xpose.msra.mxu0 0.0
    %121 = vmatpush.xpose.msra.mxu0 0.0
    %122 = vmatpush.xpose.msra.mxu0 0.0
    %123 = vmatpush.xpose.msra.mxu0 0.0
    %124 = vmatpush.xpose.msra.mxu0 0.0
    %125 = vmatpush.xpose.msra.mxu0 0.0
    %126 = vmatpush.xpose.msra.mxu0 0.0
    %127 = vmatpush.xpose.msra.mxu0 0.0
    %128 = vmatpush.xpose.msra.mxu0 0.0
    %129 = vmatpush.xpose.msra.mxu0 0.0
    %130 = vmatpush.xpose.msra.mxu0 %v113
    %131 = vmatmul.f32.gmra.mxu0 %v110
    %v132 = vpop.f32.mrf.mxu0
    %v133 = vadd.f32 0.0, %v132
    %134 = vdwg.mxu0
    %135 = vset.pattern.permute.xlu0 4
    %136 = vperm.xlu0 %135, %v101
    %v137 = vpop.permute.xlu0 %136
    %v139 = vperm.slane %v105, 0
    %v140 = vmul.f32 %v137, %v139
    %141 = vset.pattern.permute.xlu0 5
    %142 = vperm.xlu0 %141, %v101
    %v143 = vpop.permute.xlu0 %142
    %v145 = vperm.slane %v105, 1
    %v146 = vmul.f32 %v143, %v145
    %v147 = vadd.f32 %v140, %v146
    %148 = vset.pattern.permute.xlu0 6
    %149 = vperm.xlu0 %148, %v101
    %v150 = vpop.permute.xlu0 %149
    %v152 = vperm.slane %v105, 2
    %v153 = vmul.f32 %v150, %v152
    %v154 = vadd.f32 %v147, %v153
    %156 = vset.pattern.permute.xlu0 0
    %157 = vperm.xlu0 %156, %v133
    %v158 = vpop.permute.xlu0 %157
    %v160 = vadd.f32 %v154, %v158
    %161 = vset.pattern.permute.xlu0 7
    %162 = vperm.xlu0 %161, %v101
    %v163 = vpop.permute.xlu0 %162
    %v165 = vadd.f32 %v160, %v163
    %v166 = vperm.slane %v107, 0
    %v167 = vmul.f32 %v137, %v166
    %v168 = vperm.slane %v107, 1
    %v169 = vmul.f32 %v143, %v168
    %v170 = vadd.f32 %v167, %v169
    %v171 = vperm.slane %v107, 2
    %v172 = vmul.f32 %v150, %v171
    %v173 = vadd.f32 %v170, %v172
    %174 = vset.pattern.permute.xlu0 1
    %175 = vperm.xlu0 %174, %v133
    %v176 = vpop.permute.xlu0 %175
    %v178 = vadd.f32 %v173, %v176
    %v179 = vadd.f32 %v178, %v163
    %vm180 = vcmask 64512
    %v181 = vsel %vm180, 0.0, -1e+30
    %v182 = vsel %vm180, -1e+30, 0.0
    %v183 = vld [vmem:[#allocation8] sm:$0xf]
    %v184 = vld [vmem:[#allocation8 + $0x4] sm:$0xf]
    %v185 = vld [vmem:[#allocation8 + $0x8] sm:$0xf]
    %v186 = vld [vmem:[#allocation8 + $0xc] sm:$0xf]
    %v187 = vld [vmem:[#allocation8 + $0x10] sm:$0xf]
    %v188 = vld [vmem:[#allocation8 + $0x14] sm:$0xf]
    %v189 = vld [vmem:[#allocation8 + $0x18] sm:$0xf]
    %v190 = vld [vmem:[#allocation8 + $0x1c] sm:$0xf]
    %v191 = vld [vmem:[#allocation8 + $0x20] sm:$0xf]
    %v192 = vld [vmem:[#allocation8 + $0x24] sm:$0xf]
    %v193 = vld [vmem:[#allocation8 + $0x28] sm:$0xf]
    %v194 = vld [vmem:[#allocation8 + $0x2c] sm:$0xf]
    %v195 = vld [vmem:[#allocation8 + $0x30] sm:$0xf]
    %v196 = vld [vmem:[#allocation8 + $0x34] sm:$0xf]
    %v197 = vld [vmem:[#allocation8 + $0x38] sm:$0xf]
    %v198 = vld [vmem:[#allocation8 + $0x3c] sm:$0xf]
    %v199 = vunpack.c.l.bf16 %v183
    %v200 = vunpack.c.l.bf16 %v184
    %v201 = vunpack.c.l.bf16 %v185
    %v202 = vunpack.c.l.bf16 %v186
    %v203 = vunpack.c.l.bf16 %v187
    %v204 = vunpack.c.l.bf16 %v188
    %v205 = vunpack.c.l.bf16 %v189
    %v206 = vunpack.c.l.bf16 %v190
    %v207 = vunpack.c.l.bf16 %v191
    %v208 = vunpack.c.l.bf16 %v192
    %v209 = vunpack.c.l.bf16 %v193
    %v210 = vunpack.c.l.bf16 %v194
    %v211 = vunpack.c.l.bf16 %v195
    %v212 = vunpack.c.l.bf16 %v196
    %v213 = vunpack.c.l.bf16 %v197
    %v214 = vunpack.c.l.bf16 %v198
    %s215 = scalar_lea.vmem [#allocation8], 64
    %v216 = vld [vmem:[%s215] sm:$0xf]
    %v217 = vld [vmem:[%s215 + $0x4] sm:$0xf]
    %v218 = vld [vmem:[%s215 + $0x8] sm:$0xf]
    %v219 = vld [vmem:[%s215 + $0xc] sm:$0xf]
    %v220 = vld [vmem:[%s215 + $0x10] sm:$0xf]
    %v221 = vld [vmem:[%s215 + $0x14] sm:$0xf]
    %v222 = vld [vmem:[%s215 + $0x18] sm:$0xf]
    %v223 = vld [vmem:[%s215 + $0x1c] sm:$0xf]
    %v224 = vld [vmem:[%s215 + $0x20] sm:$0xf]
    %v225 = vld [vmem:[%s215 + $0x24] sm:$0xf]
    %v226 = vld [vmem:[%s215 + $0x28] sm:$0xf]
    %v227 = vld [vmem:[%s215 + $0x2c] sm:$0xf]
    %v228 = vld [vmem:[%s215 + $0x30] sm:$0xf]
    %v229 = vld [vmem:[%s215 + $0x34] sm:$0xf]
    %v230 = vld [vmem:[%s215 + $0x38] sm:$0xf]
    %v231 = vld [vmem:[%s215 + $0x3c] sm:$0xf]
    %v232 = vunpack.c.l.bf16 %v216
    %v233 = vunpack.c.l.bf16 %v217
    %v234 = vunpack.c.l.bf16 %v218
    %v235 = vunpack.c.l.bf16 %v219
    %v236 = vunpack.c.l.bf16 %v220
    %v237 = vunpack.c.l.bf16 %v221
    %v238 = vunpack.c.l.bf16 %v222
    %v239 = vunpack.c.l.bf16 %v223
    %v240 = vunpack.c.l.bf16 %v224
    %v241 = vunpack.c.l.bf16 %v225
    %v242 = vunpack.c.l.bf16 %v226
    %v243 = vunpack.c.l.bf16 %v227
    %v244 = vunpack.c.l.bf16 %v228
    %v245 = vunpack.c.l.bf16 %v229
    %v246 = vunpack.c.l.bf16 %v230
    %v247 = vunpack.c.l.bf16 %v231
    %s248 = scalar_lea.vmem [#allocation8], 128
    %v249 = vld [vmem:[%s248] sm:$0xf]
    %v250 = vld [vmem:[%s248 + $0x4] sm:$0xf]
    %v251 = vld [vmem:[%s248 + $0x8] sm:$0xf]
    %v252 = vld [vmem:[%s248 + $0xc] sm:$0xf]
    %v253 = vld [vmem:[%s248 + $0x10] sm:$0xf]
    %v254 = vld [vmem:[%s248 + $0x14] sm:$0xf]
    %v255 = vld [vmem:[%s248 + $0x18] sm:$0xf]
    %v256 = vld [vmem:[%s248 + $0x1c] sm:$0xf]
    %v257 = vld [vmem:[%s248 + $0x20] sm:$0xf]
    %v258 = vld [vmem:[%s248 + $0x24] sm:$0xf]
    %v259 = vld [vmem:[%s248 + $0x28] sm:$0xf]
    %v260 = vld [vmem:[%s248 + $0x2c] sm:$0xf]
    %v261 = vld [vmem:[%s248 + $0x30] sm:$0xf]
    %v262 = vld [vmem:[%s248 + $0x34] sm:$0xf]
    %v263 = vld [vmem:[%s248 + $0x38] sm:$0xf]
    %v264 = vld [vmem:[%s248 + $0x3c] sm:$0xf]
    %v265 = vunpack.c.l.bf16 %v249
    %v266 = vunpack.c.l.bf16 %v250
    %v267 = vunpack.c.l.bf16 %v251
    %v268 = vunpack.c.l.bf16 %v252
    %v269 = vunpack.c.l.bf16 %v253
    %v270 = vunpack.c.l.bf16 %v254
    %v271 = vunpack.c.l.bf16 %v255
    %v272 = vunpack.c.l.bf16 %v256
    %v273 = vunpack.c.l.bf16 %v257
    %v274 = vunpack.c.l.bf16 %v258
    %v275 = vunpack.c.l.bf16 %v259
    %v276 = vunpack.c.l.bf16 %v260
    %v277 = vunpack.c.l.bf16 %v261
    %v278 = vunpack.c.l.bf16 %v262
    %v279 = vunpack.c.l.bf16 %v263
    %v280 = vunpack.c.l.bf16 %v264
    %s281 = scalar_lea.vmem [#allocation8], 192
    %v282 = vld [vmem:[%s281] sm:$0xf]
    %v283 = vld [vmem:[%s281 + $0x4] sm:$0xf]
    %v284 = vld [vmem:[%s281 + $0x8] sm:$0xf]
    %v285 = vld [vmem:[%s281 + $0xc] sm:$0xf]
    %v286 = vld [vmem:[%s281 + $0x10] sm:$0xf]
    %v287 = vld [vmem:[%s281 + $0x14] sm:$0xf]
    %v288 = vld [vmem:[%s281 + $0x18] sm:$0xf]
    %v289 = vld [vmem:[%s281 + $0x1c] sm:$0xf]
    %v290 = vld [vmem:[%s281 + $0x20] sm:$0xf]
    %v291 = vld [vmem:[%s281 + $0x24] sm:$0xf]
    %v292 = vld [vmem:[%s281 + $0x28] sm:$0xf]
    %v293 = vld [vmem:[%s281 + $0x2c] sm:$0xf]
    %v294 = vld [vmem:[%s281 + $0x30] sm:$0xf]
    %v295 = vld [vmem:[%s281 + $0x34] sm:$0xf]
    %v296 = vld [vmem:[%s281 + $0x38] sm:$0xf]
    %v297 = vld [vmem:[%s281 + $0x3c] sm:$0xf]
    %v298 = vunpack.c.l.bf16 %v282
    %v299 = vunpack.c.l.bf16 %v283
    %v300 = vunpack.c.l.bf16 %v284
    %v301 = vunpack.c.l.bf16 %v285
    %v302 = vunpack.c.l.bf16 %v286
    %v303 = vunpack.c.l.bf16 %v287
    %v304 = vunpack.c.l.bf16 %v288
    %v305 = vunpack.c.l.bf16 %v289
    %v306 = vunpack.c.l.bf16 %v290
    %v307 = vunpack.c.l.bf16 %v291
    %v308 = vunpack.c.l.bf16 %v292
    %v309 = vunpack.c.l.bf16 %v293
    %v310 = vunpack.c.l.bf16 %v294
    %v311 = vunpack.c.l.bf16 %v295
    %v312 = vunpack.c.l.bf16 %v296
    %v313 = vunpack.c.l.bf16 %v297
    %s314 = scalar_lea.vmem [#allocation8], 256
    %v315 = vld [vmem:[%s314] sm:$0xf]
    %v316 = vld [vmem:[%s314 + $0x4] sm:$0xf]
    %v317 = vld [vmem:[%s314 + $0x8] sm:$0xf]
    %v318 = vld [vmem:[%s314 + $0xc] sm:$0xf]
    %v319 = vld [vmem:[%s314 + $0x10] sm:$0xf]
    %v320 = vld [vmem:[%s314 + $0x14] sm:$0xf]
    %v321 = vld [vmem:[%s314 + $0x18] sm:$0xf]
    %v322 = vld [vmem:[%s314 + $0x1c] sm:$0xf]
    %v323 = vld [vmem:[%s314 + $0x20] sm:$0xf]
    %v324 = vld [vmem:[%s314 + $0x24] sm:$0xf]
    %v325 = vld [vmem:[%s314 + $0x28] sm:$0xf]
    %v326 = vld [vmem:[%s314 + $0x2c] sm:$0xf]
    %v327 = vld [vmem:[%s314 + $0x30] sm:$0xf]
    %v328 = vld [vmem:[%s314 + $0x34] sm:$0xf]
    %v329 = vld [vmem:[%s314 + $0x38] sm:$0xf]
    %v330 = vld [vmem:[%s314 + $0x3c] sm:$0xf]
    %v331 = vunpack.c.l.bf16 %v315
    %v332 = vunpack.c.l.bf16 %v316
    %v333 = vunpack.c.l.bf16 %v317
    %v334 = vunpack.c.l.bf16 %v318
    %v335 = vunpack.c.l.bf16 %v319
    %v336 = vunpack.c.l.bf16 %v320
    %v337 = vunpack.c.l.bf16 %v321
    %v338 = vunpack.c.l.bf16 %v322
    %v339 = vunpack.c.l.bf16 %v323
    %v340 = vunpack.c.l.bf16 %v324
    %v341 = vunpack.c.l.bf16 %v325
    %v342 = vunpack.c.l.bf16 %v326
    %v343 = vunpack.c.l.bf16 %v327
    %v344 = vunpack.c.l.bf16 %v328
    %v345 = vunpack.c.l.bf16 %v329
    %v346 = vunpack.c.l.bf16 %v330
    %s347 = scalar_lea.vmem [#allocation8], 320
    %v348 = vld [vmem:[%s347] sm:$0xf]
    %v349 = vld [vmem:[%s347 + $0x4] sm:$0xf]
    %v350 = vld [vmem:[%s347 + $0x8] sm:$0xf]
    %v351 = vld [vmem:[%s347 + $0xc] sm:$0xf]
    %v352 = vld [vmem:[%s347 + $0x10] sm:$0xf]
    %v353 = vld [vmem:[%s347 + $0x14] sm:$0xf]
    %v354 = vld [vmem:[%s347 + $0x18] sm:$0xf]
    %v355 = vld [vmem:[%s347 + $0x1c] sm:$0xf]
    %v356 = vld [vmem:[%s347 + $0x20] sm:$0xf]
    %v357 = vld [vmem:[%s347 + $0x24] sm:$0xf]
    %v358 = vld [vmem:[%s347 + $0x28] sm:$0xf]
    %v359 = vld [vmem:[%s347 + $0x2c] sm:$0xf]
    %v360 = vld [vmem:[%s347 + $0x30] sm:$0xf]
    %v361 = vld [vmem:[%s347 + $0x34] sm:$0xf]
    %v362 = vld [vmem:[%s347 + $0x38] sm:$0xf]
    %v363 = vld [vmem:[%s347 + $0x3c] sm:$0xf]
    %v364 = vunpack.c.l.bf16 %v348
    %v365 = vunpack.c.l.bf16 %v349
    %v366 = vunpack.c.l.bf16 %v350
    %v367 = vunpack.c.l.bf16 %v351
    %v368 = vunpack.c.l.bf16 %v352
    %v369 = vunpack.c.l.bf16 %v353
    %v370 = vunpack.c.l.bf16 %v354
    %v371 = vunpack.c.l.bf16 %v355
    %v372 = vunpack.c.l.bf16 %v356
    %v373 = vunpack.c.l.bf16 %v357
    %v374 = vunpack.c.l.bf16 %v358
    %v375 = vunpack.c.l.bf16 %v359
    %v376 = vunpack.c.l.bf16 %v360
    %v377 = vunpack.c.l.bf16 %v361
    %v378 = vunpack.c.l.bf16 %v362
    %v379 = vunpack.c.l.bf16 %v363
    %v380 = vld [vmem:[#allocation7] sm:$0xff]
    %v381 = vld [vmem:[#allocation7 + $0x8] sm:$0xff]
    %v382 = vld [vmem:[#allocation7 + $0x10] sm:$0xff]
    %v383 = vld [vmem:[#allocation7 + $0x18] sm:$0xff]
    %v384 = vld [vmem:[%s3 + $0x8] sm:$0x1]
    %v385 = vld [vmem:[%s3 + $0xa] sm:$0x1]
    %v386 = vmul.f32 %v165, 11.313708
    %v387 = vmul.f32 %v179, 11.313708
    %v388 = vadd.f32 %v386, %v102
    %v389 = vadd.f32 %v387, %v102
    %390 = vmatpush.msra.mxu0 %v214
    %391 = vmatpush.msra.mxu0 %v213
    %392 = vmatpush.msra.mxu0 %v212
    %393 = vmatpush.msra.mxu0 %v211
    %394 = vmatpush.msra.mxu0 %v210
    %395 = vmatpush.msra.mxu0 %v209
    %396 = vmatpush.msra.mxu0 %v208
    %397 = vmatpush.msra.mxu0 %v207
    %398 = vmatpush.msra.mxu0 %v206
    %399 = vmatpush.msra.mxu0 %v205
    %400 = vmatpush.msra.mxu0 %v204
    %401 = vmatpush.msra.mxu0 %v203
    %402 = vmatpush.msra.mxu0 %v202
    %403 = vmatpush.msra.mxu0 %v201
    %404 = vmatpush.msra.mxu0 %v200
    %405 = vmatpush.msra.mxu0 %v199
    %406 = vmatmul.f32.gmra.mxu0 %v388
    %v407 = vpop.f32.mrf.mxu0
    %v408 = vadd.f32 0.0, %v407
    %409 = vmatmul.f32.gmra.mxu0 %v389
    %v410 = vpop.f32.mrf.mxu0
    %v411 = vadd.f32 0.0, %v410
    %412 = vdwg.mxu0
    %413 = vmatpush.msra.mxu0 %v247
    %414 = vmatpush.msra.mxu0 %v246
    %415 = vmatpush.msra.mxu0 %v245
    %416 = vmatpush.msra.mxu0 %v244
    %417 = vmatpush.msra.mxu0 %v243
    %418 = vmatpush.msra.mxu0 %v242
    %419 = vmatpush.msra.mxu0 %v241
    %420 = vmatpush.msra.mxu0 %v240
    %421 = vmatpush.msra.mxu0 %v239
    %422 = vmatpush.msra.mxu0 %v238
    %423 = vmatpush.msra.mxu0 %v237
    %424 = vmatpush.msra.mxu0 %v236
    %425 = vmatpush.msra.mxu0 %v235
    %426 = vmatpush.msra.mxu0 %v234
    %427 = vmatpush.msra.mxu0 %v233
    %428 = vmatpush.msra.mxu0 %v232
    %429 = vmatmul.f32.gmra.mxu0 %v388
    %v430 = vpop.f32.mrf.mxu0
    %v431 = vadd.f32 0.0, %v430
    %432 = vmatmul.f32.gmra.mxu0 %v389
    %v433 = vpop.f32.mrf.mxu0
    %v434 = vadd.f32 0.0, %v433
    %435 = vdwg.mxu0
    %436 = vmatpush.msra.mxu0 %v280
    %437 = vmatpush.msra.mxu0 %v279
    %438 = vmatpush.msra.mxu0 %v278
    %439 = vmatpush.msra.mxu0 %v277
    %440 = vmatpush.msra.mxu0 %v276
    %441 = vmatpush.msra.mxu0 %v275
    %442 = vmatpush.msra.mxu0 %v274
    %443 = vmatpush.msra.mxu0 %v273
    %444 = vmatpush.msra.mxu0 %v272
    %445 = vmatpush.msra.mxu0 %v271
    %446 = vmatpush.msra.mxu0 %v270
    %447 = vmatpush.msra.mxu0 %v269
    %448 = vmatpush.msra.mxu0 %v268
    %449 = vmatpush.msra.mxu0 %v267
    %450 = vmatpush.msra.mxu0 %v266
    %451 = vmatpush.msra.mxu0 %v265
    %452 = vmatmul.f32.gmra.mxu0 %v388
    %v453 = vpop.f32.mrf.mxu0
    %v454 = vadd.f32 0.0, %v453
    %455 = vmatmul.f32.gmra.mxu0 %v389
    %v456 = vpop.f32.mrf.mxu0
    %v457 = vadd.f32 0.0, %v456
    %458 = vdwg.mxu0
    %vm459 = vcmask 523264
    %v461 = vsel %vm459, %v408, 0
    %v464 = vsel %vm459, %v411, 0
    %v467 = vsel %vm459, %v431, 0
    %v470 = vsel %vm459, %v434, 0
    %472 = vmatpush.xpose.msra.mxu0 0.0
    %473 = vmatpush.xpose.msra.mxu0 0.0
    %474 = vmatpush.xpose.msra.mxu0 0.0
    %475 = vmatpush.xpose.msra.mxu0 0.0
    %476 = vmatpush.xpose.msra.mxu0 0.0
    %477 = vmatpush.xpose.msra.mxu0 0.0
    %478 = vmatpush.xpose.msra.mxu0 0.0
    %479 = vmatpush.xpose.msra.mxu0 0.0
    %480 = vmatpush.xpose.msra.mxu0 0.0
    %481 = vmatpush.xpose.msra.mxu0 0.0
    %482 = vmatpush.xpose.msra.mxu0 0.0
    %483 = vmatpush.xpose.msra.mxu0 0.0
    %484 = vmatpush.xpose.msra.mxu0 0.0
    %485 = vmatpush.xpose.msra.mxu0 0.0
    %486 = vmatpush.xpose.msra.mxu0 %v470
    %487 = vmatpush.xpose.msra.mxu0 %v467
    %488 = vmatmul.f32.gmra.mxu0 %v461
    %v489 = vpop.f32.mrf.mxu0
    %v490 = vadd.f32 0.0, %v489
    %491 = vmatmul.f32.gmra.mxu0 %v464
    %v492 = vpop.f32.mrf.mxu0
    %v493 = vadd.f32 0.0, %v492
    %494 = vdwg.mxu0
    %v495 = vmul.f32 %v490, 0.125
    %v496 = vmul.f32 %v493, 0.125
    %v497 = vadd.f32 %v495, %v181
    %v498 = vadd.f32 %v496, %v182
    %vm499 = vcmask 130048
    %v500 = vsel %vm499, %v497, -inf
    %501 = vmax.xlane.f32.xlu0 %v500
    %v502 = vpop.xlane.xlu0 %501
    %v503 = vsel %vm499, %v498, -inf
    %504 = vmax.xlane.f32.xlu0 %v503
    %v505 = vpop.xlane.xlu0 %504
    %v506 = vsub.f32 %v497, %v502
    %v507 = vsub.f32 %v498, %v505
    %v508 = vmul.f32 %v506, 1.442695
    %v509 = vpow.pop %v508
    %v510 = vmul.f32 %v507, 1.442695
    %v511 = vpow.pop %v510
    %v512 = vsel %vm499, %v509, 0.0
    %513 = vadd.xlane.f32.xlu0 %v512
    %v514 = vpop.xlane.xlu0 %513
    %v515 = vsel %vm499, %v511, 0.0
    %516 = vadd.xlane.f32.xlu0 %v515
    %v517 = vpop.xlane.xlu0 %516
    %v518 = vrcp.pop %v514
    %v519 = vrcp.pop %v517
    %v520 = vmul.f32 %v509, %v518
    %v521 = vmul.f32 %v511, %v519
    %v523 = vsel %vm499, %v520, 0
    %v526 = vsel %vm499, %v521, 0
    %528 = vmatpush.msra.mxu0 0.0
    %529 = vmatpush.msra.mxu0 0.0
    %530 = vmatpush.msra.mxu0 0.0
    %531 = vmatpush.msra.mxu0 0.0
    %532 = vmatpush.msra.mxu0 0.0
    %533 = vmatpush.msra.mxu0 0.0
    %534 = vmatpush.msra.mxu0 0.0
    %535 = vmatpush.msra.mxu0 0.0
    %536 = vmatpush.msra.mxu0 0.0
    %537 = vmatpush.msra.mxu0 0.0
    %538 = vmatpush.msra.mxu0 0.0
    %539 = vmatpush.msra.mxu0 0.0
    %540 = vmatpush.msra.mxu0 0.0
    %541 = vmatpush.msra.mxu0 0.0
    %542 = vmatpush.msra.mxu0 %v457
    %543 = vmatpush.msra.mxu0 %v454
    %544 = vmatmul.f32.gmra.mxu0 %v523
    %v545 = vpop.f32.mrf.mxu0
    %v546 = vadd.f32 0.0, %v545
    %547 = vmatmul.f32.gmra.mxu0 %v526
    %v548 = vpop.f32.mrf.mxu0
    %v549 = vadd.f32 0.0, %v548
    %550 = vdwg.mxu0
    %551 = vrot.lane.b32.xlu0 %v408, 64
    %v552 = vpop.permute.xlu0 %551
    %553 = vrot.lane.b32.xlu0 %v411, 64
    %v554 = vpop.permute.xlu0 %553
    %555 = vrot.lane.b32.xlu0 %v431, 64
    %v556 = vpop.permute.xlu0 %555
    %557 = vrot.lane.b32.xlu0 %v434, 64
    %v558 = vpop.permute.xlu0 %557
    %v559 = vsel %vm459, %v552, 0
    %v561 = vsel %vm459, %v554, 0
    %v563 = vsel %vm459, %v556, 0
    %v565 = vsel %vm459, %v558, 0
    %567 = vmatpush.xpose.msra.mxu0 0.0
    %568 = vmatpush.xpose.msra.mxu0 0.0
    %569 = vmatpush.xpose.msra.mxu0 0.0
    %570 = vmatpush.xpose.msra.mxu0 0.0
    %571 = vmatpush.xpose.msra.mxu0 0.0
    %572 = vmatpush.xpose.msra.mxu0 0.0
    %573 = vmatpush.xpose.msra.mxu0 0.0
    %574 = vmatpush.xpose.msra.mxu0 0.0
    %575 = vmatpush.xpose.msra.mxu0 0.0
    %576 = vmatpush.xpose.msra.mxu0 0.0
    %577 = vmatpush.xpose.msra.mxu0 0.0
    %578 = vmatpush.xpose.msra.mxu0 0.0
    %579 = vmatpush.xpose.msra.mxu0 0.0
    %580 = vmatpush.xpose.msra.mxu0 0.0
    %581 = vmatpush.xpose.msra.mxu0 %v565
    %582 = vmatpush.xpose.msra.mxu0 %v563
    %583 = vmatmul.f32.gmra.mxu0 %v559
    %v584 = vpop.f32.mrf.mxu0
    %v585 = vadd.f32 0.0, %v584
    %586 = vmatmul.f32.gmra.mxu0 %v561
    %v587 = vpop.f32.mrf.mxu0
    %v588 = vadd.f32 0.0, %v587
    %589 = vdwg.mxu0
    %v590 = vmul.f32 %v585, 0.125
    %v591 = vmul.f32 %v588, 0.125
    %v592 = vadd.f32 %v590, %v181
    %v593 = vadd.f32 %v591, %v182
    %v594 = vsel %vm499, %v592, -inf
    %595 = vmax.xlane.f32.xlu0 %v594
    %v596 = vpop.xlane.xlu0 %595
    %v597 = vsel %vm499, %v593, -inf
    %598 = vmax.xlane.f32.xlu0 %v597
    %v599 = vpop.xlane.xlu0 %598
    %v600 = vsub.f32 %v592, %v596
    %v601 = vsub.f32 %v593, %v599
    %v602 = vmul.f32 %v600, 1.442695
    %v603 = vpow.pop %v602
    %v604 = vmul.f32 %v601, 1.442695
    %v605 = vpow.pop %v604
    %v606 = vsel %vm499, %v603, 0.0
    %607 = vadd.xlane.f32.xlu0 %v606
    %v608 = vpop.xlane.xlu0 %607
    %v609 = vsel %vm499, %v605, 0.0
    %610 = vadd.xlane.f32.xlu0 %v609
    %v611 = vpop.xlane.xlu0 %610
    %v612 = vrcp.pop %v608
    %v613 = vrcp.pop %v611
    %v614 = vmul.f32 %v603, %v612
    %v615 = vmul.f32 %v605, %v613
    %618 = vrot.lane.b32.xlu0 %v454, 64
    %v619 = vpop.permute.xlu0 %618
    %620 = vrot.lane.b32.xlu0 %v457, 64
    %v621 = vpop.permute.xlu0 %620
    %v625 = vsel %vm499, %v614, 0
    %v628 = vsel %vm499, %v615, 0
    %630 = vmatpush.msra.mxu0 0.0
    %631 = vmatpush.msra.mxu0 0.0
    %632 = vmatpush.msra.mxu0 0.0
    %633 = vmatpush.msra.mxu0 0.0
    %634 = vmatpush.msra.mxu0 0.0
    %635 = vmatpush.msra.mxu0 0.0
    %636 = vmatpush.msra.mxu0 0.0
    %637 = vmatpush.msra.mxu0 0.0
    %638 = vmatpush.msra.mxu0 0.0
    %639 = vmatpush.msra.mxu0 0.0
    %640 = vmatpush.msra.mxu0 0.0
    %641 = vmatpush.msra.mxu0 0.0
    %642 = vmatpush.msra.mxu0 0.0
    %643 = vmatpush.msra.mxu0 0.0
    %644 = vmatpush.msra.mxu0 %v621
    %645 = vmatpush.msra.mxu0 %v619
    %646 = vmatmul.f32.gmra.mxu0 %v625
    %v647 = vpop.f32.mrf.mxu0
    %v648 = vadd.f32 0.0, %v647
    %649 = vmatmul.f32.gmra.mxu0 %v628
    %v650 = vpop.f32.mrf.mxu0
    %v651 = vadd.f32 0.0, %v650
    %652 = vdwg.mxu0
    %v654 = vsel %vm459, %v648, 0
    %v657 = vsel %vm459, %v651, 0
    %659 = vmatpush.msra.mxu0 0.0
    %660 = vmatpush.msra.mxu0 0.0
    %661 = vmatpush.msra.mxu0 0.0
    %662 = vmatpush.msra.mxu0 0.0
    %663 = vmatpush.msra.mxu0 0.0
    %664 = vmatpush.msra.mxu0 0.0
    %665 = vmatpush.msra.mxu0 0.0
    %666 = vmatpush.msra.mxu0 0.0
    %667 = vmatpush.msra.mxu0 %v313
    %668 = vmatpush.msra.mxu0 %v312
    %669 = vmatpush.msra.mxu0 %v311
    %670 = vmatpush.msra.mxu0 %v310
    %671 = vmatpush.msra.mxu0 %v309
    %672 = vmatpush.msra.mxu0 %v308
    %673 = vmatpush.msra.mxu0 %v307
    %674 = vmatpush.msra.mxu0 %v306
    %675 = vmatmul.f32.gmra.mxu0 %v654
    %v676 = vpop.f32.mrf.mxu0
    %v677 = vadd.f32 0.0, %v676
    %678 = vmatmul.f32.gmra.mxu0 %v657
    %v679 = vpop.f32.mrf.mxu0
    %v680 = vadd.f32 0.0, %v679
    %681 = vdwg.mxu0
    %v683 = vsel %vm459, %v546, 0
    %v686 = vsel %vm459, %v549, 0
    %688 = vmatpush.msra.mxu0 0.0
    %689 = vmatpush.msra.mxu0 0.0
    %690 = vmatpush.msra.mxu0 0.0
    %691 = vmatpush.msra.mxu0 0.0
    %692 = vmatpush.msra.mxu0 0.0
    %693 = vmatpush.msra.mxu0 0.0
    %694 = vmatpush.msra.mxu0 0.0
    %695 = vmatpush.msra.mxu0 0.0
    %696 = vmatpush.msra.mxu0 %v305
    %697 = vmatpush.msra.mxu0 %v304
    %698 = vmatpush.msra.mxu0 %v303
    %699 = vmatpush.msra.mxu0 %v302
    %700 = vmatpush.msra.mxu0 %v301
    %701 = vmatpush.msra.mxu0 %v300
    %702 = vmatpush.msra.mxu0 %v299
    %703 = vmatpush.msra.mxu0 %v298
    %704 = vmatmul.f32.gmra.mxu0 %v683
    %v705 = vpop.f32.mrf.mxu0
    %v706 = vadd.f32 %v677, %v705
    %707 = vmatmul.f32.gmra.mxu0 %v686
    %v708 = vpop.f32.mrf.mxu0
    %v709 = vadd.f32 %v680, %v708
    %710 = vdwg.mxu0
    %v711 = vadd.f32 %v706, %v388
    %v712 = vadd.f32 %v709, %v389
    %713 = vadd.xlane.f32.xlu0 %v711
    %v714 = vpop.xlane.xlu0 %713
    %v715 = vrot.slane %v714, 4
    %v716 = vadd.f32 %v714, %v715
    %v717 = vrot.slane %v716, 2
    %v718 = vadd.f32 %v716, %v717
    %v719 = vrot.slane %v718, 1
    %v720 = vadd.f32 %v718, %v719
    %s721 = vtos %v720
    %v722 = vstv %s721
    %v723 = vmul.f32 %v711, %v711
    %724 = vadd.xlane.f32.xlu0 %v723
    %v725 = vpop.xlane.xlu0 %724
    %v726 = vrot.slane %v725, 4
    %v727 = vadd.f32 %v725, %v726
    %v728 = vrot.slane %v727, 2
    %v729 = vadd.f32 %v727, %v728
    %v730 = vrot.slane %v729, 1
    %v731 = vadd.f32 %v729, %v730
    %s732 = vtos %v731
    %v733 = vstv %s732
    %v734 = vmul.f32 %v722, 0.0009765625
    %v735 = vmul.f32 %v733, 0.0009765625
    %v736 = vmul.f32 %v734, %v734
    %v737 = vsub.f32 %v735, %v736
    %v738 = vsub.f32 %v711, %v734
    %v739 = vadd.f32 %v737, 1e-05
    %v740 = vrsqrt.pop %v739
    %v741 = vmul.f32 %v740, %v739
    %v742 = vmul.f32 %v741, %v740
    %v743 = vmul.f32 0.5, %v742
    %v744 = vsub.f32 1.5, %v743
    %v745 = vmul.f32 %v740, %v744
    %vm746 = vweird.f32 %v739
    %vm747 = vweird.f32 %v740
    %vm748 = vmor %vm746, %vm747
    %v749 = vsel %vm748, %v740, %v745
    %v750 = vmul.f32 %v738, %v749
    %v751 = vmul.f32 %v750, %v380
    %v752 = vadd.f32 %v751, %v381
    %753 = vadd.xlane.f32.xlu0 %v712
    %v754 = vpop.xlane.xlu0 %753
    %v755 = vrot.slane %v754, 4
    %v756 = vadd.f32 %v754, %v755
    %v757 = vrot.slane %v756, 2
    %v758 = vadd.f32 %v756, %v757
    %v759 = vrot.slane %v758, 1
    %v760 = vadd.f32 %v758, %v759
    %s761 = vtos %v760
    %v762 = vstv %s761
    %v763 = vmul.f32 %v712, %v712
    %764 = vadd.xlane.f32.xlu0 %v763
    %v765 = vpop.xlane.xlu0 %764
    %v766 = vrot.slane %v765, 4
    %v767 = vadd.f32 %v765, %v766
    %v768 = vrot.slane %v767, 2
    %v769 = vadd.f32 %v767, %v768
    %v770 = vrot.slane %v769, 1
    %v771 = vadd.f32 %v769, %v770
    %s772 = vtos %v771
    %v773 = vstv %s772
    %v774 = vmul.f32 %v762, 0.0009765625
    %v775 = vmul.f32 %v773, 0.0009765625
    %v776 = vmul.f32 %v774, %v774
    %v777 = vsub.f32 %v775, %v776
    %v778 = vsub.f32 %v712, %v774
    %v779 = vadd.f32 %v777, 1e-05
    %v780 = vrsqrt.pop %v779
    %v781 = vmul.f32 %v780, %v779
    %v782 = vmul.f32 %v781, %v780
    %v783 = vmul.f32 0.5, %v782
    %v784 = vsub.f32 1.5, %v783
    %v785 = vmul.f32 %v780, %v784
    %vm786 = vweird.f32 %v779
    %vm787 = vweird.f32 %v780
    %vm788 = vmor %vm786, %vm787
    %v789 = vsel %vm788, %v780, %v785
    %v790 = vmul.f32 %v778, %v789
    %v791 = vmul.f32 %v790, %v380
    %v792 = vadd.f32 %v791, %v381
    %v793 = vperm.slane %v384, 0
    %794 = vmatpush.msra.mxu0 %v346
    %795 = vmatpush.msra.mxu0 %v345
    %796 = vmatpush.msra.mxu0 %v344
    %797 = vmatpush.msra.mxu0 %v343
    %798 = vmatpush.msra.mxu0 %v342
    %799 = vmatpush.msra.mxu0 %v341
    %800 = vmatpush.msra.mxu0 %v340
    %801 = vmatpush.msra.mxu0 %v339
    %802 = vmatpush.msra.mxu0 %v338
    %803 = vmatpush.msra.mxu0 %v337
    %804 = vmatpush.msra.mxu0 %v336
    %805 = vmatpush.msra.mxu0 %v335
    %806 = vmatpush.msra.mxu0 %v334
    %807 = vmatpush.msra.mxu0 %v333
    %808 = vmatpush.msra.mxu0 %v332
    %809 = vmatpush.msra.mxu0 %v331
    %810 = vmatmul.f32.gmra.mxu0 %v752
    %v811 = vpop.f32.mrf.mxu0
    %v812 = vadd.f32 %v793, %v811
    %813 = vmatmul.f32.gmra.mxu0 %v792
    %v814 = vpop.f32.mrf.mxu0
    %v815 = vadd.f32 %v793, %v814
    %816 = vdwg.mxu0
    %v817 = vmax.f32 %v812, 0.0
    %v818 = vmax.f32 %v815, 0.0
    %v819 = vperm.slane %v385, 0
    %820 = vmatpush.msra.mxu0 %v379
    %821 = vmatpush.msra.mxu0 %v378
    %822 = vmatpush.msra.mxu0 %v377
    %823 = vmatpush.msra.mxu0 %v376
    %824 = vmatpush.msra.mxu0 %v375
    %825 = vmatpush.msra.mxu0 %v374
    %826 = vmatpush.msra.mxu0 %v373
    %827 = vmatpush.msra.mxu0 %v372
    %828 = vmatpush.msra.mxu0 %v371
    %829 = vmatpush.msra.mxu0 %v370
    %830 = vmatpush.msra.mxu0 %v369
    %831 = vmatpush.msra.mxu0 %v368
    %832 = vmatpush.msra.mxu0 %v367
    %833 = vmatpush.msra.mxu0 %v366
    %834 = vmatpush.msra.mxu0 %v365
    %835 = vmatpush.msra.mxu0 %v364
    %836 = vmatmul.f32.gmra.mxu0 %v817
    %v837 = vpop.f32.mrf.mxu0
    %v838 = vadd.f32 %v819, %v837
    %839 = vmatmul.f32.gmra.mxu0 %v818
    %v840 = vpop.f32.mrf.mxu0
    %v841 = vadd.f32 %v819, %v840
    %842 = vdwg.mxu0
    %v843 = vadd.f32 %v838, %v752
    %v844 = vadd.f32 %v841, %v792
    %845 = vadd.xlane.f32.xlu0 %v843
    %v846 = vpop.xlane.xlu0 %845
    %v847 = vrot.slane %v846, 4
    %v848 = vadd.f32 %v846, %v847
    %v849 = vrot.slane %v848, 2
    %v850 = vadd.f32 %v848, %v849
    %v851 = vrot.slane %v850, 1
    %v852 = vadd.f32 %v850, %v851
    %s853 = vtos %v852
    %v854 = vstv %s853
    %v855 = vmul.f32 %v843, %v843
    %856 = vadd.xlane.f32.xlu0 %v855
    %v857 = vpop.xlane.xlu0 %856
    %v858 = vrot.slane %v857, 4
    %v859 = vadd.f32 %v857, %v858
    %v860 = vrot.slane %v859, 2
    %v861 = vadd.f32 %v859, %v860
    %v862 = vrot.slane %v861, 1
    %v863 = vadd.f32 %v861, %v862
    %s864 = vtos %v863
    %v865 = vstv %s864
    %v866 = vmul.f32 %v854, 0.0009765625
    %v867 = vmul.f32 %v865, 0.0009765625
    %v868 = vmul.f32 %v866, %v866
    %v869 = vsub.f32 %v867, %v868
    %v870 = vsub.f32 %v843, %v866
    %v871 = vadd.f32 %v869, 1e-05
    %v872 = vrsqrt.pop %v871
    %v873 = vmul.f32 %v872, %v871
    %v874 = vmul.f32 %v873, %v872
    %v875 = vmul.f32 0.5, %v874
    %v876 = vsub.f32 1.5, %v875
    %v877 = vmul.f32 %v872, %v876
    %vm878 = vweird.f32 %v871
    %vm879 = vweird.f32 %v872
    %vm880 = vmor %vm878, %vm879
    %v881 = vsel %vm880, %v872, %v877
    %v882 = vmul.f32 %v870, %v881
    %v883 = vmul.f32 %v882, %v382
    %v884 = vadd.f32 %v883, %v383
    %885 = vset.pattern.permute.xlu0 8
    %886 = vperm.xlu0 %885, %v101
    %v887 = vpop.permute.xlu0 %886
    %v889 = vmul.f32 %v887, %v139
    %890 = vset.pattern.permute.xlu0 11
    %891 = vperm.xlu0 %890, %v101
    %v892 = vpop.permute.xlu0 %891
    %v894 = vadd.f32 %v892, %v889
    %895 = vset.pattern.permute.xlu0 9
    %896 = vperm.xlu0 %895, %v101
    %v897 = vpop.permute.xlu0 %896
    %v899 = vmul.f32 %v897, %v145
    %v900 = vadd.f32 %v894, %v899
    %901 = vset.pattern.permute.xlu0 10
    %902 = vperm.xlu0 %901, %v101
    %v903 = vpop.permute.xlu0 %902
    %v905 = vmul.f32 %v903, %v152
    %v906 = vadd.f32 %v900, %v905
    %v907 = vxor.u32 %v906, 2147483648
    %v908 = vmul.f32 %v907, 1.442695
    %v909 = vpow.pop %v908
    %v910 = vadd.f32 %v909, 1.0
    %v911 = vrcp.pop %v910
    %v912 = vmul.f32 %v910, %v911
    %v913 = vsub.f32 1.0, %v912
    %v914 = vmul.f32 %v911, %v913
    %v915 = vadd.f32 %v911, %v914
    %vm916 = vweird.f32 %v910
    %vm917 = vweird.f32 %v911
    %vm918 = vmor %vm916, %vm917
    %v919 = vsel %vm918, %v911, %v915
    %v920 = vand.u32 2147483647, %v910
    %vm921 = vcmp.eq.f32.partialorder %v920, 8.507059e+37
    %v922 = vand.u32 %v910, 2147483648
    %v923 = vor.u32 1.1754944e-38, %v922
    %v924 = vsel %vm921, %v923, %v919
    %v925 = vmul.f32 1.0, %v924
    %v926 = vmul.f32 %v884, %v925
    %v927 = vadd.f32 %v165, %v926
    %928 = vadd.xlane.f32.xlu0 %v844
    %v929 = vpop.xlane.xlu0 %928
    %v930 = vrot.slane %v929, 4
    %v931 = vadd.f32 %v929, %v930
    %v932 = vrot.slane %v931, 2
    %v933 = vadd.f32 %v931, %v932
    %v934 = vrot.slane %v933, 1
    %v935 = vadd.f32 %v933, %v934
    %s936 = vtos %v935
    %v937 = vstv %s936
    %v938 = vmul.f32 %v844, %v844
    %939 = vadd.xlane.f32.xlu0 %v938
    %v940 = vpop.xlane.xlu0 %939
    %v941 = vrot.slane %v940, 4
    %v942 = vadd.f32 %v940, %v941
    %v943 = vrot.slane %v942, 2
    %v944 = vadd.f32 %v942, %v943
    %v945 = vrot.slane %v944, 1
    %v946 = vadd.f32 %v944, %v945
    %s947 = vtos %v946
    %v948 = vstv %s947
    %v949 = vmul.f32 %v937, 0.0009765625
    %v950 = vmul.f32 %v948, 0.0009765625
    %v951 = vmul.f32 %v949, %v949
    %v952 = vsub.f32 %v950, %v951
    %v953 = vsub.f32 %v844, %v949
    %v954 = vadd.f32 %v952, 1e-05
    %v955 = vrsqrt.pop %v954
    %v956 = vmul.f32 %v955, %v954
    %v957 = vmul.f32 %v956, %v955
    %v958 = vmul.f32 0.5, %v957
    %v959 = vsub.f32 1.5, %v958
    %v960 = vmul.f32 %v955, %v959
    %vm961 = vweird.f32 %v954
    %vm962 = vweird.f32 %v955
    %vm963 = vmor %vm961, %vm962
    %v964 = vsel %vm963, %v955, %v960
    %v965 = vmul.f32 %v953, %v964
    %v966 = vmul.f32 %v965, %v382
    %v967 = vadd.f32 %v966, %v383
    %v968 = vmul.f32 %v887, %v166
    %v969 = vadd.f32 %v892, %v968
    %v970 = vmul.f32 %v897, %v168
    %v971 = vadd.f32 %v969, %v970
    %v972 = vmul.f32 %v903, %v171
    %v973 = vadd.f32 %v971, %v972
    %v974 = vxor.u32 %v973, 2147483648
    %v975 = vmul.f32 %v974, 1.442695
    %v976 = vpow.pop %v975
    %v977 = vadd.f32 %v976, 1.0
    %v978 = vrcp.pop %v977
    %v979 = vmul.f32 %v977, %v978
    %v980 = vsub.f32 1.0, %v979
    %v981 = vmul.f32 %v978, %v980
    %v982 = vadd.f32 %v978, %v981
    %vm983 = vweird.f32 %v977
    %vm984 = vweird.f32 %v978
    %vm985 = vmor %vm983, %vm984
    %v986 = vsel %vm985, %v978, %v982
    %v987 = vand.u32 2147483647, %v977
    %vm988 = vcmp.eq.f32.partialorder %v987, 8.507059e+37
    %v989 = vand.u32 %v977, 2147483648
    %v990 = vor.u32 1.1754944e-38, %v989
    %v991 = vsel %vm988, %v990, %v986
    %v992 = vmul.f32 1.0, %v991
    %v993 = vmul.f32 %v967, %v992
    %v994 = vadd.f32 %v179, %v993
    %s995 = scalar_lea.vmem [#allocation8], 384
    %v996 = vld [vmem:[%s995] sm:$0xf]
    %v997 = vld [vmem:[%s995 + $0x4] sm:$0xf]
    %v998 = vld [vmem:[%s995 + $0x8] sm:$0xf]
    %v999 = vld [vmem:[%s995 + $0xc] sm:$0xf]
    %v1000 = vld [vmem:[%s995 + $0x10] sm:$0xf]
    %v1001 = vld [vmem:[%s995 + $0x14] sm:$0xf]
    %v1002 = vld [vmem:[%s995 + $0x18] sm:$0xf]
    %v1003 = vld [vmem:[%s995 + $0x1c] sm:$0xf]
    %v1004 = vld [vmem:[%s995 + $0x20] sm:$0xf]
    %v1005 = vld [vmem:[%s995 + $0x24] sm:$0xf]
    %v1006 = vld [vmem:[%s995 + $0x28] sm:$0xf]
    %v1007 = vld [vmem:[%s995 + $0x2c] sm:$0xf]
    %v1008 = vld [vmem:[%s995 + $0x30] sm:$0xf]
    %v1009 = vld [vmem:[%s995 + $0x34] sm:$0xf]
    %v1010 = vld [vmem:[%s995 + $0x38] sm:$0xf]
    %v1011 = vld [vmem:[%s995 + $0x3c] sm:$0xf]
    %v1012 = vunpack.c.l.bf16 %v996
    %v1013 = vunpack.c.l.bf16 %v997
    %v1014 = vunpack.c.l.bf16 %v998
    %v1015 = vunpack.c.l.bf16 %v999
    %v1016 = vunpack.c.l.bf16 %v1000
    %v1017 = vunpack.c.l.bf16 %v1001
    %v1018 = vunpack.c.l.bf16 %v1002
    %v1019 = vunpack.c.l.bf16 %v1003
    %v1020 = vunpack.c.l.bf16 %v1004
    %v1021 = vunpack.c.l.bf16 %v1005
    %v1022 = vunpack.c.l.bf16 %v1006
    %v1023 = vunpack.c.l.bf16 %v1007
    %v1024 = vunpack.c.l.bf16 %v1008
    %v1025 = vunpack.c.l.bf16 %v1009
    %v1026 = vunpack.c.l.bf16 %v1010
    %v1027 = vunpack.c.l.bf16 %v1011
    %s1028 = scalar_lea.vmem [#allocation8], 448
    %v1029 = vld [vmem:[%s1028] sm:$0xf]
    %v1030 = vld [vmem:[%s1028 + $0x4] sm:$0xf]
    %v1031 = vld [vmem:[%s1028 + $0x8] sm:$0xf]
    %v1032 = vld [vmem:[%s1028 + $0xc] sm:$0xf]
    %v1033 = vld [vmem:[%s1028 + $0x10] sm:$0xf]
    %v1034 = vld [vmem:[%s1028 + $0x14] sm:$0xf]
    %v1035 = vld [vmem:[%s1028 + $0x18] sm:$0xf]
    %v1036 = vld [vmem:[%s1028 + $0x1c] sm:$0xf]
    %v1037 = vld [vmem:[%s1028 + $0x20] sm:$0xf]
    %v1038 = vld [vmem:[%s1028 + $0x24] sm:$0xf]
    %v1039 = vld [vmem:[%s1028 + $0x28] sm:$0xf]
    %v1040 = vld [vmem:[%s1028 + $0x2c] sm:$0xf]
    %v1041 = vld [vmem:[%s1028 + $0x30] sm:$0xf]
    %v1042 = vld [vmem:[%s1028 + $0x34] sm:$0xf]
    %v1043 = vld [vmem:[%s1028 + $0x38] sm:$0xf]
    %v1044 = vld [vmem:[%s1028 + $0x3c] sm:$0xf]
    %v1045 = vunpack.c.l.bf16 %v1029
    %v1046 = vunpack.c.l.bf16 %v1030
    %v1047 = vunpack.c.l.bf16 %v1031
    %v1048 = vunpack.c.l.bf16 %v1032
    %v1049 = vunpack.c.l.bf16 %v1033
    %v1050 = vunpack.c.l.bf16 %v1034
    %v1051 = vunpack.c.l.bf16 %v1035
    %v1052 = vunpack.c.l.bf16 %v1036
    %v1053 = vunpack.c.l.bf16 %v1037
    %v1054 = vunpack.c.l.bf16 %v1038
    %v1055 = vunpack.c.l.bf16 %v1039
    %v1056 = vunpack.c.l.bf16 %v1040
    %v1057 = vunpack.c.l.bf16 %v1041
    %v1058 = vunpack.c.l.bf16 %v1042
    %v1059 = vunpack.c.l.bf16 %v1043
    %v1060 = vunpack.c.l.bf16 %v1044
    %s1061 = scalar_lea.vmem [#allocation8], 512
    %v1062 = vld [vmem:[%s1061] sm:$0xf]
    %v1063 = vld [vmem:[%s1061 + $0x4] sm:$0xf]
    %v1064 = vld [vmem:[%s1061 + $0x8] sm:$0xf]
    %v1065 = vld [vmem:[%s1061 + $0xc] sm:$0xf]
    %v1066 = vld [vmem:[%s1061 + $0x10] sm:$0xf]
    %v1067 = vld [vmem:[%s1061 + $0x14] sm:$0xf]
    %v1068 = vld [vmem:[%s1061 + $0x18] sm:$0xf]
    %v1069 = vld [vmem:[%s1061 + $0x1c] sm:$0xf]
    %v1070 = vld [vmem:[%s1061 + $0x20] sm:$0xf]
    %v1071 = vld [vmem:[%s1061 + $0x24] sm:$0xf]
    %v1072 = vld [vmem:[%s1061 + $0x28] sm:$0xf]
    %v1073 = vld [vmem:[%s1061 + $0x2c] sm:$0xf]
    %v1074 = vld [vmem:[%s1061 + $0x30] sm:$0xf]
    %v1075 = vld [vmem:[%s1061 + $0x34] sm:$0xf]
    %v1076 = vld [vmem:[%s1061 + $0x38] sm:$0xf]
    %v1077 = vld [vmem:[%s1061 + $0x3c] sm:$0xf]
    %v1078 = vunpack.c.l.bf16 %v1062
    %v1079 = vunpack.c.l.bf16 %v1063
    %v1080 = vunpack.c.l.bf16 %v1064
    %v1081 = vunpack.c.l.bf16 %v1065
    %v1082 = vunpack.c.l.bf16 %v1066
    %v1083 = vunpack.c.l.bf16 %v1067
    %v1084 = vunpack.c.l.bf16 %v1068
    %v1085 = vunpack.c.l.bf16 %v1069
    %v1086 = vunpack.c.l.bf16 %v1070
    %v1087 = vunpack.c.l.bf16 %v1071
    %v1088 = vunpack.c.l.bf16 %v1072
    %v1089 = vunpack.c.l.bf16 %v1073
    %v1090 = vunpack.c.l.bf16 %v1074
    %v1091 = vunpack.c.l.bf16 %v1075
    %v1092 = vunpack.c.l.bf16 %v1076
    %v1093 = vunpack.c.l.bf16 %v1077
    %s1094 = scalar_lea.vmem [#allocation8], 576
    %v1095 = vld [vmem:[%s1094] sm:$0xf]
    %v1096 = vld [vmem:[%s1094 + $0x4] sm:$0xf]
    %v1097 = vld [vmem:[%s1094 + $0x8] sm:$0xf]
    %v1098 = vld [vmem:[%s1094 + $0xc] sm:$0xf]
    %v1099 = vld [vmem:[%s1094 + $0x10] sm:$0xf]
    %v1100 = vld [vmem:[%s1094 + $0x14] sm:$0xf]
    %v1101 = vld [vmem:[%s1094 + $0x18] sm:$0xf]
    %v1102 = vld [vmem:[%s1094 + $0x1c] sm:$0xf]
    %v1103 = vld [vmem:[%s1094 + $0x20] sm:$0xf]
    %v1104 = vld [vmem:[%s1094 + $0x24] sm:$0xf]
    %v1105 = vld [vmem:[%s1094 + $0x28] sm:$0xf]
    %v1106 = vld [vmem:[%s1094 + $0x2c] sm:$0xf]
    %v1107 = vld [vmem:[%s1094 + $0x30] sm:$0xf]
    %v1108 = vld [vmem:[%s1094 + $0x34] sm:$0xf]
    %v1109 = vld [vmem:[%s1094 + $0x38] sm:$0xf]
    %v1110 = vld [vmem:[%s1094 + $0x3c] sm:$0xf]
    %v1111 = vunpack.c.l.bf16 %v1095
    %v1112 = vunpack.c.l.bf16 %v1096
    %v1113 = vunpack.c.l.bf16 %v1097
    %v1114 = vunpack.c.l.bf16 %v1098
    %v1115 = vunpack.c.l.bf16 %v1099
    %v1116 = vunpack.c.l.bf16 %v1100
    %v1117 = vunpack.c.l.bf16 %v1101
    %v1118 = vunpack.c.l.bf16 %v1102
    %v1119 = vunpack.c.l.bf16 %v1103
    %v1120 = vunpack.c.l.bf16 %v1104
    %v1121 = vunpack.c.l.bf16 %v1105
    %v1122 = vunpack.c.l.bf16 %v1106
    %v1123 = vunpack.c.l.bf16 %v1107
    %v1124 = vunpack.c.l.bf16 %v1108
    %v1125 = vunpack.c.l.bf16 %v1109
    %v1126 = vunpack.c.l.bf16 %v1110
    %s1127 = scalar_lea.vmem [#allocation8], 640
    %v1128 = vld [vmem:[%s1127] sm:$0xf]
    %v1129 = vld [vmem:[%s1127 + $0x4] sm:$0xf]
    %v1130 = vld [vmem:[%s1127 + $0x8] sm:$0xf]
    %v1131 = vld [vmem:[%s1127 + $0xc] sm:$0xf]
    %v1132 = vld [vmem:[%s1127 + $0x10] sm:$0xf]
    %v1133 = vld [vmem:[%s1127 + $0x14] sm:$0xf]
    %v1134 = vld [vmem:[%s1127 + $0x18] sm:$0xf]
    %v1135 = vld [vmem:[%s1127 + $0x1c] sm:$0xf]
    %v1136 = vld [vmem:[%s1127 + $0x20] sm:$0xf]
    %v1137 = vld [vmem:[%s1127 + $0x24] sm:$0xf]
    %v1138 = vld [vmem:[%s1127 + $0x28] sm:$0xf]
    %v1139 = vld [vmem:[%s1127 + $0x2c] sm:$0xf]
    %v1140 = vld [vmem:[%s1127 + $0x30] sm:$0xf]
    %v1141 = vld [vmem:[%s1127 + $0x34] sm:$0xf]
    %v1142 = vld [vmem:[%s1127 + $0x38] sm:$0xf]
    %v1143 = vld [vmem:[%s1127 + $0x3c] sm:$0xf]
    %v1144 = vunpack.c.l.bf16 %v1128
    %v1145 = vunpack.c.l.bf16 %v1129
    %v1146 = vunpack.c.l.bf16 %v1130
    %v1147 = vunpack.c.l.bf16 %v1131
    %v1148 = vunpack.c.l.bf16 %v1132
    %v1149 = vunpack.c.l.bf16 %v1133
    %v1150 = vunpack.c.l.bf16 %v1134
    %v1151 = vunpack.c.l.bf16 %v1135
    %v1152 = vunpack.c.l.bf16 %v1136
    %v1153 = vunpack.c.l.bf16 %v1137
    %v1154 = vunpack.c.l.bf16 %v1138
    %v1155 = vunpack.c.l.bf16 %v1139
    %v1156 = vunpack.c.l.bf16 %v1140
    %v1157 = vunpack.c.l.bf16 %v1141
    %v1158 = vunpack.c.l.bf16 %v1142
    %v1159 = vunpack.c.l.bf16 %v1143
    %s1160 = scalar_lea.vmem [#allocation8], 704
    %v1161 = vld [vmem:[%s1160] sm:$0xf]
    %v1162 = vld [vmem:[%s1160 + $0x4] sm:$0xf]
    %v1163 = vld [vmem:[%s1160 + $0x8] sm:$0xf]
    %v1164 = vld [vmem:[%s1160 + $0xc] sm:$0xf]
    %v1165 = vld [vmem:[%s1160 + $0x10] sm:$0xf]
    %v1166 = vld [vmem:[%s1160 + $0x14] sm:$0xf]
    %v1167 = vld [vmem:[%s1160 + $0x18] sm:$0xf]
    %v1168 = vld [vmem:[%s1160 + $0x1c] sm:$0xf]
    %v1169 = vld [vmem:[%s1160 + $0x20] sm:$0xf]
    %v1170 = vld [vmem:[%s1160 + $0x24] sm:$0xf]
    %v1171 = vld [vmem:[%s1160 + $0x28] sm:$0xf]
    %v1172 = vld [vmem:[%s1160 + $0x2c] sm:$0xf]
    %v1173 = vld [vmem:[%s1160 + $0x30] sm:$0xf]
    %v1174 = vld [vmem:[%s1160 + $0x34] sm:$0xf]
    %v1175 = vld [vmem:[%s1160 + $0x38] sm:$0xf]
    %v1176 = vld [vmem:[%s1160 + $0x3c] sm:$0xf]
    %v1177 = vunpack.c.l.bf16 %v1161
    %v1178 = vunpack.c.l.bf16 %v1162
    %v1179 = vunpack.c.l.bf16 %v1163
    %v1180 = vunpack.c.l.bf16 %v1164
    %v1181 = vunpack.c.l.bf16 %v1165
    %v1182 = vunpack.c.l.bf16 %v1166
    %v1183 = vunpack.c.l.bf16 %v1167
    %v1184 = vunpack.c.l.bf16 %v1168
    %v1185 = vunpack.c.l.bf16 %v1169
    %v1186 = vunpack.c.l.bf16 %v1170
    %v1187 = vunpack.c.l.bf16 %v1171
    %v1188 = vunpack.c.l.bf16 %v1172
    %v1189 = vunpack.c.l.bf16 %v1173
    %v1190 = vunpack.c.l.bf16 %v1174
    %v1191 = vunpack.c.l.bf16 %v1175
    %v1192 = vunpack.c.l.bf16 %v1176
    %s1193 = scalar_lea.vmem [#allocation7], 32
    %v1194 = vld [vmem:[%s1193] sm:$0xff]
    %v1195 = vld [vmem:[%s1193 + $0x8] sm:$0xff]
    %v1196 = vld [vmem:[%s1193 + $0x10] sm:$0xff]
    %v1197 = vld [vmem:[%s1193 + $0x18] sm:$0xff]
    %v1198 = vld [vmem:[%s3 + $0x9] sm:$0x1]
    %v1199 = vld [vmem:[%s3 + $0xb] sm:$0x1]
    %v1200 = vmul.f32 %v927, 11.313708
    %v1201 = vmul.f32 %v994, 11.313708
    %v1202 = vadd.f32 %v1200, %v102
    %v1203 = vadd.f32 %v1201, %v102
    %1204 = vmatpush.msra.mxu0 %v1027
    %1205 = vmatpush.msra.mxu0 %v1026
    %1206 = vmatpush.msra.mxu0 %v1025
    %1207 = vmatpush.msra.mxu0 %v1024
    %1208 = vmatpush.msra.mxu0 %v1023
    %1209 = vmatpush.msra.mxu0 %v1022
    %1210 = vmatpush.msra.mxu0 %v1021
    %1211 = vmatpush.msra.mxu0 %v1020
    %1212 = vmatpush.msra.mxu0 %v1019
    %1213 = vmatpush.msra.mxu0 %v1018
    %1214 = vmatpush.msra.mxu0 %v1017
    %1215 = vmatpush.msra.mxu0 %v1016
    %1216 = vmatpush.msra.mxu0 %v1015
    %1217 = vmatpush.msra.mxu0 %v1014
    %1218 = vmatpush.msra.mxu0 %v1013
    %1219 = vmatpush.msra.mxu0 %v1012
    %1220 = vmatmul.f32.gmra.mxu0 %v1202
    %v1221 = vpop.f32.mrf.mxu0
    %v1222 = vadd.f32 0.0, %v1221
    %1223 = vmatmul.f32.gmra.mxu0 %v1203
    %v1224 = vpop.f32.mrf.mxu0
    %v1225 = vadd.f32 0.0, %v1224
    %1226 = vdwg.mxu0
    %1227 = vmatpush.msra.mxu0 %v1060
    %1228 = vmatpush.msra.mxu0 %v1059
    %1229 = vmatpush.msra.mxu0 %v1058
    %1230 = vmatpush.msra.mxu0 %v1057
    %1231 = vmatpush.msra.mxu0 %v1056
    %1232 = vmatpush.msra.mxu0 %v1055
    %1233 = vmatpush.msra.mxu0 %v1054
    %1234 = vmatpush.msra.mxu0 %v1053
    %1235 = vmatpush.msra.mxu0 %v1052
    %1236 = vmatpush.msra.mxu0 %v1051
    %1237 = vmatpush.msra.mxu0 %v1050
    %1238 = vmatpush.msra.mxu0 %v1049
    %1239 = vmatpush.msra.mxu0 %v1048
    %1240 = vmatpush.msra.mxu0 %v1047
    %1241 = vmatpush.msra.mxu0 %v1046
    %1242 = vmatpush.msra.mxu0 %v1045
    %1243 = vmatmul.f32.gmra.mxu0 %v1202
    %v1244 = vpop.f32.mrf.mxu0
    %v1245 = vadd.f32 0.0, %v1244
    %1246 = vmatmul.f32.gmra.mxu0 %v1203
    %v1247 = vpop.f32.mrf.mxu0
    %v1248 = vadd.f32 0.0, %v1247
    %1249 = vdwg.mxu0
    %1250 = vmatpush.msra.mxu0 %v1093
    %1251 = vmatpush.msra.mxu0 %v1092
    %1252 = vmatpush.msra.mxu0 %v1091
    %1253 = vmatpush.msra.mxu0 %v1090
    %1254 = vmatpush.msra.mxu0 %v1089
    %1255 = vmatpush.msra.mxu0 %v1088
    %1256 = vmatpush.msra.mxu0 %v1087
    %1257 = vmatpush.msra.mxu0 %v1086
    %1258 = vmatpush.msra.mxu0 %v1085
    %1259 = vmatpush.msra.mxu0 %v1084
    %1260 = vmatpush.msra.mxu0 %v1083
    %1261 = vmatpush.msra.mxu0 %v1082
    %1262 = vmatpush.msra.mxu0 %v1081
    %1263 = vmatpush.msra.mxu0 %v1080
    %1264 = vmatpush.msra.mxu0 %v1079
    %1265 = vmatpush.msra.mxu0 %v1078
    %1266 = vmatmul.f32.gmra.mxu0 %v1202
    %v1267 = vpop.f32.mrf.mxu0
    %v1268 = vadd.f32 0.0, %v1267
    %1269 = vmatmul.f32.gmra.mxu0 %v1203
    %v1270 = vpop.f32.mrf.mxu0
    %v1271 = vadd.f32 0.0, %v1270
    %1272 = vdwg.mxu0
    %v1274 = vsel %vm459, %v1222, 0
    %v1277 = vsel %vm459, %v1225, 0
    %v1280 = vsel %vm459, %v1245, 0
    %v1283 = vsel %vm459, %v1248, 0
    %1285 = vmatpush.xpose.msra.mxu0 0.0
    %1286 = vmatpush.xpose.msra.mxu0 0.0
    %1287 = vmatpush.xpose.msra.mxu0 0.0
    %1288 = vmatpush.xpose.msra.mxu0 0.0
    %1289 = vmatpush.xpose.msra.mxu0 0.0
    %1290 = vmatpush.xpose.msra.mxu0 0.0
    %1291 = vmatpush.xpose.msra.mxu0 0.0
    %1292 = vmatpush.xpose.msra.mxu0 0.0
    %1293 = vmatpush.xpose.msra.mxu0 0.0
    %1294 = vmatpush.xpose.msra.mxu0 0.0
    %1295 = vmatpush.xpose.msra.mxu0 0.0
    %1296 = vmatpush.xpose.msra.mxu0 0.0
    %1297 = vmatpush.xpose.msra.mxu0 0.0
    %1298 = vmatpush.xpose.msra.mxu0 0.0
    %1299 = vmatpush.xpose.msra.mxu0 %v1283
    %1300 = vmatpush.xpose.msra.mxu0 %v1280
    %1301 = vmatmul.f32.gmra.mxu0 %v1274
    %v1302 = vpop.f32.mrf.mxu0
    %v1303 = vadd.f32 0.0, %v1302
    %1304 = vmatmul.f32.gmra.mxu0 %v1277
    %v1305 = vpop.f32.mrf.mxu0
    %v1306 = vadd.f32 0.0, %v1305
    %1307 = vdwg.mxu0
    %v1308 = vmul.f32 %v1303, 0.125
    %v1309 = vmul.f32 %v1306, 0.125
    %v1310 = vadd.f32 %v1308, %v181
    %v1311 = vadd.f32 %v1309, %v182
    %v1312 = vsel %vm499, %v1310, -inf
    %1313 = vmax.xlane.f32.xlu0 %v1312
    %v1314 = vpop.xlane.xlu0 %1313
    %v1315 = vsel %vm499, %v1311, -inf
    %1316 = vmax.xlane.f32.xlu0 %v1315
    %v1317 = vpop.xlane.xlu0 %1316
    %v1318 = vsub.f32 %v1310, %v1314
    %v1319 = vsub.f32 %v1311, %v1317
    %v1320 = vmul.f32 %v1318, 1.442695
    %v1321 = vpow.pop %v1320
    %v1322 = vmul.f32 %v1319, 1.442695
    %v1323 = vpow.pop %v1322
    %v1324 = vsel %vm499, %v1321, 0.0
    %1325 = vadd.xlane.f32.xlu0 %v1324
    %v1326 = vpop.xlane.xlu0 %1325
    %v1327 = vsel %vm499, %v1323, 0.0
    %1328 = vadd.xlane.f32.xlu0 %v1327
    %v1329 = vpop.xlane.xlu0 %1328
    %v1330 = vrcp.pop %v1326
    %v1331 = vrcp.pop %v1329
    %v1332 = vmul.f32 %v1321, %v1330
    %v1333 = vmul.f32 %v1323, %v1331
    %v1335 = vsel %vm499, %v1332, 0
    %v1338 = vsel %vm499, %v1333, 0
    %1340 = vmatpush.msra.mxu0 0.0
    %1341 = vmatpush.msra.mxu0 0.0
    %1342 = vmatpush.msra.mxu0 0.0
    %1343 = vmatpush.msra.mxu0 0.0
    %1344 = vmatpush.msra.mxu0 0.0
    %1345 = vmatpush.msra.mxu0 0.0
    %1346 = vmatpush.msra.mxu0 0.0
    %1347 = vmatpush.msra.mxu0 0.0
    %1348 = vmatpush.msra.mxu0 0.0
    %1349 = vmatpush.msra.mxu0 0.0
    %1350 = vmatpush.msra.mxu0 0.0
    %1351 = vmatpush.msra.mxu0 0.0
    %1352 = vmatpush.msra.mxu0 0.0
    %1353 = vmatpush.msra.mxu0 0.0
    %1354 = vmatpush.msra.mxu0 %v1271
    %1355 = vmatpush.msra.mxu0 %v1268
    %1356 = vmatmul.f32.gmra.mxu0 %v1335
    %v1357 = vpop.f32.mrf.mxu0
    %v1358 = vadd.f32 0.0, %v1357
    %1359 = vmatmul.f32.gmra.mxu0 %v1338
    %v1360 = vpop.f32.mrf.mxu0
    %v1361 = vadd.f32 0.0, %v1360
    %1362 = vdwg.mxu0
    %1363 = vrot.lane.b32.xlu0 %v1222, 64
    %v1364 = vpop.permute.xlu0 %1363
    %1365 = vrot.lane.b32.xlu0 %v1225, 64
    %v1366 = vpop.permute.xlu0 %1365
    %1367 = vrot.lane.b32.xlu0 %v1245, 64
    %v1368 = vpop.permute.xlu0 %1367
    %1369 = vrot.lane.b32.xlu0 %v1248, 64
    %v1370 = vpop.permute.xlu0 %1369
    %v1371 = vsel %vm459, %v1364, 0
    %v1373 = vsel %vm459, %v1366, 0
    %v1375 = vsel %vm459, %v1368, 0
    %v1377 = vsel %vm459, %v1370, 0
    %1379 = vmatpush.xpose.msra.mxu0 0.0
    %1380 = vmatpush.xpose.msra.mxu0 0.0
    %1381 = vmatpush.xpose.msra.mxu0 0.0
    %1382 = vmatpush.xpose.msra.mxu0 0.0
    %1383 = vmatpush.xpose.msra.mxu0 0.0
    %1384 = vmatpush.xpose.msra.mxu0 0.0
    %1385 = vmatpush.xpose.msra.mxu0 0.0
    %1386 = vmatpush.xpose.msra.mxu0 0.0
    %1387 = vmatpush.xpose.msra.mxu0 0.0
    %1388 = vmatpush.xpose.msra.mxu0 0.0
    %1389 = vmatpush.xpose.msra.mxu0 0.0
    %1390 = vmatpush.xpose.msra.mxu0 0.0
    %1391 = vmatpush.xpose.msra.mxu0 0.0
    %1392 = vmatpush.xpose.msra.mxu0 0.0
    %1393 = vmatpush.xpose.msra.mxu0 %v1377
    %1394 = vmatpush.xpose.msra.mxu0 %v1375
    %1395 = vmatmul.f32.gmra.mxu0 %v1371
    %v1396 = vpop.f32.mrf.mxu0
    %v1397 = vadd.f32 0.0, %v1396
    %1398 = vmatmul.f32.gmra.mxu0 %v1373
    %v1399 = vpop.f32.mrf.mxu0
    %v1400 = vadd.f32 0.0, %v1399
    %1401 = vdwg.mxu0
    %v1402 = vmul.f32 %v1397, 0.125
    %v1403 = vmul.f32 %v1400, 0.125
    %v1404 = vadd.f32 %v1402, %v181
    %v1405 = vadd.f32 %v1403, %v182
    %v1406 = vsel %vm499, %v1404, -inf
    %1407 = vmax.xlane.f32.xlu0 %v1406
    %v1408 = vpop.xlane.xlu0 %1407
    %v1409 = vsel %vm499, %v1405, -inf
    %1410 = vmax.xlane.f32.xlu0 %v1409
    %v1411 = vpop.xlane.xlu0 %1410
    %v1412 = vsub.f32 %v1404, %v1408
    %v1413 = vsub.f32 %v1405, %v1411
    %v1414 = vmul.f32 %v1412, 1.442695
    %v1415 = vpow.pop %v1414
    %v1416 = vmul.f32 %v1413, 1.442695
    %v1417 = vpow.pop %v1416
    %v1418 = vsel %vm499, %v1415, 0.0
    %1419 = vadd.xlane.f32.xlu0 %v1418
    %v1420 = vpop.xlane.xlu0 %1419
    %v1421 = vsel %vm499, %v1417, 0.0
    %1422 = vadd.xlane.f32.xlu0 %v1421
    %v1423 = vpop.xlane.xlu0 %1422
    %v1424 = vrcp.pop %v1420
    %v1425 = vrcp.pop %v1423
    %v1426 = vmul.f32 %v1415, %v1424
    %v1427 = vmul.f32 %v1417, %v1425
    %1430 = vrot.lane.b32.xlu0 %v1268, 64
    %v1431 = vpop.permute.xlu0 %1430
    %1432 = vrot.lane.b32.xlu0 %v1271, 64
    %v1433 = vpop.permute.xlu0 %1432
    %v1437 = vsel %vm499, %v1426, 0
    %v1440 = vsel %vm499, %v1427, 0
    %1442 = vmatpush.msra.mxu0 0.0
    %1443 = vmatpush.msra.mxu0 0.0
    %1444 = vmatpush.msra.mxu0 0.0
    %1445 = vmatpush.msra.mxu0 0.0
    %1446 = vmatpush.msra.mxu0 0.0
    %1447 = vmatpush.msra.mxu0 0.0
    %1448 = vmatpush.msra.mxu0 0.0
    %1449 = vmatpush.msra.mxu0 0.0
    %1450 = vmatpush.msra.mxu0 0.0
    %1451 = vmatpush.msra.mxu0 0.0
    %1452 = vmatpush.msra.mxu0 0.0
    %1453 = vmatpush.msra.mxu0 0.0
    %1454 = vmatpush.msra.mxu0 0.0
    %1455 = vmatpush.msra.mxu0 0.0
    %1456 = vmatpush.msra.mxu0 %v1433
    %1457 = vmatpush.msra.mxu0 %v1431
    %1458 = vmatmul.f32.gmra.mxu0 %v1437
    %v1459 = vpop.f32.mrf.mxu0
    %v1460 = vadd.f32 0.0, %v1459
    %1461 = vmatmul.f32.gmra.mxu0 %v1440
    %v1462 = vpop.f32.mrf.mxu0
    %v1463 = vadd.f32 0.0, %v1462
    %1464 = vdwg.mxu0
    %v1466 = vsel %vm459, %v1460, 0
    %v1469 = vsel %vm459, %v1463, 0
    %1471 = vmatpush.msra.mxu0 0.0
    %1472 = vmatpush.msra.mxu0 0.0
    %1473 = vmatpush.msra.mxu0 0.0
    %1474 = vmatpush.msra.mxu0 0.0
    %1475 = vmatpush.msra.mxu0 0.0
    %1476 = vmatpush.msra.mxu0 0.0
    %1477 = vmatpush.msra.mxu0 0.0
    %1478 = vmatpush.msra.mxu0 0.0
    %1479 = vmatpush.msra.mxu0 %v1126
    %1480 = vmatpush.msra.mxu0 %v1125
    %1481 = vmatpush.msra.mxu0 %v1124
    %1482 = vmatpush.msra.mxu0 %v1123
    %1483 = vmatpush.msra.mxu0 %v1122
    %1484 = vmatpush.msra.mxu0 %v1121
    %1485 = vmatpush.msra.mxu0 %v1120
    %1486 = vmatpush.msra.mxu0 %v1119
    %1487 = vmatmul.f32.gmra.mxu0 %v1466
    %v1488 = vpop.f32.mrf.mxu0
    %v1489 = vadd.f32 0.0, %v1488
    %1490 = vmatmul.f32.gmra.mxu0 %v1469
    %v1491 = vpop.f32.mrf.mxu0
    %v1492 = vadd.f32 0.0, %v1491
    %1493 = vdwg.mxu0
    %v1495 = vsel %vm459, %v1358, 0
    %v1498 = vsel %vm459, %v1361, 0
    %1500 = vmatpush.msra.mxu0 0.0
    %1501 = vmatpush.msra.mxu0 0.0
    %1502 = vmatpush.msra.mxu0 0.0
    %1503 = vmatpush.msra.mxu0 0.0
    %1504 = vmatpush.msra.mxu0 0.0
    %1505 = vmatpush.msra.mxu0 0.0
    %1506 = vmatpush.msra.mxu0 0.0
    %1507 = vmatpush.msra.mxu0 0.0
    %1508 = vmatpush.msra.mxu0 %v1118
    %1509 = vmatpush.msra.mxu0 %v1117
    %1510 = vmatpush.msra.mxu0 %v1116
    %1511 = vmatpush.msra.mxu0 %v1115
    %1512 = vmatpush.msra.mxu0 %v1114
    %1513 = vmatpush.msra.mxu0 %v1113
    %1514 = vmatpush.msra.mxu0 %v1112
    %1515 = vmatpush.msra.mxu0 %v1111
    %1516 = vmatmul.f32.gmra.mxu0 %v1495
    %v1517 = vpop.f32.mrf.mxu0
    %v1518 = vadd.f32 %v1489, %v1517
    %1519 = vmatmul.f32.gmra.mxu0 %v1498
    %v1520 = vpop.f32.mrf.mxu0
    %v1521 = vadd.f32 %v1492, %v1520
    %1522 = vdwg.mxu0
    %v1523 = vadd.f32 %v1518, %v1202
    %v1524 = vadd.f32 %v1521, %v1203
    %1525 = vadd.xlane.f32.xlu0 %v1523
    %v1526 = vpop.xlane.xlu0 %1525
    %v1527 = vrot.slane %v1526, 4
    %v1528 = vadd.f32 %v1526, %v1527
    %v1529 = vrot.slane %v1528, 2
    %v1530 = vadd.f32 %v1528, %v1529
    %v1531 = vrot.slane %v1530, 1
    %v1532 = vadd.f32 %v1530, %v1531
    %s1533 = vtos %v1532
    %v1534 = vstv %s1533
    %v1535 = vmul.f32 %v1523, %v1523
    %1536 = vadd.xlane.f32.xlu0 %v1535
    %v1537 = vpop.xlane.xlu0 %1536
    %v1538 = vrot.slane %v1537, 4
    %v1539 = vadd.f32 %v1537, %v1538
    %v1540 = vrot.slane %v1539, 2
    %v1541 = vadd.f32 %v1539, %v1540
    %v1542 = vrot.slane %v1541, 1
    %v1543 = vadd.f32 %v1541, %v1542
    %s1544 = vtos %v1543
    %v1545 = vstv %s1544
    %v1546 = vmul.f32 %v1534, 0.0009765625
    %v1547 = vmul.f32 %v1545, 0.0009765625
    %v1548 = vmul.f32 %v1546, %v1546
    %v1549 = vsub.f32 %v1547, %v1548
    %v1550 = vsub.f32 %v1523, %v1546
    %v1551 = vadd.f32 %v1549, 1e-05
    %v1552 = vrsqrt.pop %v1551
    %v1553 = vmul.f32 %v1552, %v1551
    %v1554 = vmul.f32 %v1553, %v1552
    %v1555 = vmul.f32 0.5, %v1554
    %v1556 = vsub.f32 1.5, %v1555
    %v1557 = vmul.f32 %v1552, %v1556
    %vm1558 = vweird.f32 %v1551
    %vm1559 = vweird.f32 %v1552
    %vm1560 = vmor %vm1558, %vm1559
    %v1561 = vsel %vm1560, %v1552, %v1557
    %v1562 = vmul.f32 %v1550, %v1561
    %v1563 = vmul.f32 %v1562, %v1194
    %v1564 = vadd.f32 %v1563, %v1195
    %1565 = vadd.xlane.f32.xlu0 %v1524
    %v1566 = vpop.xlane.xlu0 %1565
    %v1567 = vrot.slane %v1566, 4
    %v1568 = vadd.f32 %v1566, %v1567
    %v1569 = vrot.slane %v1568, 2
    %v1570 = vadd.f32 %v1568, %v1569
    %v1571 = vrot.slane %v1570, 1
    %v1572 = vadd.f32 %v1570, %v1571
    %s1573 = vtos %v1572
    %v1574 = vstv %s1573
    %v1575 = vmul.f32 %v1524, %v1524
    %1576 = vadd.xlane.f32.xlu0 %v1575
    %v1577 = vpop.xlane.xlu0 %1576
    %v1578 = vrot.slane %v1577, 4
    %v1579 = vadd.f32 %v1577, %v1578
    %v1580 = vrot.slane %v1579, 2
    %v1581 = vadd.f32 %v1579, %v1580
    %v1582 = vrot.slane %v1581, 1
    %v1583 = vadd.f32 %v1581, %v1582
    %s1584 = vtos %v1583
    %v1585 = vstv %s1584
    %v1586 = vmul.f32 %v1574, 0.0009765625
    %v1587 = vmul.f32 %v1585, 0.0009765625
    %v1588 = vmul.f32 %v1586, %v1586
    %v1589 = vsub.f32 %v1587, %v1588
    %v1590 = vsub.f32 %v1524, %v1586
    %v1591 = vadd.f32 %v1589, 1e-05
    %v1592 = vrsqrt.pop %v1591
    %v1593 = vmul.f32 %v1592, %v1591
    %v1594 = vmul.f32 %v1593, %v1592
    %v1595 = vmul.f32 0.5, %v1594
    %v1596 = vsub.f32 1.5, %v1595
    %v1597 = vmul.f32 %v1592, %v1596
    %vm1598 = vweird.f32 %v1591
    %vm1599 = vweird.f32 %v1592
    %vm1600 = vmor %vm1598, %vm1599
    %v1601 = vsel %vm1600, %v1592, %v1597
    %v1602 = vmul.f32 %v1590, %v1601
    %v1603 = vmul.f32 %v1602, %v1194
    %v1604 = vadd.f32 %v1603, %v1195
    %v1605 = vperm.slane %v1198, 0
    %1606 = vmatpush.msra.mxu0 %v1159
    %1607 = vmatpush.msra.mxu0 %v1158
    %1608 = vmatpush.msra.mxu0 %v1157
    %1609 = vmatpush.msra.mxu0 %v1156
    %1610 = vmatpush.msra.mxu0 %v1155
    %1611 = vmatpush.msra.mxu0 %v1154
    %1612 = vmatpush.msra.mxu0 %v1153
    %1613 = vmatpush.msra.mxu0 %v1152
    %1614 = vmatpush.msra.mxu0 %v1151
    %1615 = vmatpush.msra.mxu0 %v1150
    %1616 = vmatpush.msra.mxu0 %v1149
    %1617 = vmatpush.msra.mxu0 %v1148
    %1618 = vmatpush.msra.mxu0 %v1147
    %1619 = vmatpush.msra.mxu0 %v1146
    %1620 = vmatpush.msra.mxu0 %v1145
    %1621 = vmatpush.msra.mxu0 %v1144
    %1622 = vmatmul.f32.gmra.mxu0 %v1564
    %v1623 = vpop.f32.mrf.mxu0
    %v1624 = vadd.f32 %v1605, %v1623
    %1625 = vmatmul.f32.gmra.mxu0 %v1604
    %v1626 = vpop.f32.mrf.mxu0
    %v1627 = vadd.f32 %v1605, %v1626
    %1628 = vdwg.mxu0
    %v1629 = vmax.f32 %v1624, 0.0
    %v1630 = vmax.f32 %v1627, 0.0
    %v1631 = vperm.slane %v1199, 0
    %1632 = vmatpush.msra.mxu0 %v1192
    %1633 = vmatpush.msra.mxu0 %v1191
    %1634 = vmatpush.msra.mxu0 %v1190
    %1635 = vmatpush.msra.mxu0 %v1189
    %1636 = vmatpush.msra.mxu0 %v1188
    %1637 = vmatpush.msra.mxu0 %v1187
    %1638 = vmatpush.msra.mxu0 %v1186
    %1639 = vmatpush.msra.mxu0 %v1185
    %1640 = vmatpush.msra.mxu0 %v1184
    %1641 = vmatpush.msra.mxu0 %v1183
    %1642 = vmatpush.msra.mxu0 %v1182
    %1643 = vmatpush.msra.mxu0 %v1181
    %1644 = vmatpush.msra.mxu0 %v1180
    %1645 = vmatpush.msra.mxu0 %v1179
    %1646 = vmatpush.msra.mxu0 %v1178
    %1647 = vmatpush.msra.mxu0 %v1177
    %1648 = vmatmul.f32.gmra.mxu0 %v1629
    %v1649 = vpop.f32.mrf.mxu0
    %v1650 = vadd.f32 %v1631, %v1649
    %1651 = vmatmul.f32.gmra.mxu0 %v1630
    %v1652 = vpop.f32.mrf.mxu0
    %v1653 = vadd.f32 %v1631, %v1652
    %1654 = vdwg.mxu0
    %v1655 = vadd.f32 %v1650, %v1564
    %v1656 = vadd.f32 %v1653, %v1604
    %1657 = vadd.xlane.f32.xlu0 %v1655
    %v1658 = vpop.xlane.xlu0 %1657
    %v1659 = vrot.slane %v1658, 4
    %v1660 = vadd.f32 %v1658, %v1659
    %v1661 = vrot.slane %v1660, 2
    %v1662 = vadd.f32 %v1660, %v1661
    %v1663 = vrot.slane %v1662, 1
    %v1664 = vadd.f32 %v1662, %v1663
    %s1665 = vtos %v1664
    %v1666 = vstv %s1665
    %v1667 = vmul.f32 %v1655, %v1655
    %1668 = vadd.xlane.f32.xlu0 %v1667
    %v1669 = vpop.xlane.xlu0 %1668
    %v1670 = vrot.slane %v1669, 4
    %v1671 = vadd.f32 %v1669, %v1670
    %v1672 = vrot.slane %v1671, 2
    %v1673 = vadd.f32 %v1671, %v1672
    %v1674 = vrot.slane %v1673, 1
    %v1675 = vadd.f32 %v1673, %v1674
    %s1676 = vtos %v1675
    %v1677 = vstv %s1676
    %v1678 = vmul.f32 %v1666, 0.0009765625
    %v1679 = vmul.f32 %v1677, 0.0009765625
    %v1680 = vmul.f32 %v1678, %v1678
    %v1681 = vsub.f32 %v1679, %v1680
    %v1682 = vsub.f32 %v1655, %v1678
    %v1683 = vadd.f32 %v1681, 1e-05
    %v1684 = vrsqrt.pop %v1683
    %v1685 = vmul.f32 %v1684, %v1683
    %v1686 = vmul.f32 %v1685, %v1684
    %v1687 = vmul.f32 0.5, %v1686
    %v1688 = vsub.f32 1.5, %v1687
    %v1689 = vmul.f32 %v1684, %v1688
    %vm1690 = vweird.f32 %v1683
    %vm1691 = vweird.f32 %v1684
    %vm1692 = vmor %vm1690, %vm1691
    %v1693 = vsel %vm1692, %v1684, %v1689
    %v1694 = vmul.f32 %v1682, %v1693
    %v1695 = vmul.f32 %v1694, %v1196
    %v1696 = vadd.f32 %v1695, %v1197
    %1697 = vset.pattern.permute.xlu0 12
    %1698 = vperm.xlu0 %1697, %v101
    %v1699 = vpop.permute.xlu0 %1698
    %v1701 = vmul.f32 %v1699, %v139
    %1702 = vset.pattern.permute.xlu0 15
    %1703 = vperm.xlu0 %1702, %v101
    %v1704 = vpop.permute.xlu0 %1703
    %v1706 = vadd.f32 %v1704, %v1701
    %1707 = vset.pattern.permute.xlu0 13
    %1708 = vperm.xlu0 %1707, %v101
    %v1709 = vpop.permute.xlu0 %1708
    %v1711 = vmul.f32 %v1709, %v145
    %v1712 = vadd.f32 %v1706, %v1711
    %1713 = vset.pattern.permute.xlu0 14
    %1714 = vperm.xlu0 %1713, %v101
    %v1715 = vpop.permute.xlu0 %1714
    %v1717 = vmul.f32 %v1715, %v152
    %v1718 = vadd.f32 %v1712, %v1717
    %v1719 = vxor.u32 %v1718, 2147483648
    %v1720 = vmul.f32 %v1719, 1.442695
    %v1721 = vpow.pop %v1720
    %v1722 = vadd.f32 %v1721, 1.0
    %v1723 = vrcp.pop %v1722
    %v1724 = vmul.f32 %v1722, %v1723
    %v1725 = vsub.f32 1.0, %v1724
    %v1726 = vmul.f32 %v1723, %v1725
    %v1727 = vadd.f32 %v1723, %v1726
    %vm1728 = vweird.f32 %v1722
    %vm1729 = vweird.f32 %v1723
    %vm1730 = vmor %vm1728, %vm1729
    %v1731 = vsel %vm1730, %v1723, %v1727
    %v1732 = vand.u32 2147483647, %v1722
    %vm1733 = vcmp.eq.f32.partialorder %v1732, 8.507059e+37
    %v1734 = vand.u32 %v1722, 2147483648
    %v1735 = vor.u32 1.1754944e-38, %v1734
    %v1736 = vsel %vm1733, %v1735, %v1731
    %v1737 = vmul.f32 1.0, %v1736
    %v1738 = vmul.f32 %v1696, %v1737
    %v1739 = vadd.f32 %v927, %v1738
    %1740 = vadd.xlane.f32.xlu0 %v1656
    %v1741 = vpop.xlane.xlu0 %1740
    %v1742 = vrot.slane %v1741, 4
    %v1743 = vadd.f32 %v1741, %v1742
    %v1744 = vrot.slane %v1743, 2
    %v1745 = vadd.f32 %v1743, %v1744
    %v1746 = vrot.slane %v1745, 1
    %v1747 = vadd.f32 %v1745, %v1746
    %s1748 = vtos %v1747
    %v1749 = vstv %s1748
    %v1750 = vmul.f32 %v1656, %v1656
    %1751 = vadd.xlane.f32.xlu0 %v1750
    %v1752 = vpop.xlane.xlu0 %1751
    %v1753 = vrot.slane %v1752, 4
    %v1754 = vadd.f32 %v1752, %v1753
    %v1755 = vrot.slane %v1754, 2
    %v1756 = vadd.f32 %v1754, %v1755
    %v1757 = vrot.slane %v1756, 1
    %v1758 = vadd.f32 %v1756, %v1757
    %s1759 = vtos %v1758
    %v1760 = vstv %s1759
    %v1761 = vmul.f32 %v1749, 0.0009765625
    %v1762 = vmul.f32 %v1760, 0.0009765625
    %v1763 = vmul.f32 %v1761, %v1761
    %v1764 = vsub.f32 %v1762, %v1763
    %v1765 = vsub.f32 %v1656, %v1761
    %v1766 = vadd.f32 %v1764, 1e-05
    %v1767 = vrsqrt.pop %v1766
    %v1768 = vmul.f32 %v1767, %v1766
    %v1769 = vmul.f32 %v1768, %v1767
    %v1770 = vmul.f32 0.5, %v1769
    %v1771 = vsub.f32 1.5, %v1770
    %v1772 = vmul.f32 %v1767, %v1771
    %vm1773 = vweird.f32 %v1766
    %vm1774 = vweird.f32 %v1767
    %vm1775 = vmor %vm1773, %vm1774
    %v1776 = vsel %vm1775, %v1767, %v1772
    %v1777 = vmul.f32 %v1765, %v1776
    %v1778 = vmul.f32 %v1777, %v1196
    %v1779 = vadd.f32 %v1778, %v1197
    %v1780 = vmul.f32 %v1699, %v166
    %v1781 = vadd.f32 %v1704, %v1780
    %v1782 = vmul.f32 %v1709, %v168
    %v1783 = vadd.f32 %v1781, %v1782
    %v1784 = vmul.f32 %v1715, %v171
    %v1785 = vadd.f32 %v1783, %v1784
    %v1786 = vxor.u32 %v1785, 2147483648
    %v1787 = vmul.f32 %v1786, 1.442695
    %v1788 = vpow.pop %v1787
    %v1789 = vadd.f32 %v1788, 1.0
    %v1790 = vrcp.pop %v1789
    %v1791 = vmul.f32 %v1789, %v1790
    %v1792 = vsub.f32 1.0, %v1791
    %v1793 = vmul.f32 %v1790, %v1792
    %v1794 = vadd.f32 %v1790, %v1793
    %vm1795 = vweird.f32 %v1789
    %vm1796 = vweird.f32 %v1790
    %vm1797 = vmor %vm1795, %vm1796
    %v1798 = vsel %vm1797, %v1790, %v1794
    %v1799 = vand.u32 2147483647, %v1789
    %vm1800 = vcmp.eq.f32.partialorder %v1799, 8.507059e+37
    %v1801 = vand.u32 %v1789, 2147483648
    %v1802 = vor.u32 1.1754944e-38, %v1801
    %v1803 = vsel %vm1800, %v1802, %v1798
    %v1804 = vmul.f32 1.0, %v1803
    %v1805 = vmul.f32 %v1779, %v1804
    %v1806 = vadd.f32 %v994, %v1805
    %v1808 = vrot.slane %v103, 7
    %vm1810 = vcmask 1040384
    %v1811 = vsel %vm1810, %v103, %v1808
    %v1813 = vrot.slane %v1806, 7
    %v1815 = vsel %vm1810, %v1739, %v1813
    %v1816 = vld [vmem:[#allocation10] sm:$0xf]
    %v1817 = vld [vmem:[#allocation10 + $0x4] sm:$0xf]
    %v1818 = vld [vmem:[#allocation10 + $0x8] sm:$0xf]
    %v1819 = vld [vmem:[#allocation10 + $0xc] sm:$0xf]
    %v1820 = vld [vmem:[#allocation10 + $0x10] sm:$0xf]
    %v1821 = vld [vmem:[#allocation10 + $0x14] sm:$0xf]
    %v1822 = vld [vmem:[#allocation10 + $0x18] sm:$0xf]
    %v1823 = vld [vmem:[#allocation10 + $0x1c] sm:$0xf]
    %v1824 = vld [vmem:[#allocation10 + $0x20] sm:$0xf]
    %v1825 = vld [vmem:[#allocation10 + $0x24] sm:$0xf]
    %v1826 = vld [vmem:[#allocation10 + $0x28] sm:$0xf]
    %v1827 = vld [vmem:[#allocation10 + $0x2c] sm:$0xf]
    %v1828 = vld [vmem:[#allocation10 + $0x30] sm:$0xf]
    %v1829 = vld [vmem:[#allocation10 + $0x34] sm:$0xf]
    %v1830 = vld [vmem:[#allocation10 + $0x38] sm:$0xf]
    %v1831 = vld [vmem:[#allocation10 + $0x3c] sm:$0xf]
    %v1832 = vunpack.c.l.bf16 %v1816
    %v1833 = vunpack.c.l.bf16 %v1817
    %v1834 = vunpack.c.l.bf16 %v1818
    %v1835 = vunpack.c.l.bf16 %v1819
    %v1836 = vunpack.c.l.bf16 %v1820
    %v1837 = vunpack.c.l.bf16 %v1821
    %v1838 = vunpack.c.l.bf16 %v1822
    %v1839 = vunpack.c.l.bf16 %v1823
    %v1840 = vunpack.c.l.bf16 %v1824
    %v1841 = vunpack.c.l.bf16 %v1825
    %v1842 = vunpack.c.l.bf16 %v1826
    %v1843 = vunpack.c.l.bf16 %v1827
    %v1844 = vunpack.c.l.bf16 %v1828
    %v1845 = vunpack.c.l.bf16 %v1829
    %v1846 = vunpack.c.l.bf16 %v1830
    %v1847 = vunpack.c.l.bf16 %v1831
    %1848 = vmatpush.msra.mxu0 %v1847
    %1849 = vmatpush.msra.mxu0 %v1846
    %1850 = vmatpush.msra.mxu0 %v1845
    %1851 = vmatpush.msra.mxu0 %v1844
    %1852 = vmatpush.msra.mxu0 %v1843
    %1853 = vmatpush.msra.mxu0 %v1842
    %1854 = vmatpush.msra.mxu0 %v1841
    %1855 = vmatpush.msra.mxu0 %v1840
    %1856 = vmatpush.msra.mxu0 %v1839
    %1857 = vmatpush.msra.mxu0 %v1838
    %1858 = vmatpush.msra.mxu0 %v1837
    %1859 = vmatpush.msra.mxu0 %v1836
    %1860 = vmatpush.msra.mxu0 %v1835
    %1861 = vmatpush.msra.mxu0 %v1834
    %1862 = vmatpush.msra.mxu0 %v1833
    %1863 = vmatpush.msra.mxu0 %v1832
    %1864 = vmatmul.f32.gmra.mxu0 %v1815
    %v1865 = vpop.f32.mrf.mxu0
    %v1866 = vadd.f32 0.0, %v1865
    %1867 = vdwg.mxu0
    %v1868 = vadd.f32 %v1811, %v1866
    %v1870 = vrot.slane %v1739, 1
    %v1872 = vsel %vm1810, %v1870, %v1806
    %s1873 = scalar_lea.vmem [#allocation10], 64
    %v1874 = vld [vmem:[%s1873] sm:$0xf]
    %v1875 = vld [vmem:[%s1873 + $0x4] sm:$0xf]
    %v1876 = vld [vmem:[%s1873 + $0x8] sm:$0xf]
    %v1877 = vld [vmem:[%s1873 + $0xc] sm:$0xf]
    %v1878 = vld [vmem:[%s1873 + $0x10] sm:$0xf]
    %v1879 = vld [vmem:[%s1873 + $0x14] sm:$0xf]
    %v1880 = vld [vmem:[%s1873 + $0x18] sm:$0xf]
    %v1881 = vld [vmem:[%s1873 + $0x1c] sm:$0xf]
    %v1882 = vld [vmem:[%s1873 + $0x20] sm:$0xf]
    %v1883 = vld [vmem:[%s1873 + $0x24] sm:$0xf]
    %v1884 = vld [vmem:[%s1873 + $0x28] sm:$0xf]
    %v1885 = vld [vmem:[%s1873 + $0x2c] sm:$0xf]
    %v1886 = vld [vmem:[%s1873 + $0x30] sm:$0xf]
    %v1887 = vld [vmem:[%s1873 + $0x34] sm:$0xf]
    %v1888 = vld [vmem:[%s1873 + $0x38] sm:$0xf]
    %v1889 = vld [vmem:[%s1873 + $0x3c] sm:$0xf]
    %v1890 = vunpack.c.l.bf16 %v1874
    %v1891 = vunpack.c.l.bf16 %v1875
    %v1892 = vunpack.c.l.bf16 %v1876
    %v1893 = vunpack.c.l.bf16 %v1877
    %v1894 = vunpack.c.l.bf16 %v1878
    %v1895 = vunpack.c.l.bf16 %v1879
    %v1896 = vunpack.c.l.bf16 %v1880
    %v1897 = vunpack.c.l.bf16 %v1881
    %v1898 = vunpack.c.l.bf16 %v1882
    %v1899 = vunpack.c.l.bf16 %v1883
    %v1900 = vunpack.c.l.bf16 %v1884
    %v1901 = vunpack.c.l.bf16 %v1885
    %v1902 = vunpack.c.l.bf16 %v1886
    %v1903 = vunpack.c.l.bf16 %v1887
    %v1904 = vunpack.c.l.bf16 %v1888
    %v1905 = vunpack.c.l.bf16 %v1889
    %1906 = vmatpush.msra.mxu0 %v1905
    %1907 = vmatpush.msra.mxu0 %v1904
    %1908 = vmatpush.msra.mxu0 %v1903
    %1909 = vmatpush.msra.mxu0 %v1902
    %1910 = vmatpush.msra.mxu0 %v1901
    %1911 = vmatpush.msra.mxu0 %v1900
    %1912 = vmatpush.msra.mxu0 %v1899
    %1913 = vmatpush.msra.mxu0 %v1898
    %1914 = vmatpush.msra.mxu0 %v1897
    %1915 = vmatpush.msra.mxu0 %v1896
    %1916 = vmatpush.msra.mxu0 %v1895
    %1917 = vmatpush.msra.mxu0 %v1894
    %1918 = vmatpush.msra.mxu0 %v1893
    %1919 = vmatpush.msra.mxu0 %v1892
    %1920 = vmatpush.msra.mxu0 %v1891
    %1921 = vmatpush.msra.mxu0 %v1890
    %1922 = vmatmul.f32.gmra.mxu0 %v1872
    %v1923 = vpop.f32.mrf.mxu0
    %v1924 = vadd.f32 0.0, %v1923
    %1925 = vdwg.mxu0
    %v1926 = vadd.f32 %v1868, %v1924
    %v1927 = vrot.slane %v1739, 2
    %v1929 = vrot.slane %v1806, 1
    %v1931 = vsel %vm1810, %v1927, %v1929
    %s1932 = scalar_lea.vmem [#allocation10], 128
    %v1933 = vld [vmem:[%s1932] sm:$0xf]
    %v1934 = vld [vmem:[%s1932 + $0x4] sm:$0xf]
    %v1935 = vld [vmem:[%s1932 + $0x8] sm:$0xf]
    %v1936 = vld [vmem:[%s1932 + $0xc] sm:$0xf]
    %v1937 = vld [vmem:[%s1932 + $0x10] sm:$0xf]
    %v1938 = vld [vmem:[%s1932 + $0x14] sm:$0xf]
    %v1939 = vld [vmem:[%s1932 + $0x18] sm:$0xf]
    %v1940 = vld [vmem:[%s1932 + $0x1c] sm:$0xf]
    %v1941 = vld [vmem:[%s1932 + $0x20] sm:$0xf]
    %v1942 = vld [vmem:[%s1932 + $0x24] sm:$0xf]
    %v1943 = vld [vmem:[%s1932 + $0x28] sm:$0xf]
    %v1944 = vld [vmem:[%s1932 + $0x2c] sm:$0xf]
    %v1945 = vld [vmem:[%s1932 + $0x30] sm:$0xf]
    %v1946 = vld [vmem:[%s1932 + $0x34] sm:$0xf]
    %v1947 = vld [vmem:[%s1932 + $0x38] sm:$0xf]
    %v1948 = vld [vmem:[%s1932 + $0x3c] sm:$0xf]
    %v1949 = vunpack.c.l.bf16 %v1933
    %v1950 = vunpack.c.l.bf16 %v1934
    %v1951 = vunpack.c.l.bf16 %v1935
    %v1952 = vunpack.c.l.bf16 %v1936
    %v1953 = vunpack.c.l.bf16 %v1937
    %v1954 = vunpack.c.l.bf16 %v1938
    %v1955 = vunpack.c.l.bf16 %v1939
    %v1956 = vunpack.c.l.bf16 %v1940
    %v1957 = vunpack.c.l.bf16 %v1941
    %v1958 = vunpack.c.l.bf16 %v1942
    %v1959 = vunpack.c.l.bf16 %v1943
    %v1960 = vunpack.c.l.bf16 %v1944
    %v1961 = vunpack.c.l.bf16 %v1945
    %v1962 = vunpack.c.l.bf16 %v1946
    %v1963 = vunpack.c.l.bf16 %v1947
    %v1964 = vunpack.c.l.bf16 %v1948
    %1965 = vmatpush.msra.mxu0 %v1964
    %1966 = vmatpush.msra.mxu0 %v1963
    %1967 = vmatpush.msra.mxu0 %v1962
    %1968 = vmatpush.msra.mxu0 %v1961
    %1969 = vmatpush.msra.mxu0 %v1960
    %1970 = vmatpush.msra.mxu0 %v1959
    %1971 = vmatpush.msra.mxu0 %v1958
    %1972 = vmatpush.msra.mxu0 %v1957
    %1973 = vmatpush.msra.mxu0 %v1956
    %1974 = vmatpush.msra.mxu0 %v1955
    %1975 = vmatpush.msra.mxu0 %v1954
    %1976 = vmatpush.msra.mxu0 %v1953
    %1977 = vmatpush.msra.mxu0 %v1952
    %1978 = vmatpush.msra.mxu0 %v1951
    %1979 = vmatpush.msra.mxu0 %v1950
    %1980 = vmatpush.msra.mxu0 %v1949
    %1981 = vmatmul.f32.gmra.mxu0 %v1931
    %v1982 = vpop.f32.mrf.mxu0
    %v1983 = vadd.f32 0.0, %v1982
    %1984 = vdwg.mxu0
    %v1985 = vadd.f32 %v1926, %v1983
    %v1986 = vrot.slane %v1739, 3
    %v1988 = vrot.slane %v1806, 2
    %v1990 = vsel %vm1810, %v1986, %v1988
    %s1991 = scalar_lea.vmem [#allocation10], 192
    %v1992 = vld [vmem:[%s1991] sm:$0xf]
    %v1993 = vld [vmem:[%s1991 + $0x4] sm:$0xf]
    %v1994 = vld [vmem:[%s1991 + $0x8] sm:$0xf]
    %v1995 = vld [vmem:[%s1991 + $0xc] sm:$0xf]
    %v1996 = vld [vmem:[%s1991 + $0x10] sm:$0xf]
    %v1997 = vld [vmem:[%s1991 + $0x14] sm:$0xf]
    %v1998 = vld [vmem:[%s1991 + $0x18] sm:$0xf]
    %v1999 = vld [vmem:[%s1991 + $0x1c] sm:$0xf]
    %v2000 = vld [vmem:[%s1991 + $0x20] sm:$0xf]
    %v2001 = vld [vmem:[%s1991 + $0x24] sm:$0xf]
    %v2002 = vld [vmem:[%s1991 + $0x28] sm:$0xf]
    %v2003 = vld [vmem:[%s1991 + $0x2c] sm:$0xf]
    %v2004 = vld [vmem:[%s1991 + $0x30] sm:$0xf]
    %v2005 = vld [vmem:[%s1991 + $0x34] sm:$0xf]
    %v2006 = vld [vmem:[%s1991 + $0x38] sm:$0xf]
    %v2007 = vld [vmem:[%s1991 + $0x3c] sm:$0xf]
    %v2008 = vunpack.c.l.bf16 %v1992
    %v2009 = vunpack.c.l.bf16 %v1993
    %v2010 = vunpack.c.l.bf16 %v1994
    %v2011 = vunpack.c.l.bf16 %v1995
    %v2012 = vunpack.c.l.bf16 %v1996
    %v2013 = vunpack.c.l.bf16 %v1997
    %v2014 = vunpack.c.l.bf16 %v1998
    %v2015 = vunpack.c.l.bf16 %v1999
    %v2016 = vunpack.c.l.bf16 %v2000
    %v2017 = vunpack.c.l.bf16 %v2001
    %v2018 = vunpack.c.l.bf16 %v2002
    %v2019 = vunpack.c.l.bf16 %v2003
    %v2020 = vunpack.c.l.bf16 %v2004
    %v2021 = vunpack.c.l.bf16 %v2005
    %v2022 = vunpack.c.l.bf16 %v2006
    %v2023 = vunpack.c.l.bf16 %v2007
    %2024 = vmatpush.msra.mxu0 %v2023
    %2025 = vmatpush.msra.mxu0 %v2022
    %2026 = vmatpush.msra.mxu0 %v2021
    %2027 = vmatpush.msra.mxu0 %v2020
    %2028 = vmatpush.msra.mxu0 %v2019
    %2029 = vmatpush.msra.mxu0 %v2018
    %2030 = vmatpush.msra.mxu0 %v2017
    %2031 = vmatpush.msra.mxu0 %v2016
    %2032 = vmatpush.msra.mxu0 %v2015
    %2033 = vmatpush.msra.mxu0 %v2014
    %2034 = vmatpush.msra.mxu0 %v2013
    %2035 = vmatpush.msra.mxu0 %v2012
    %2036 = vmatpush.msra.mxu0 %v2011
    %2037 = vmatpush.msra.mxu0 %v2010
    %2038 = vmatpush.msra.mxu0 %v2009
    %2039 = vmatpush.msra.mxu0 %v2008
    %2040 = vmatmul.f32.gmra.mxu0 %v1990
    %v2041 = vpop.f32.mrf.mxu0
    %v2042 = vadd.f32 0.0, %v2041
    %2043 = vdwg.mxu0
    %v2044 = vadd.f32 %v1985, %v2042
    %v2045 = vrot.slane %v1739, 4
    %v2047 = vrot.slane %v1806, 3
    %v2049 = vsel %vm1810, %v2045, %v2047
    %s2050 = scalar_lea.vmem [#allocation10], 256
    %v2051 = vld [vmem:[%s2050] sm:$0xf]
    %v2052 = vld [vmem:[%s2050 + $0x4] sm:$0xf]
    %v2053 = vld [vmem:[%s2050 + $0x8] sm:$0xf]
    %v2054 = vld [vmem:[%s2050 + $0xc] sm:$0xf]
    %v2055 = vld [vmem:[%s2050 + $0x10] sm:$0xf]
    %v2056 = vld [vmem:[%s2050 + $0x14] sm:$0xf]
    %v2057 = vld [vmem:[%s2050 + $0x18] sm:$0xf]
    %v2058 = vld [vmem:[%s2050 + $0x1c] sm:$0xf]
    %v2059 = vld [vmem:[%s2050 + $0x20] sm:$0xf]
    %v2060 = vld [vmem:[%s2050 + $0x24] sm:$0xf]
    %v2061 = vld [vmem:[%s2050 + $0x28] sm:$0xf]
    %v2062 = vld [vmem:[%s2050 + $0x2c] sm:$0xf]
    %v2063 = vld [vmem:[%s2050 + $0x30] sm:$0xf]
    %v2064 = vld [vmem:[%s2050 + $0x34] sm:$0xf]
    %v2065 = vld [vmem:[%s2050 + $0x38] sm:$0xf]
    %v2066 = vld [vmem:[%s2050 + $0x3c] sm:$0xf]
    %v2067 = vunpack.c.l.bf16 %v2051
    %v2068 = vunpack.c.l.bf16 %v2052
    %v2069 = vunpack.c.l.bf16 %v2053
    %v2070 = vunpack.c.l.bf16 %v2054
    %v2071 = vunpack.c.l.bf16 %v2055
    %v2072 = vunpack.c.l.bf16 %v2056
    %v2073 = vunpack.c.l.bf16 %v2057
    %v2074 = vunpack.c.l.bf16 %v2058
    %v2075 = vunpack.c.l.bf16 %v2059
    %v2076 = vunpack.c.l.bf16 %v2060
    %v2077 = vunpack.c.l.bf16 %v2061
    %v2078 = vunpack.c.l.bf16 %v2062
    %v2079 = vunpack.c.l.bf16 %v2063
    %v2080 = vunpack.c.l.bf16 %v2064
    %v2081 = vunpack.c.l.bf16 %v2065
    %v2082 = vunpack.c.l.bf16 %v2066
    %2083 = vmatpush.msra.mxu0 %v2082
    %2084 = vmatpush.msra.mxu0 %v2081
    %2085 = vmatpush.msra.mxu0 %v2080
    %2086 = vmatpush.msra.mxu0 %v2079
    %2087 = vmatpush.msra.mxu0 %v2078
    %2088 = vmatpush.msra.mxu0 %v2077
    %2089 = vmatpush.msra.mxu0 %v2076
    %2090 = vmatpush.msra.mxu0 %v2075
    %2091 = vmatpush.msra.mxu0 %v2074
    %2092 = vmatpush.msra.mxu0 %v2073
    %2093 = vmatpush.msra.mxu0 %v2072
    %2094 = vmatpush.msra.mxu0 %v2071
    %2095 = vmatpush.msra.mxu0 %v2070
    %2096 = vmatpush.msra.mxu0 %v2069
    %2097 = vmatpush.msra.mxu0 %v2068
    %2098 = vmatpush.msra.mxu0 %v2067
    %2099 = vmatmul.f32.gmra.mxu0 %v2049
    %v2100 = vpop.f32.mrf.mxu0
    %v2101 = vadd.f32 0.0, %v2100
    %2102 = vdwg.mxu0
    %v2103 = vadd.f32 %v2044, %v2101
    %v2104 = vrot.slane %v1739, 5
    %v2106 = vrot.slane %v1806, 4
    %v2108 = vsel %vm1810, %v2104, %v2106
    %s2109 = scalar_lea.vmem [#allocation10], 320
    %v2110 = vld [vmem:[%s2109] sm:$0xf]
    %v2111 = vld [vmem:[%s2109 + $0x4] sm:$0xf]
    %v2112 = vld [vmem:[%s2109 + $0x8] sm:$0xf]
    %v2113 = vld [vmem:[%s2109 + $0xc] sm:$0xf]
    %v2114 = vld [vmem:[%s2109 + $0x10] sm:$0xf]
    %v2115 = vld [vmem:[%s2109 + $0x14] sm:$0xf]
    %v2116 = vld [vmem:[%s2109 + $0x18] sm:$0xf]
    %v2117 = vld [vmem:[%s2109 + $0x1c] sm:$0xf]
    %v2118 = vld [vmem:[%s2109 + $0x20] sm:$0xf]
    %v2119 = vld [vmem:[%s2109 + $0x24] sm:$0xf]
    %v2120 = vld [vmem:[%s2109 + $0x28] sm:$0xf]
    %v2121 = vld [vmem:[%s2109 + $0x2c] sm:$0xf]
    %v2122 = vld [vmem:[%s2109 + $0x30] sm:$0xf]
    %v2123 = vld [vmem:[%s2109 + $0x34] sm:$0xf]
    %v2124 = vld [vmem:[%s2109 + $0x38] sm:$0xf]
    %v2125 = vld [vmem:[%s2109 + $0x3c] sm:$0xf]
    %v2126 = vunpack.c.l.bf16 %v2110
    %v2127 = vunpack.c.l.bf16 %v2111
    %v2128 = vunpack.c.l.bf16 %v2112
    %v2129 = vunpack.c.l.bf16 %v2113
    %v2130 = vunpack.c.l.bf16 %v2114
    %v2131 = vunpack.c.l.bf16 %v2115
    %v2132 = vunpack.c.l.bf16 %v2116
    %v2133 = vunpack.c.l.bf16 %v2117
    %v2134 = vunpack.c.l.bf16 %v2118
    %v2135 = vunpack.c.l.bf16 %v2119
    %v2136 = vunpack.c.l.bf16 %v2120
    %v2137 = vunpack.c.l.bf16 %v2121
    %v2138 = vunpack.c.l.bf16 %v2122
    %v2139 = vunpack.c.l.bf16 %v2123
    %v2140 = vunpack.c.l.bf16 %v2124
    %v2141 = vunpack.c.l.bf16 %v2125
    %2142 = vmatpush.msra.mxu0 %v2141
    %2143 = vmatpush.msra.mxu0 %v2140
    %2144 = vmatpush.msra.mxu0 %v2139
    %2145 = vmatpush.msra.mxu0 %v2138
    %2146 = vmatpush.msra.mxu0 %v2137
    %2147 = vmatpush.msra.mxu0 %v2136
    %2148 = vmatpush.msra.mxu0 %v2135
    %2149 = vmatpush.msra.mxu0 %v2134
    %2150 = vmatpush.msra.mxu0 %v2133
    %2151 = vmatpush.msra.mxu0 %v2132
    %2152 = vmatpush.msra.mxu0 %v2131
    %2153 = vmatpush.msra.mxu0 %v2130
    %2154 = vmatpush.msra.mxu0 %v2129
    %2155 = vmatpush.msra.mxu0 %v2128
    %2156 = vmatpush.msra.mxu0 %v2127
    %2157 = vmatpush.msra.mxu0 %v2126
    %2158 = vmatmul.f32.gmra.mxu0 %v2108
    %v2159 = vpop.f32.mrf.mxu0
    %v2160 = vadd.f32 0.0, %v2159
    %2161 = vdwg.mxu0
    %v2162 = vadd.f32 %v2103, %v2160
    %v2163 = vrot.slane %v1739, 6
    %v2165 = vrot.slane %v1806, 5
    %v2167 = vsel %vm1810, %v2163, %v2165
    %s2168 = scalar_lea.vmem [#allocation10], 384
    %v2169 = vld [vmem:[%s2168] sm:$0xf]
    %v2170 = vld [vmem:[%s2168 + $0x4] sm:$0xf]
    %v2171 = vld [vmem:[%s2168 + $0x8] sm:$0xf]
    %v2172 = vld [vmem:[%s2168 + $0xc] sm:$0xf]
    %v2173 = vld [vmem:[%s2168 + $0x10] sm:$0xf]
    %v2174 = vld [vmem:[%s2168 + $0x14] sm:$0xf]
    %v2175 = vld [vmem:[%s2168 + $0x18] sm:$0xf]
    %v2176 = vld [vmem:[%s2168 + $0x1c] sm:$0xf]
    %v2177 = vld [vmem:[%s2168 + $0x20] sm:$0xf]
    %v2178 = vld [vmem:[%s2168 + $0x24] sm:$0xf]
    %v2179 = vld [vmem:[%s2168 + $0x28] sm:$0xf]
    %v2180 = vld [vmem:[%s2168 + $0x2c] sm:$0xf]
    %v2181 = vld [vmem:[%s2168 + $0x30] sm:$0xf]
    %v2182 = vld [vmem:[%s2168 + $0x34] sm:$0xf]
    %v2183 = vld [vmem:[%s2168 + $0x38] sm:$0xf]
    %v2184 = vld [vmem:[%s2168 + $0x3c] sm:$0xf]
    %v2185 = vunpack.c.l.bf16 %v2169
    %v2186 = vunpack.c.l.bf16 %v2170
    %v2187 = vunpack.c.l.bf16 %v2171
    %v2188 = vunpack.c.l.bf16 %v2172
    %v2189 = vunpack.c.l.bf16 %v2173
    %v2190 = vunpack.c.l.bf16 %v2174
    %v2191 = vunpack.c.l.bf16 %v2175
    %v2192 = vunpack.c.l.bf16 %v2176
    %v2193 = vunpack.c.l.bf16 %v2177
    %v2194 = vunpack.c.l.bf16 %v2178
    %v2195 = vunpack.c.l.bf16 %v2179
    %v2196 = vunpack.c.l.bf16 %v2180
    %v2197 = vunpack.c.l.bf16 %v2181
    %v2198 = vunpack.c.l.bf16 %v2182
    %v2199 = vunpack.c.l.bf16 %v2183
    %v2200 = vunpack.c.l.bf16 %v2184
    %2201 = vmatpush.msra.mxu0 %v2200
    %2202 = vmatpush.msra.mxu0 %v2199
    %2203 = vmatpush.msra.mxu0 %v2198
    %2204 = vmatpush.msra.mxu0 %v2197
    %2205 = vmatpush.msra.mxu0 %v2196
    %2206 = vmatpush.msra.mxu0 %v2195
    %2207 = vmatpush.msra.mxu0 %v2194
    %2208 = vmatpush.msra.mxu0 %v2193
    %2209 = vmatpush.msra.mxu0 %v2192
    %2210 = vmatpush.msra.mxu0 %v2191
    %2211 = vmatpush.msra.mxu0 %v2190
    %2212 = vmatpush.msra.mxu0 %v2189
    %2213 = vmatpush.msra.mxu0 %v2188
    %2214 = vmatpush.msra.mxu0 %v2187
    %2215 = vmatpush.msra.mxu0 %v2186
    %2216 = vmatpush.msra.mxu0 %v2185
    %2217 = vmatmul.f32.gmra.mxu0 %v2167
    %v2218 = vpop.f32.mrf.mxu0
    %v2219 = vadd.f32 0.0, %v2218
    %2220 = vdwg.mxu0
    %v2221 = vadd.f32 %v2162, %v2219
    %v2222 = vrot.slane %v1739, 7
    %v2224 = vrot.slane %v1806, 6
    %v2226 = vsel %vm1810, %v2222, %v2224
    %s2227 = scalar_lea.vmem [#allocation10], 448
    %v2228 = vld [vmem:[%s2227] sm:$0xf]
    %v2229 = vld [vmem:[%s2227 + $0x4] sm:$0xf]
    %v2230 = vld [vmem:[%s2227 + $0x8] sm:$0xf]
    %v2231 = vld [vmem:[%s2227 + $0xc] sm:$0xf]
    %v2232 = vld [vmem:[%s2227 + $0x10] sm:$0xf]
    %v2233 = vld [vmem:[%s2227 + $0x14] sm:$0xf]
    %v2234 = vld [vmem:[%s2227 + $0x18] sm:$0xf]
    %v2235 = vld [vmem:[%s2227 + $0x1c] sm:$0xf]
    %v2236 = vld [vmem:[%s2227 + $0x20] sm:$0xf]
    %v2237 = vld [vmem:[%s2227 + $0x24] sm:$0xf]
    %v2238 = vld [vmem:[%s2227 + $0x28] sm:$0xf]
    %v2239 = vld [vmem:[%s2227 + $0x2c] sm:$0xf]
    %v2240 = vld [vmem:[%s2227 + $0x30] sm:$0xf]
    %v2241 = vld [vmem:[%s2227 + $0x34] sm:$0xf]
    %v2242 = vld [vmem:[%s2227 + $0x38] sm:$0xf]
    %v2243 = vld [vmem:[%s2227 + $0x3c] sm:$0xf]
    %v2244 = vunpack.c.l.bf16 %v2228
    %v2245 = vunpack.c.l.bf16 %v2229
    %v2246 = vunpack.c.l.bf16 %v2230
    %v2247 = vunpack.c.l.bf16 %v2231
    %v2248 = vunpack.c.l.bf16 %v2232
    %v2249 = vunpack.c.l.bf16 %v2233
    %v2250 = vunpack.c.l.bf16 %v2234
    %v2251 = vunpack.c.l.bf16 %v2235
    %v2252 = vunpack.c.l.bf16 %v2236
    %v2253 = vunpack.c.l.bf16 %v2237
    %v2254 = vunpack.c.l.bf16 %v2238
    %v2255 = vunpack.c.l.bf16 %v2239
    %v2256 = vunpack.c.l.bf16 %v2240
    %v2257 = vunpack.c.l.bf16 %v2241
    %v2258 = vunpack.c.l.bf16 %v2242
    %v2259 = vunpack.c.l.bf16 %v2243
    %2260 = vmatpush.msra.mxu0 %v2259
    %2261 = vmatpush.msra.mxu0 %v2258
    %2262 = vmatpush.msra.mxu0 %v2257
    %2263 = vmatpush.msra.mxu0 %v2256
    %2264 = vmatpush.msra.mxu0 %v2255
    %2265 = vmatpush.msra.mxu0 %v2254
    %2266 = vmatpush.msra.mxu0 %v2253
    %2267 = vmatpush.msra.mxu0 %v2252
    %2268 = vmatpush.msra.mxu0 %v2251
    %2269 = vmatpush.msra.mxu0 %v2250
    %2270 = vmatpush.msra.mxu0 %v2249
    %2271 = vmatpush.msra.mxu0 %v2248
    %2272 = vmatpush.msra.mxu0 %v2247
    %2273 = vmatpush.msra.mxu0 %v2246
    %2274 = vmatpush.msra.mxu0 %v2245
    %2275 = vmatpush.msra.mxu0 %v2244
    %2276 = vmatmul.f32.gmra.mxu0 %v2226
    %v2277 = vpop.f32.mrf.mxu0
    %v2278 = vadd.f32 0.0, %v2277
    %2279 = vdwg.mxu0
    %v2280 = vadd.f32 %v2221, %v2278
    %2281 = vst [vmem:[#allocation11] sm:$0x3] %v2280
    // Predicated region
    $region50: #{tpu_custom_call.1} parent=1 // pred_check
      _
    $region51: #{tpu_custom_call.1} parent=1 // pred_check_branch
      %2283 = sbr.rel (0) target = $region53
    $region52: #{tpu_custom_call.1} parent=1 // pred_region
      %2285 = vsyncadd [#allocation4], 0
      %s2287 = sshll.u32 [#allocation11], 4
      %s2288 = int_to_ptr.vmem [resolvable:$true] %s2287
      %s2289 = sshll.u32 %s7, 4
      %s2290 = int_to_ptr.hbm [resolvable:$true] %s2289
      %2292 = dma.vmem_to_hbm [thread:$0]  %s2288, 32, %s2290, [#allocation4]
    $region53: #{tpu_custom_call.1} parent=1 // pred_fallthru
      _
    // Predicated region
    $region54: #{tpu_custom_call.1} parent=1 // pred_check
      _
    $region55: #{tpu_custom_call.1} parent=1 // pred_check_branch
      %2294 = sbr.rel (0) target = $region57
    $region56: #{tpu_custom_call.1} parent=1 // pred_region
      %2296 = dma.done [#allocation4], 32
    $region57: #{tpu_custom_call.1} parent=1 // pred_fallthru
      _
    %2297 = vsyncpa [#allocation3], 1
    %2298 = vsyncpa [#allocation6], 1
    %2299 = vsyncpa [#allocation9], 1
    %2300 = vsyncpa [#allocation4], 1

</llo_original>
